<compile_context>
chip_gen: v6e
topology: v6e:2x2x1
jax: 0.10.0
libtpu: 0.0.40
codegen_flags: <defaults>
</compile_context>

<pallas_src>
import functools

import jax
import jax.numpy as jnp
import numpy as np
from jax.experimental import pallas as pl
from jax.experimental.pallas import tpu as pltpu

EPS = 1e-5


# --------------------------- Pallas kernel -----------------------------------

def _hori_conv_kernel(x_ref, w1_ref, b1_ref, w2_ref, b2_ref,
                      w0_ref, b0_ref, wm_ref, bm_ref, wo_ref, bo_ref,
                      o_ref, *, H, W, Wp):
    """Fused merger + height-max + Conv1d chain, channel-first, lane-dense Wp.

    x_ref : (1, Cin+cat, H*Wp)   (W zero-padded to Wp, x||pe concatenated)
    o_ref : (1, Cout, Wp)
    conv weights are per-tap: (3, Cout, Cin); biases are (Cout, 1) columns.
    """
    f32 = jnp.float32
    x2 = x_ref[0].astype(f32)                                       # (Ct, H*Wp)

    # ---- merger: ONE K=(Cin+cat) 1x1-conv dot, sigmoid, second 1x1 conv -----
    h = jax.nn.sigmoid(
        jnp.dot(w1_ref[...], x2, preferred_element_type=f32) + b1_ref[...])
    y = jnp.dot(w2_ref[...], h, preferred_element_type=f32) + b2_ref[...]
    # y: (Cin, H*Wp)

    # ---- max over height: H whole-vreg, 128-aligned lane slices -------------
    feat = y[:, 0:Wp]
    for hh in range(1, H):
        feat = jnp.maximum(feat, y[:, hh * Wp:(hh + 1) * Wp])       # (Cin, Wp)

    # Keep the padded lanes exactly zero so roll wrap-around supplies the
    # Conv1d halo (pad=1) for free.
    col = jax.lax.broadcasted_iota(jnp.int32, (1, Wp), 1)
    has_pad = Wp > W
    real_col = col < W

    def mask_pad(v):
        return jnp.where(real_col, v, 0.0) if has_pad else v

    feat = mask_pad(feat)

    def conv3(act, w3, b):
        # act: (Cin, Wp). prev[w] = act[w-1], nxt[w] = act[w+1] via XLU rolls;
        # wraps land in the zeroed pad lanes (or are masked when Wp == W).
        prev = pltpu.roll(act, 1, 1)
        nxt = pltpu.roll(act, Wp - 1, 1)
        if not has_pad:
            prev = jnp.where(col > 0, prev, 0.0)
            nxt = jnp.where(col < W - 1, nxt, 0.0)
        out = (jnp.dot(w3[0], prev, preferred_element_type=f32)
               + jnp.dot(w3[1], act, preferred_element_type=f32)
               + jnp.dot(w3[2], nxt, preferred_element_type=f32)
               + b)
        return mask_pad(jnp.maximum(out, 0.0))          # folded BN + fused ReLU

    h0 = conv3(feat, w0_ref[...], b0_ref[...])          # reduce_conv
    t = conv3(h0, wm_ref[0], bm_ref[0])
    h1 = conv3(t, wm_ref[1], bm_ref[1]) + h0            # conv1(x) + x
    t = conv3(h1, wm_ref[2], bm_ref[2])
    h2 = conv3(t, wm_ref[3], bm_ref[3]) + h1            # conv2(x) + x
    o_ref[0] = conv3(h2, wo_ref[...], bo_ref[...]).astype(o_ref.dtype)  # out_conv


# --------------------------- wrapper ------------------------------------------

def _full_spec(a):
    return pl.BlockSpec(a.shape, lambda b, _n=a.ndim: (0,) * _n)


def _hori_conv_fused(x_f, H, W, Wp, p):
    B, Ct, HWp = x_f.shape
    Cout = p["wo"].shape[1]

    kernel = functools.partial(_hori_conv_kernel, H=H, W=W, Wp=Wp)
    weight_args = (p["w1"], p["b1"], p["w2"], p["b2"],
                   p["w0"], p["b0"], p["wm"], p["bm"], p["wo"], p["bo"])

    return pl.pallas_call(
        kernel,
        out_shape=jax.ShapeDtypeStruct((B, Cout, Wp), jnp.float32),
        grid_spec=pltpu.PrefetchScalarGridSpec(
            num_scalar_prefetch=0,
            grid=(B,),
            in_specs=[pl.BlockSpec((1, Ct, HWp), lambda b: (b, 0, 0))]
                     + [_full_spec(w) for w in weight_args],
            out_specs=pl.BlockSpec((1, Cout, Wp), lambda b: (b, 0, 0)),
        ),
        compiler_params=pltpu.CompilerParams(dimension_semantics=("parallel",)),
    )(x_f, *weight_args)


def hori_conv_forward(x, pe, kparams):
    """x: (B, Cin, H, W) NCHW, pe: (B, cat_dim, H, W) or None.
    Returns (B, out_channels, W) like the PyTorch module."""
    B, _, H, W = x.shape
    xc = x if pe is None else jnp.concatenate([x, pe], axis=1)   # one-time concat
    Ct = xc.shape[1]
    assert kparams["w1"].shape[1] == Ct, "merger weight / input channel mismatch"

    Wp = ((W + 127) // 128) * 128                 # lane-dense width
    if Wp != W:
        xc = jnp.pad(xc, ((0, 0), (0, 0), (0, 0), (0, Wp - W)))
    x_f = xc.reshape(B, Ct, H * Wp).astype(jnp.float32)   # free row-major merge

    out = _hori_conv_fused(x_f, H, W, Wp, kparams)
    return out[:, :, :W]


# ----------------------- parameters / BN folding -----------------------------

def init_raw_params(key, in_channels, mid_channels, out_channels, cat_dim):
    ks = iter(jax.random.split(key, 64))
    nxt = lambda: next(ks)
    ct = in_channels + cat_dim

    def conv_w(shape, scale=0.1):
        return (scale * jax.random.normal(nxt(), shape)).astype(jnp.float32)

    def bn(c):
        g = jax.random.uniform(nxt(), (c,), minval=0.5, maxval=1.5).astype(jnp.float32)
        b = (0.1 * jax.random.normal(nxt(), (c,))).astype(jnp.float32)
        m = (0.1 * jax.random.normal(nxt(), (c,))).astype(jnp.float32)
        v = jax.random.uniform(nxt(), (c,), minval=0.5, maxval=1.5).astype(jnp.float32)
        return (g, b, m, v)

    return {
        # merger: two 1x1 convs (row layout (Cin_total, Cout) for the reference)
        "m_w1": conv_w((ct, in_channels)),
        "m_b1": conv_w((in_channels,)),
        "m_w2": conv_w((in_channels, in_channels)),
        "m_b2": conv_w((in_channels,)),
        # conv1d weights in (k=3, Cin, Cout) layout
        "r_w": conv_w((3, in_channels, mid_channels)), "r_bn": bn(mid_channels),
        "c1a_w": conv_w((3, mid_channels, mid_channels)), "c1a_bn": bn(mid_channels),
        "c1b_w": conv_w((3, mid_channels, mid_channels)), "c1b_bn": bn(mid_channels),
        "c2a_w": conv_w((3, mid_channels, mid_channels)), "c2a_bn": bn(mid_channels),
        "c2b_w": conv_w((3, mid_channels, mid_channels)), "c2b_bn": bn(mid_channels),
        "o_w": conv_w((3, mid_channels, out_channels)),
        "o_b": conv_w((out_channels,)),
        "o_bn": bn(out_channels),
    }


def fold_bn(w, b_conv, bn_params):
    g, b, m, v = bn_params
    scale = g / jnp.sqrt(v + EPS)
    return w * scale, (b_conv - m) * scale + b


def make_kernel_params(raw, in_channels, mid_channels, out_channels, cat_dim):
    """Fold BN (eval mode) and re-layout channel-first / per-tap for the kernel."""
    del mid_channels, out_channels, cat_dim  # shapes carried by the arrays

    def prep_conv(w, b):
        # (k=3, Cin, Cout) -> per-tap (3, Cout, Cin); bias -> (Cout, 1) column.
        return (jnp.transpose(w, (0, 2, 1)).astype(jnp.float32),
                b.reshape(-1, 1).astype(jnp.float32))

    w0, b0 = fold_bn(raw["r_w"], 0.0, raw["r_bn"])
    w1a, b1a = fold_bn(raw["c1a_w"], 0.0, raw["c1a_bn"])
    w1b, b1b = fold_bn(raw["c1b_w"], 0.0, raw["c1b_bn"])
    w2a, b2a = fold_bn(raw["c2a_w"], 0.0, raw["c2a_bn"])
    w2b, b2b = fold_bn(raw["c2b_w"], 0.0, raw["c2b_bn"])
    wo, bo = fold_bn(raw["o_w"], raw["o_b"], raw["o_bn"])

    W0, B0 = prep_conv(w0, b0)
    mids = [prep_conv(w, b) for (w, b) in
            [(w1a, b1a), (w1b, b1b), (w2a, b2a), (w2b, b2b)]]
    Wo_, Bo_ = prep_conv(wo, bo)

    return {
        # merger, channel-first; single K = Cin+cat weight (x||pe concat in wrapper)
        "w1": raw["m_w1"].T.astype(jnp.float32),
        "b1": raw["m_b1"].reshape(in_channels, 1).astype(jnp.float32),
        "w2": raw["m_w2"].T.astype(jnp.float32),
        "b2": raw["m_b2"].reshape(in_channels, 1).astype(jnp.float32),
        "w0": W0, "b0": B0,
        "wm": jnp.stack([m[0] for m in mids]),   # (4, 3, mid, mid)
        "bm": jnp.stack([m[1] for m in mids]),   # (4, mid, 1)
        "wo": Wo_, "bo": Bo_,
    }


# ----------------------- pure-JAX reference (for checking) -------------------

def ref_forward(x, pe, raw):
    if pe is not None:
        x = jnp.concatenate([x, pe], axis=1)
    x = jnp.transpose(x, (0, 2, 3, 1)).astype(jnp.float32)          # (B,H,W,Ct)
    h = jax.nn.sigmoid(x @ raw["m_w1"] + raw["m_b1"])
    y = h @ raw["m_w2"] + raw["m_b2"]
    f = jnp.max(y, axis=1)                                          # (B,W,Cin)

    def conv(x, w):
        B, W, _ = x.shape
        xp = jnp.pad(x, ((0, 0), (1, 1), (0, 0)))
        return sum(jnp.einsum("bwc,cd->bwd", xp[:, k:k + W], w[k]) for k in range(3))

    def bn(x, p):
        g, b, m, v = p
        return (x - m) / jnp.sqrt(v + EPS) * g + b

    relu = jax.nn.relu
    h0 = relu(bn(conv(f, raw["r_w"]), raw["r_bn"]))
    t = relu(bn(conv(h0, raw["c1a_w"]), raw["c1a_bn"]))
    t = relu(bn(conv(t, raw["c1b_w"]), raw["c1b_bn"]))
    h1 = t + h0
    t = relu(bn(conv(h1, raw["c2a_w"]), raw["c2a_bn"]))
    t = relu(bn(conv(t, raw["c2b_w"]), raw["c2b_bn"]))
    h2 = t + h1
    o = relu(bn(conv(h2, raw["o_w"]) + raw["o_b"], raw["o_bn"]))
    return jnp.transpose(o, (0, 2, 1))                              # (B,Cout,W)


# ----------------------------- main -------------------------------------------

if __name__ == "__main__":
    B, in_channels, cat_dim = 2, 8, 4
    mid_channels, out_channels = 16, 16
    H, W = 16, 16

    key = jax.random.PRNGKey(0)
    k_x, k_pe, k_p = jax.random.split(key, 3)
    x = jax.random.normal(k_x, (B, in_channels, H, W), dtype=jnp.float32)
    pe = jax.random.normal(k_pe, (B, cat_dim, H, W), dtype=jnp.float32)

    raw = init_raw_params(k_p, in_channels, mid_channels, out_channels, cat_dim)
    kparams = make_kernel_params(raw, in_channels, mid_channels, out_channels, cat_dim)

    out = jax.block_until_ready(hori_conv_forward(x, pe, kparams))

    ref = jax.block_until_ready(ref_forward(x, pe, raw))
    np.testing.assert_allclose(np.asarray(out), np.asarray(ref), rtol=1e-4, atol=1e-4)
    assert out.shape == (B, out_channels, W)

    print("KERNEL_OK")
</pallas_src>

<mosaic_0001>
module attributes {stable_mosaic.version = 11 : i64} {
  func.func @_hori_conv_kernel(%arg0: i32, %arg1: memref<1x12x2048xf32, #tpu.memory_space<vmem>>, %arg2: memref<8x12xf32, #tpu.memory_space<vmem>>, %arg3: memref<8x1xf32, #tpu.memory_space<vmem>>, %arg4: memref<8x8xf32, #tpu.memory_space<vmem>>, %arg5: memref<8x1xf32, #tpu.memory_space<vmem>>, %arg6: memref<3x16x8xf32, #tpu.memory_space<vmem>>, %arg7: memref<16x1xf32, #tpu.memory_space<vmem>>, %arg8: memref<4x3x16x16xf32, #tpu.memory_space<vmem>>, %arg9: memref<4x16x1xf32, #tpu.memory_space<vmem>>, %arg10: memref<3x16x16xf32, #tpu.memory_space<vmem>>, %arg11: memref<16x1xf32, #tpu.memory_space<vmem>>, %arg12: memref<1x16x128xf32, #tpu.memory_space<vmem>>) attributes {dimension_semantics = [#tpu.dimension_semantics<parallel>], iteration_bounds = array<i64: 2>, scalar_prefetch = 0 : i64, scratch_operands = 0 : i64, tpu.core_type = #tpu.core_type<tc>, window_params = [{transform_indices = @transform_0, window_bounds = array<i64: 1, 12, 2048>}, {pipeline_mode = #tpu.pipeline_mode<synchronous>, transform_indices = @transform_1, window_bounds = array<i64: 8, 12>}, {pipeline_mode = #tpu.pipeline_mode<synchronous>, transform_indices = @transform_2, window_bounds = array<i64: 8, 1>}, {pipeline_mode = #tpu.pipeline_mode<synchronous>, transform_indices = @transform_3, window_bounds = array<i64: 8, 8>}, {pipeline_mode = #tpu.pipeline_mode<synchronous>, transform_indices = @transform_4, window_bounds = array<i64: 8, 1>}, {pipeline_mode = #tpu.pipeline_mode<synchronous>, transform_indices = @transform_5, window_bounds = array<i64: 3, 16, 8>}, {pipeline_mode = #tpu.pipeline_mode<synchronous>, transform_indices = @transform_6, window_bounds = array<i64: 16, 1>}, {pipeline_mode = #tpu.pipeline_mode<synchronous>, transform_indices = @transform_7, window_bounds = array<i64: 4, 3, 16, 16>}, {pipeline_mode = #tpu.pipeline_mode<synchronous>, transform_indices = @transform_8, window_bounds = array<i64: 4, 16, 1>}, {pipeline_mode = #tpu.pipeline_mode<synchronous>, transform_indices = @transform_9, window_bounds = array<i64: 3, 16, 16>}, {pipeline_mode = #tpu.pipeline_mode<synchronous>, transform_indices = @transform_10, window_bounds = array<i64: 16, 1>}, {transform_indices = @transform_11, window_bounds = array<i64: 1, 16, 128>}]} {
    %c0 = arith.constant 0 : index
    %c0_0 = arith.constant 0 : index
    %c0_1 = arith.constant 0 : index
    %0 = vector.load %arg1[%c0, %c0_0, %c0_1] : memref<1x12x2048xf32, #tpu.memory_space<vmem>>, vector<1x12x2048xf32>
    %1 = vector.shape_cast %0 : vector<1x12x2048xf32> to vector<12x2048xf32>
    %c0_2 = arith.constant 0 : index
    %c0_3 = arith.constant 0 : index
    %2 = vector.load %arg2[%c0_2, %c0_3] : memref<8x12xf32, #tpu.memory_space<vmem>>, vector<8x12xf32>
    %cst = arith.constant dense<0.000000e+00> : vector<8x2048xf32>
    %3 = tpu.matmul %2, %1, %cst {dimension_numbers = #tpu.dot_dimension_numbers<[1], [0], [0], [1], [0, 0, 1, 1], [], []>} : vector<8x12xf32>, vector<12x2048xf32>, vector<8x2048xf32> -> vector<8x2048xf32>
    %c0_4 = arith.constant 0 : index
    %c0_5 = arith.constant 0 : index
    %4 = vector.load %arg3[%c0_4, %c0_5] : memref<8x1xf32, #tpu.memory_space<vmem>>, vector<8x1xf32>
    %5 = vector.broadcast %4 : vector<8x1xf32> to vector<8x2048xf32>
    %6 = arith.addf %3, %5 : vector<8x2048xf32>
    %7 = arith.negf %6 : vector<8x2048xf32>
    %8 = math.exp %7 : vector<8x2048xf32>
    %cst_6 = arith.constant 1.000000e+00 : f32
    %9 = vector.broadcast %cst_6 : f32 to vector<8x2048xf32>
    %10 = arith.addf %9, %8 : vector<8x2048xf32>
    %11 = arith.divf %9, %10 : vector<8x2048xf32>
    %c0_7 = arith.constant 0 : index
    %c0_8 = arith.constant 0 : index
    %12 = vector.load %arg4[%c0_7, %c0_8] : memref<8x8xf32, #tpu.memory_space<vmem>>, vector<8x8xf32>
    %cst_9 = arith.constant dense<0.000000e+00> : vector<8x2048xf32>
    %13 = tpu.matmul %12, %11, %cst_9 {dimension_numbers = #tpu.dot_dimension_numbers<[1], [0], [0], [1], [0, 0, 1, 1], [], []>} : vector<8x8xf32>, vector<8x2048xf32>, vector<8x2048xf32> -> vector<8x2048xf32>
    %c0_10 = arith.constant 0 : index
    %c0_11 = arith.constant 0 : index
    %14 = vector.load %arg5[%c0_10, %c0_11] : memref<8x1xf32, #tpu.memory_space<vmem>>, vector<8x1xf32>
    %15 = vector.broadcast %14 : vector<8x1xf32> to vector<8x2048xf32>
    %16 = arith.addf %13, %15 : vector<8x2048xf32>
    %17 = vector.extract_strided_slice %16 {offsets = [0, 0], sizes = [8, 128], strides = [1, 1]} : vector<8x2048xf32> to vector<8x128xf32>
    %18 = vector.extract_strided_slice %16 {offsets = [0, 128], sizes = [8, 128], strides = [1, 1]} : vector<8x2048xf32> to vector<8x128xf32>
    %19 = arith.maximumf %17, %18 : vector<8x128xf32>
    %20 = vector.extract_strided_slice %16 {offsets = [0, 256], sizes = [8, 128], strides = [1, 1]} : vector<8x2048xf32> to vector<8x128xf32>
    %21 = arith.maximumf %19, %20 : vector<8x128xf32>
    %22 = vector.extract_strided_slice %16 {offsets = [0, 384], sizes = [8, 128], strides = [1, 1]} : vector<8x2048xf32> to vector<8x128xf32>
    %23 = arith.maximumf %21, %22 : vector<8x128xf32>
    %24 = vector.extract_strided_slice %16 {offsets = [0, 512], sizes = [8, 128], strides = [1, 1]} : vector<8x2048xf32> to vector<8x128xf32>
    %25 = arith.maximumf %23, %24 : vector<8x128xf32>
    %26 = vector.extract_strided_slice %16 {offsets = [0, 640], sizes = [8, 128], strides = [1, 1]} : vector<8x2048xf32> to vector<8x128xf32>
    %27 = arith.maximumf %25, %26 : vector<8x128xf32>
    %28 = vector.extract_strided_slice %16 {offsets = [0, 768], sizes = [8, 128], strides = [1, 1]} : vector<8x2048xf32> to vector<8x128xf32>
    %29 = arith.maximumf %27, %28 : vector<8x128xf32>
    %30 = vector.extract_strided_slice %16 {offsets = [0, 896], sizes = [8, 128], strides = [1, 1]} : vector<8x2048xf32> to vector<8x128xf32>
    %31 = arith.maximumf %29, %30 : vector<8x128xf32>
    %32 = vector.extract_strided_slice %16 {offsets = [0, 1024], sizes = [8, 128], strides = [1, 1]} : vector<8x2048xf32> to vector<8x128xf32>
    %33 = arith.maximumf %31, %32 : vector<8x128xf32>
    %34 = vector.extract_strided_slice %16 {offsets = [0, 1152], sizes = [8, 128], strides = [1, 1]} : vector<8x2048xf32> to vector<8x128xf32>
    %35 = arith.maximumf %33, %34 : vector<8x128xf32>
    %36 = vector.extract_strided_slice %16 {offsets = [0, 1280], sizes = [8, 128], strides = [1, 1]} : vector<8x2048xf32> to vector<8x128xf32>
    %37 = arith.maximumf %35, %36 : vector<8x128xf32>
    %38 = vector.extract_strided_slice %16 {offsets = [0, 1408], sizes = [8, 128], strides = [1, 1]} : vector<8x2048xf32> to vector<8x128xf32>
    %39 = arith.maximumf %37, %38 : vector<8x128xf32>
    %40 = vector.extract_strided_slice %16 {offsets = [0, 1536], sizes = [8, 128], strides = [1, 1]} : vector<8x2048xf32> to vector<8x128xf32>
    %41 = arith.maximumf %39, %40 : vector<8x128xf32>
    %42 = vector.extract_strided_slice %16 {offsets = [0, 1664], sizes = [8, 128], strides = [1, 1]} : vector<8x2048xf32> to vector<8x128xf32>
    %43 = arith.maximumf %41, %42 : vector<8x128xf32>
    %44 = vector.extract_strided_slice %16 {offsets = [0, 1792], sizes = [8, 128], strides = [1, 1]} : vector<8x2048xf32> to vector<8x128xf32>
    %45 = arith.maximumf %43, %44 : vector<8x128xf32>
    %46 = vector.extract_strided_slice %16 {offsets = [0, 1920], sizes = [8, 128], strides = [1, 1]} : vector<8x2048xf32> to vector<8x128xf32>
    %47 = arith.maximumf %45, %46 : vector<8x128xf32>
    %48 = tpu.iota {dimensions = array<i32: 1>} : vector<1x128xi32>
    %c16_i32 = arith.constant 16 : i32
    %49 = vector.broadcast %c16_i32 : i32 to vector<1x128xi32>
    %50 = arith.cmpi slt, %48, %49 : vector<1x128xi32>
    %cst_12 = arith.constant 0.000000e+00 : f32
    %51 = vector.shape_cast %50 : vector<1x128xi1> to vector<1x128xi1>
    %52 = vector.broadcast %51 : vector<1x128xi1> to vector<8x128xi1>
    %53 = vector.broadcast %cst_12 : f32 to vector<8x128xf32>
    %54 = arith.select %52, %47, %53 : vector<8x128xi1>, vector<8x128xf32>
    %c0_13 = arith.constant 0 : index
    %c0_14 = arith.constant 0 : index
    %c0_15 = arith.constant 0 : index
    %55 = vector.load %arg6[%c0_13, %c0_14, %c0_15] : memref<3x16x8xf32, #tpu.memory_space<vmem>>, vector<3x16x8xf32>
    %c0_16 = arith.constant 0 : index
    %c0_17 = arith.constant 0 : index
    %56 = vector.load %arg7[%c0_16, %c0_17] : memref<16x1xf32, #tpu.memory_space<vmem>>, vector<16x1xf32>
    %c1_i32 = arith.constant 1 : i32
    %57 = tpu.dynamic_rotate %54 by %c1_i32 dim 1 : vector<8x128xf32>, i32 -> vector<8x128xf32>
    %c127_i32 = arith.constant 127 : i32
    %58 = tpu.dynamic_rotate %54 by %c127_i32 dim 1 : vector<8x128xf32>, i32 -> vector<8x128xf32>
    %59 = vector.extract_strided_slice %55 {offsets = [0, 0, 0], sizes = [1, 16, 8], strides = [1, 1, 1]} : vector<3x16x8xf32> to vector<1x16x8xf32>
    %60 = vector.shape_cast %59 : vector<1x16x8xf32> to vector<16x8xf32>
    %cst_18 = arith.constant dense<0.000000e+00> : vector<16x128xf32>
    %61 = tpu.matmul %60, %57, %cst_18 {dimension_numbers = #tpu.dot_dimension_numbers<[1], [0], [0], [1], [0, 0, 1, 1], [], []>} : vector<16x8xf32>, vector<8x128xf32>, vector<16x128xf32> -> vector<16x128xf32>
    %62 = vector.extract_strided_slice %55 {offsets = [1, 0, 0], sizes = [1, 16, 8], strides = [1, 1, 1]} : vector<3x16x8xf32> to vector<1x16x8xf32>
    %63 = vector.shape_cast %62 : vector<1x16x8xf32> to vector<16x8xf32>
    %cst_19 = arith.constant dense<0.000000e+00> : vector<16x128xf32>
    %64 = tpu.matmul %63, %54, %cst_19 {dimension_numbers = #tpu.dot_dimension_numbers<[1], [0], [0], [1], [0, 0, 1, 1], [], []>} : vector<16x8xf32>, vector<8x128xf32>, vector<16x128xf32> -> vector<16x128xf32>
    %65 = arith.addf %61, %64 : vector<16x128xf32>
    %66 = vector.extract_strided_slice %55 {offsets = [2, 0, 0], sizes = [1, 16, 8], strides = [1, 1, 1]} : vector<3x16x8xf32> to vector<1x16x8xf32>
    %67 = vector.shape_cast %66 : vector<1x16x8xf32> to vector<16x8xf32>
    %cst_20 = arith.constant dense<0.000000e+00> : vector<16x128xf32>
    %68 = tpu.matmul %67, %58, %cst_20 {dimension_numbers = #tpu.dot_dimension_numbers<[1], [0], [0], [1], [0, 0, 1, 1], [], []>} : vector<16x8xf32>, vector<8x128xf32>, vector<16x128xf32> -> vector<16x128xf32>
    %69 = arith.addf %65, %68 : vector<16x128xf32>
    %70 = vector.broadcast %56 : vector<16x1xf32> to vector<16x128xf32>
    %71 = arith.addf %69, %70 : vector<16x128xf32>
    %cst_21 = arith.constant 0.000000e+00 : f32
    %72 = vector.broadcast %cst_21 : f32 to vector<16x128xf32>
    %73 = arith.maximumf %71, %72 : vector<16x128xf32>
    %cst_22 = arith.constant 0.000000e+00 : f32
    %74 = vector.shape_cast %50 : vector<1x128xi1> to vector<1x128xi1>
    %75 = vector.broadcast %74 : vector<1x128xi1> to vector<16x128xi1>
    %76 = vector.broadcast %cst_22 : f32 to vector<16x128xf32>
    %77 = arith.select %75, %73, %76 : vector<16x128xi1>, vector<16x128xf32>
    %c0_23 = arith.constant 0 : index
    %c0_24 = arith.constant 0 : index
    %c0_25 = arith.constant 0 : index
    %c0_26 = arith.constant 0 : index
    %78 = vector.load %arg8[%c0_23, %c0_24, %c0_25, %c0_26] : memref<4x3x16x16xf32, #tpu.memory_space<vmem>>, vector<1x3x16x16xf32>
    %79 = vector.shape_cast %78 : vector<1x3x16x16xf32> to vector<3x16x16xf32>
    %c0_27 = arith.constant 0 : index
    %c0_28 = arith.constant 0 : index
    %c0_29 = arith.constant 0 : index
    %80 = vector.load %arg9[%c0_27, %c0_28, %c0_29] : memref<4x16x1xf32, #tpu.memory_space<vmem>>, vector<1x16x1xf32>
    %81 = vector.shape_cast %80 : vector<1x16x1xf32> to vector<16x1xf32>
    %c1_i32_30 = arith.constant 1 : i32
    %82 = tpu.dynamic_rotate %77 by %c1_i32_30 dim 1 : vector<16x128xf32>, i32 -> vector<16x128xf32>
    %c127_i32_31 = arith.constant 127 : i32
    %83 = tpu.dynamic_rotate %77 by %c127_i32_31 dim 1 : vector<16x128xf32>, i32 -> vector<16x128xf32>
    %84 = vector.extract_strided_slice %79 {offsets = [0, 0, 0], sizes = [1, 16, 16], strides = [1, 1, 1]} : vector<3x16x16xf32> to vector<1x16x16xf32>
    %85 = vector.shape_cast %84 : vector<1x16x16xf32> to vector<16x16xf32>
    %cst_32 = arith.constant dense<0.000000e+00> : vector<16x128xf32>
    %86 = tpu.matmul %85, %82, %cst_32 {dimension_numbers = #tpu.dot_dimension_numbers<[1], [0], [0], [1], [0, 0, 1, 1], [], []>} : vector<16x16xf32>, vector<16x128xf32>, vector<16x128xf32> -> vector<16x128xf32>
    %87 = vector.extract_strided_slice %79 {offsets = [1, 0, 0], sizes = [1, 16, 16], strides = [1, 1, 1]} : vector<3x16x16xf32> to vector<1x16x16xf32>
    %88 = vector.shape_cast %87 : vector<1x16x16xf32> to vector<16x16xf32>
    %cst_33 = arith.constant dense<0.000000e+00> : vector<16x128xf32>
    %89 = tpu.matmul %88, %77, %cst_33 {dimension_numbers = #tpu.dot_dimension_numbers<[1], [0], [0], [1], [0, 0, 1, 1], [], []>} : vector<16x16xf32>, vector<16x128xf32>, vector<16x128xf32> -> vector<16x128xf32>
    %90 = arith.addf %86, %89 : vector<16x128xf32>
    %91 = vector.extract_strided_slice %79 {offsets = [2, 0, 0], sizes = [1, 16, 16], strides = [1, 1, 1]} : vector<3x16x16xf32> to vector<1x16x16xf32>
    %92 = vector.shape_cast %91 : vector<1x16x16xf32> to vector<16x16xf32>
    %cst_34 = arith.constant dense<0.000000e+00> : vector<16x128xf32>
    %93 = tpu.matmul %92, %83, %cst_34 {dimension_numbers = #tpu.dot_dimension_numbers<[1], [0], [0], [1], [0, 0, 1, 1], [], []>} : vector<16x16xf32>, vector<16x128xf32>, vector<16x128xf32> -> vector<16x128xf32>
    %94 = arith.addf %90, %93 : vector<16x128xf32>
    %95 = vector.broadcast %81 : vector<16x1xf32> to vector<16x128xf32>
    %96 = arith.addf %94, %95 : vector<16x128xf32>
    %cst_35 = arith.constant 0.000000e+00 : f32
    %97 = vector.broadcast %cst_35 : f32 to vector<16x128xf32>
    %98 = arith.maximumf %96, %97 : vector<16x128xf32>
    %cst_36 = arith.constant 0.000000e+00 : f32
    %99 = vector.shape_cast %50 : vector<1x128xi1> to vector<1x128xi1>
    %100 = vector.broadcast %99 : vector<1x128xi1> to vector<16x128xi1>
    %101 = vector.broadcast %cst_36 : f32 to vector<16x128xf32>
    %102 = arith.select %100, %98, %101 : vector<16x128xi1>, vector<16x128xf32>
    %c1 = arith.constant 1 : index
    %c0_37 = arith.constant 0 : index
    %c0_38 = arith.constant 0 : index
    %c0_39 = arith.constant 0 : index
    %103 = vector.load %arg8[%c1, %c0_37, %c0_38, %c0_39] : memref<4x3x16x16xf32, #tpu.memory_space<vmem>>, vector<1x3x16x16xf32>
    %104 = vector.shape_cast %103 : vector<1x3x16x16xf32> to vector<3x16x16xf32>
    %c1_40 = arith.constant 1 : index
    %c0_41 = arith.constant 0 : index
    %c0_42 = arith.constant 0 : index
    %105 = vector.load %arg9[%c1_40, %c0_41, %c0_42] : memref<4x16x1xf32, #tpu.memory_space<vmem>>, vector<1x16x1xf32>
    %106 = vector.shape_cast %105 : vector<1x16x1xf32> to vector<16x1xf32>
    %c1_i32_43 = arith.constant 1 : i32
    %107 = tpu.dynamic_rotate %102 by %c1_i32_43 dim 1 : vector<16x128xf32>, i32 -> vector<16x128xf32>
    %c127_i32_44 = arith.constant 127 : i32
    %108 = tpu.dynamic_rotate %102 by %c127_i32_44 dim 1 : vector<16x128xf32>, i32 -> vector<16x128xf32>
    %109 = vector.extract_strided_slice %104 {offsets = [0, 0, 0], sizes = [1, 16, 16], strides = [1, 1, 1]} : vector<3x16x16xf32> to vector<1x16x16xf32>
    %110 = vector.shape_cast %109 : vector<1x16x16xf32> to vector<16x16xf32>
    %cst_45 = arith.constant dense<0.000000e+00> : vector<16x128xf32>
    %111 = tpu.matmul %110, %107, %cst_45 {dimension_numbers = #tpu.dot_dimension_numbers<[1], [0], [0], [1], [0, 0, 1, 1], [], []>} : vector<16x16xf32>, vector<16x128xf32>, vector<16x128xf32> -> vector<16x128xf32>
    %112 = vector.extract_strided_slice %104 {offsets = [1, 0, 0], sizes = [1, 16, 16], strides = [1, 1, 1]} : vector<3x16x16xf32> to vector<1x16x16xf32>
    %113 = vector.shape_cast %112 : vector<1x16x16xf32> to vector<16x16xf32>
    %cst_46 = arith.constant dense<0.000000e+00> : vector<16x128xf32>
    %114 = tpu.matmul %113, %102, %cst_46 {dimension_numbers = #tpu.dot_dimension_numbers<[1], [0], [0], [1], [0, 0, 1, 1], [], []>} : vector<16x16xf32>, vector<16x128xf32>, vector<16x128xf32> -> vector<16x128xf32>
    %115 = arith.addf %111, %114 : vector<16x128xf32>
    %116 = vector.extract_strided_slice %104 {offsets = [2, 0, 0], sizes = [1, 16, 16], strides = [1, 1, 1]} : vector<3x16x16xf32> to vector<1x16x16xf32>
    %117 = vector.shape_cast %116 : vector<1x16x16xf32> to vector<16x16xf32>
    %cst_47 = arith.constant dense<0.000000e+00> : vector<16x128xf32>
    %118 = tpu.matmul %117, %108, %cst_47 {dimension_numbers = #tpu.dot_dimension_numbers<[1], [0], [0], [1], [0, 0, 1, 1], [], []>} : vector<16x16xf32>, vector<16x128xf32>, vector<16x128xf32> -> vector<16x128xf32>
    %119 = arith.addf %115, %118 : vector<16x128xf32>
    %120 = vector.broadcast %106 : vector<16x1xf32> to vector<16x128xf32>
    %121 = arith.addf %119, %120 : vector<16x128xf32>
    %cst_48 = arith.constant 0.000000e+00 : f32
    %122 = vector.broadcast %cst_48 : f32 to vector<16x128xf32>
    %123 = arith.maximumf %121, %122 : vector<16x128xf32>
    %cst_49 = arith.constant 0.000000e+00 : f32
    %124 = vector.shape_cast %50 : vector<1x128xi1> to vector<1x128xi1>
    %125 = vector.broadcast %124 : vector<1x128xi1> to vector<16x128xi1>
    %126 = vector.broadcast %cst_49 : f32 to vector<16x128xf32>
    %127 = arith.select %125, %123, %126 : vector<16x128xi1>, vector<16x128xf32>
    %128 = arith.addf %127, %77 : vector<16x128xf32>
    %c2 = arith.constant 2 : index
    %c0_50 = arith.constant 0 : index
    %c0_51 = arith.constant 0 : index
    %c0_52 = arith.constant 0 : index
    %129 = vector.load %arg8[%c2, %c0_50, %c0_51, %c0_52] : memref<4x3x16x16xf32, #tpu.memory_space<vmem>>, vector<1x3x16x16xf32>
    %130 = vector.shape_cast %129 : vector<1x3x16x16xf32> to vector<3x16x16xf32>
    %c2_53 = arith.constant 2 : index
    %c0_54 = arith.constant 0 : index
    %c0_55 = arith.constant 0 : index
    %131 = vector.load %arg9[%c2_53, %c0_54, %c0_55] : memref<4x16x1xf32, #tpu.memory_space<vmem>>, vector<1x16x1xf32>
    %132 = vector.shape_cast %131 : vector<1x16x1xf32> to vector<16x1xf32>
    %c1_i32_56 = arith.constant 1 : i32
    %133 = tpu.dynamic_rotate %128 by %c1_i32_56 dim 1 : vector<16x128xf32>, i32 -> vector<16x128xf32>
    %c127_i32_57 = arith.constant 127 : i32
    %134 = tpu.dynamic_rotate %128 by %c127_i32_57 dim 1 : vector<16x128xf32>, i32 -> vector<16x128xf32>
    %135 = vector.extract_strided_slice %130 {offsets = [0, 0, 0], sizes = [1, 16, 16], strides = [1, 1, 1]} : vector<3x16x16xf32> to vector<1x16x16xf32>
    %136 = vector.shape_cast %135 : vector<1x16x16xf32> to vector<16x16xf32>
    %cst_58 = arith.constant dense<0.000000e+00> : vector<16x128xf32>
    %137 = tpu.matmul %136, %133, %cst_58 {dimension_numbers = #tpu.dot_dimension_numbers<[1], [0], [0], [1], [0, 0, 1, 1], [], []>} : vector<16x16xf32>, vector<16x128xf32>, vector<16x128xf32> -> vector<16x128xf32>
    %138 = vector.extract_strided_slice %130 {offsets = [1, 0, 0], sizes = [1, 16, 16], strides = [1, 1, 1]} : vector<3x16x16xf32> to vector<1x16x16xf32>
    %139 = vector.shape_cast %138 : vector<1x16x16xf32> to vector<16x16xf32>
    %cst_59 = arith.constant dense<0.000000e+00> : vector<16x128xf32>
    %140 = tpu.matmul %139, %128, %cst_59 {dimension_numbers = #tpu.dot_dimension_numbers<[1], [0], [0], [1], [0, 0, 1, 1], [], []>} : vector<16x16xf32>, vector<16x128xf32>, vector<16x128xf32> -> vector<16x128xf32>
    %141 = arith.addf %137, %140 : vector<16x128xf32>
    %142 = vector.extract_strided_slice %130 {offsets = [2, 0, 0], sizes = [1, 16, 16], strides = [1, 1, 1]} : vector<3x16x16xf32> to vector<1x16x16xf32>
    %143 = vector.shape_cast %142 : vector<1x16x16xf32> to vector<16x16xf32>
    %cst_60 = arith.constant dense<0.000000e+00> : vector<16x128xf32>
    %144 = tpu.matmul %143, %134, %cst_60 {dimension_numbers = #tpu.dot_dimension_numbers<[1], [0], [0], [1], [0, 0, 1, 1], [], []>} : vector<16x16xf32>, vector<16x128xf32>, vector<16x128xf32> -> vector<16x128xf32>
    %145 = arith.addf %141, %144 : vector<16x128xf32>
    %146 = vector.broadcast %132 : vector<16x1xf32> to vector<16x128xf32>
    %147 = arith.addf %145, %146 : vector<16x128xf32>
    %cst_61 = arith.constant 0.000000e+00 : f32
    %148 = vector.broadcast %cst_61 : f32 to vector<16x128xf32>
    %149 = arith.maximumf %147, %148 : vector<16x128xf32>
    %cst_62 = arith.constant 0.000000e+00 : f32
    %150 = vector.shape_cast %50 : vector<1x128xi1> to vector<1x128xi1>
    %151 = vector.broadcast %150 : vector<1x128xi1> to vector<16x128xi1>
    %152 = vector.broadcast %cst_62 : f32 to vector<16x128xf32>
    %153 = arith.select %151, %149, %152 : vector<16x128xi1>, vector<16x128xf32>
    %c3 = arith.constant 3 : index
    %c0_63 = arith.constant 0 : index
    %c0_64 = arith.constant 0 : index
    %c0_65 = arith.constant 0 : index
    %154 = vector.load %arg8[%c3, %c0_63, %c0_64, %c0_65] : memref<4x3x16x16xf32, #tpu.memory_space<vmem>>, vector<1x3x16x16xf32>
    %155 = vector.shape_cast %154 : vector<1x3x16x16xf32> to vector<3x16x16xf32>
    %c3_66 = arith.constant 3 : index
    %c0_67 = arith.constant 0 : index
    %c0_68 = arith.constant 0 : index
    %156 = vector.load %arg9[%c3_66, %c0_67, %c0_68] : memref<4x16x1xf32, #tpu.memory_space<vmem>>, vector<1x16x1xf32>
    %157 = vector.shape_cast %156 : vector<1x16x1xf32> to vector<16x1xf32>
    %c1_i32_69 = arith.constant 1 : i32
    %158 = tpu.dynamic_rotate %153 by %c1_i32_69 dim 1 : vector<16x128xf32>, i32 -> vector<16x128xf32>
    %c127_i32_70 = arith.constant 127 : i32
    %159 = tpu.dynamic_rotate %153 by %c127_i32_70 dim 1 : vector<16x128xf32>, i32 -> vector<16x128xf32>
    %160 = vector.extract_strided_slice %155 {offsets = [0, 0, 0], sizes = [1, 16, 16], strides = [1, 1, 1]} : vector<3x16x16xf32> to vector<1x16x16xf32>
    %161 = vector.shape_cast %160 : vector<1x16x16xf32> to vector<16x16xf32>
    %cst_71 = arith.constant dense<0.000000e+00> : vector<16x128xf32>
    %162 = tpu.matmul %161, %158, %cst_71 {dimension_numbers = #tpu.dot_dimension_numbers<[1], [0], [0], [1], [0, 0, 1, 1], [], []>} : vector<16x16xf32>, vector<16x128xf32>, vector<16x128xf32> -> vector<16x128xf32>
    %163 = vector.extract_strided_slice %155 {offsets = [1, 0, 0], sizes = [1, 16, 16], strides = [1, 1, 1]} : vector<3x16x16xf32> to vector<1x16x16xf32>
    %164 = vector.shape_cast %163 : vector<1x16x16xf32> to vector<16x16xf32>
    %cst_72 = arith.constant dense<0.000000e+00> : vector<16x128xf32>
    %165 = tpu.matmul %164, %153, %cst_72 {dimension_numbers = #tpu.dot_dimension_numbers<[1], [0], [0], [1], [0, 0, 1, 1], [], []>} : vector<16x16xf32>, vector<16x128xf32>, vector<16x128xf32> -> vector<16x128xf32>
    %166 = arith.addf %162, %165 : vector<16x128xf32>
    %167 = vector.extract_strided_slice %155 {offsets = [2, 0, 0], sizes = [1, 16, 16], strides = [1, 1, 1]} : vector<3x16x16xf32> to vector<1x16x16xf32>
    %168 = vector.shape_cast %167 : vector<1x16x16xf32> to vector<16x16xf32>
    %cst_73 = arith.constant dense<0.000000e+00> : vector<16x128xf32>
    %169 = tpu.matmul %168, %159, %cst_73 {dimension_numbers = #tpu.dot_dimension_numbers<[1], [0], [0], [1], [0, 0, 1, 1], [], []>} : vector<16x16xf32>, vector<16x128xf32>, vector<16x128xf32> -> vector<16x128xf32>
    %170 = arith.addf %166, %169 : vector<16x128xf32>
    %171 = vector.broadcast %157 : vector<16x1xf32> to vector<16x128xf32>
    %172 = arith.addf %170, %171 : vector<16x128xf32>
    %cst_74 = arith.constant 0.000000e+00 : f32
    %173 = vector.broadcast %cst_74 : f32 to vector<16x128xf32>
    %174 = arith.maximumf %172, %173 : vector<16x128xf32>
    %cst_75 = arith.constant 0.000000e+00 : f32
    %175 = vector.shape_cast %50 : vector<1x128xi1> to vector<1x128xi1>
    %176 = vector.broadcast %175 : vector<1x128xi1> to vector<16x128xi1>
    %177 = vector.broadcast %cst_75 : f32 to vector<16x128xf32>
    %178 = arith.select %176, %174, %177 : vector<16x128xi1>, vector<16x128xf32>
    %179 = arith.addf %178, %128 : vector<16x128xf32>
    %c0_76 = arith.constant 0 : index
    %c0_77 = arith.constant 0 : index
    %c0_78 = arith.constant 0 : index
    %180 = vector.load %arg10[%c0_76, %c0_77, %c0_78] : memref<3x16x16xf32, #tpu.memory_space<vmem>>, vector<3x16x16xf32>
    %c0_79 = arith.constant 0 : index
    %c0_80 = arith.constant 0 : index
    %181 = vector.load %arg11[%c0_79, %c0_80] : memref<16x1xf32, #tpu.memory_space<vmem>>, vector<16x1xf32>
    %c1_i32_81 = arith.constant 1 : i32
    %182 = tpu.dynamic_rotate %179 by %c1_i32_81 dim 1 : vector<16x128xf32>, i32 -> vector<16x128xf32>
    %c127_i32_82 = arith.constant 127 : i32
    %183 = tpu.dynamic_rotate %179 by %c127_i32_82 dim 1 : vector<16x128xf32>, i32 -> vector<16x128xf32>
    %184 = vector.extract_strided_slice %180 {offsets = [0, 0, 0], sizes = [1, 16, 16], strides = [1, 1, 1]} : vector<3x16x16xf32> to vector<1x16x16xf32>
    %185 = vector.shape_cast %184 : vector<1x16x16xf32> to vector<16x16xf32>
    %cst_83 = arith.constant dense<0.000000e+00> : vector<16x128xf32>
    %186 = tpu.matmul %185, %182, %cst_83 {dimension_numbers = #tpu.dot_dimension_numbers<[1], [0], [0], [1], [0, 0, 1, 1], [], []>} : vector<16x16xf32>, vector<16x128xf32>, vector<16x128xf32> -> vector<16x128xf32>
    %187 = vector.extract_strided_slice %180 {offsets = [1, 0, 0], sizes = [1, 16, 16], strides = [1, 1, 1]} : vector<3x16x16xf32> to vector<1x16x16xf32>
    %188 = vector.shape_cast %187 : vector<1x16x16xf32> to vector<16x16xf32>
    %cst_84 = arith.constant dense<0.000000e+00> : vector<16x128xf32>
    %189 = tpu.matmul %188, %179, %cst_84 {dimension_numbers = #tpu.dot_dimension_numbers<[1], [0], [0], [1], [0, 0, 1, 1], [], []>} : vector<16x16xf32>, vector<16x128xf32>, vector<16x128xf32> -> vector<16x128xf32>
    %190 = arith.addf %186, %189 : vector<16x128xf32>
    %191 = vector.extract_strided_slice %180 {offsets = [2, 0, 0], sizes = [1, 16, 16], strides = [1, 1, 1]} : vector<3x16x16xf32> to vector<1x16x16xf32>
    %192 = vector.shape_cast %191 : vector<1x16x16xf32> to vector<16x16xf32>
    %cst_85 = arith.constant dense<0.000000e+00> : vector<16x128xf32>
    %193 = tpu.matmul %192, %183, %cst_85 {dimension_numbers = #tpu.dot_dimension_numbers<[1], [0], [0], [1], [0, 0, 1, 1], [], []>} : vector<16x16xf32>, vector<16x128xf32>, vector<16x128xf32> -> vector<16x128xf32>
    %194 = arith.addf %190, %193 : vector<16x128xf32>
    %195 = vector.broadcast %181 : vector<16x1xf32> to vector<16x128xf32>
    %196 = arith.addf %194, %195 : vector<16x128xf32>
    %cst_86 = arith.constant 0.000000e+00 : f32
    %197 = vector.broadcast %cst_86 : f32 to vector<16x128xf32>
    %198 = arith.maximumf %196, %197 : vector<16x128xf32>
    %cst_87 = arith.constant 0.000000e+00 : f32
    %199 = vector.shape_cast %50 : vector<1x128xi1> to vector<1x128xi1>
    %200 = vector.broadcast %199 : vector<1x128xi1> to vector<16x128xi1>
    %201 = vector.broadcast %cst_87 : f32 to vector<16x128xf32>
    %202 = arith.select %200, %198, %201 : vector<16x128xi1>, vector<16x128xf32>
    %c0_88 = arith.constant 0 : index
    %c0_89 = arith.constant 0 : index
    %c0_90 = arith.constant 0 : index
    %203 = vector.load %arg12[%c0_88, %c0_89, %c0_90] : memref<1x16x128xf32, #tpu.memory_space<vmem>>, vector<1x16x128xf32>
    %204 = vector.shape_cast %203 : vector<1x16x128xf32> to vector<16x128xf32>
    %205 = vector.shape_cast %202 : vector<16x128xf32> to vector<1x16x128xf32>
    tpu.vector_store %arg12[%c0_88, %c0_89, %c0_90], %205 {strides = array<i32>} : memref<1x16x128xf32, #tpu.memory_space<vmem>>, vector<1x16x128xf32>,
    return
  }
  func.func @transform_0(%arg0: i32) -> (i32, i32, i32) {
    %c0_i32 = arith.constant 0 : i32
    %c0_i32_0 = arith.constant 0 : i32
    %c0_i32_1 = arith.constant 0 : i32
    return %arg0, %c0_i32, %c0_i32_0 : i32, i32, i32
  }
  func.func @transform_1(%arg0: i32) -> (i32, i32) {
    %c0_i32 = arith.constant 0 : i32
    %c0_i32_0 = arith.constant 0 : i32
    %c0_i32_1 = arith.constant 0 : i32
    return %c0_i32, %c0_i32_0 : i32, i32
  }
  func.func @transform_2(%arg0: i32) -> (i32, i32) {
    %c0_i32 = arith.constant 0 : i32
    %c0_i32_0 = arith.constant 0 : i32
    %c0_i32_1 = arith.constant 0 : i32
    return %c0_i32, %c0_i32_0 : i32, i32
  }
  func.func @transform_3(%arg0: i32) -> (i32, i32) {
    %c0_i32 = arith.constant 0 : i32
    %c0_i32_0 = arith.constant 0 : i32
    %c0_i32_1 = arith.constant 0 : i32
    return %c0_i32, %c0_i32_0 : i32, i32
  }
  func.func @transform_4(%arg0: i32) -> (i32, i32) {
    %c0_i32 = arith.constant 0 : i32
    %c0_i32_0 = arith.constant 0 : i32
    %c0_i32_1 = arith.constant 0 : i32
    return %c0_i32, %c0_i32_0 : i32, i32
  }
  func.func @transform_5(%arg0: i32) -> (i32, i32, i32) {
    %c0_i32 = arith.constant 0 : i32
    %c0_i32_0 = arith.constant 0 : i32
    %c0_i32_1 = arith.constant 0 : i32
    %c0_i32_2 = arith.constant 0 : i32
    return %c0_i32, %c0_i32_0, %c0_i32_1 : i32, i32, i32
  }
  func.func @transform_6(%arg0: i32) -> (i32, i32) {
    %c0_i32 = arith.constant 0 : i32
    %c0_i32_0 = arith.constant 0 : i32
    %c0_i32_1 = arith.constant 0 : i32
    return %c0_i32, %c0_i32_0 : i32, i32
  }
  func.func @transform_7(%arg0: i32) -> (i32, i32, i32, i32) {
    %c0_i32 = arith.constant 0 : i32
    %c0_i32_0 = arith.constant 0 : i32
    %c0_i32_1 = arith.constant 0 : i32
    %c0_i32_2 = arith.constant 0 : i32
    %c0_i32_3 = arith.constant 0 : i32
    return %c0_i32, %c0_i32_0, %c0_i32_1, %c0_i32_2 : i32, i32, i32, i32
  }
  func.func @transform_8(%arg0: i32) -> (i32, i32, i32) {
    %c0_i32 = arith.constant 0 : i32
    %c0_i32_0 = arith.constant 0 : i32
    %c0_i32_1 = arith.constant 0 : i32
    %c0_i32_2 = arith.constant 0 : i32
    return %c0_i32, %c0_i32_0, %c0_i32_1 : i32, i32, i32
  }
  func.func @transform_9(%arg0: i32) -> (i32, i32, i32) {
    %c0_i32 = arith.constant 0 : i32
    %c0_i32_0 = arith.constant 0 : i32
    %c0_i32_1 = arith.constant 0 : i32
    %c0_i32_2 = arith.constant 0 : i32
    return %c0_i32, %c0_i32_0, %c0_i32_1 : i32, i32, i32
  }
  func.func @transform_10(%arg0: i32) -> (i32, i32) {
    %c0_i32 = arith.constant 0 : i32
    %c0_i32_0 = arith.constant 0 : i32
    %c0_i32_1 = arith.constant 0 : i32
    return %c0_i32, %c0_i32_0 : i32, i32
  }
  func.func @transform_11(%arg0: i32) -> (i32, i32, i32) {
    %c0_i32 = arith.constant 0 : i32
    %c0_i32_0 = arith.constant 0 : i32
    %c0_i32_1 = arith.constant 0 : i32
    return %arg0, %c0_i32, %c0_i32_0 : i32, i32, i32
  }
}

</mosaic_0001>

<llo_original>
// kernel: tpu_custom_call.1
$region0: #{tpu_custom_call.1}
  #allocation0 [shape = 'u32[]', space=smem, size = 0x4, offset = 0x4, fixed_abs, tag = 'smem constant byte address 0x4 - core index']
  #allocation1 [shape = 'u32[144,128]{1,0:T(1,128)}', space=vmem, size = 0x12000, scoped, tag = 'internal scratch']
  %s0 = inlined_call_operand.vmem [shape: f32[2,12,2048], index: 0, kind: input, shape index: {}]
  %s1 = inlined_call_operand.vmem [shape: f32[8,12], index: 1, kind: input, shape index: {}]
  %s2 = inlined_call_operand.vmem [shape: f32[8,1], index: 2, kind: input, shape index: {}]
  %s3 = inlined_call_operand.vmem [shape: f32[8,8], index: 3, kind: input, shape index: {}]
  %s4 = inlined_call_operand.vmem [shape: f32[8,1], index: 4, kind: input, shape index: {}]
  %s5 = inlined_call_operand.vmem [shape: f32[3,16,8], index: 5, kind: input, shape index: {}]
  %s6 = inlined_call_operand.vmem [shape: f32[16,1], index: 6, kind: input, shape index: {}]
  %s7 = inlined_call_operand.vmem [shape: f32[4,3,16,16], index: 7, kind: input, shape index: {}]
  %s8 = inlined_call_operand.vmem [shape: f32[4,16,1], index: 8, kind: input, shape index: {}]
  %s9 = inlined_call_operand.vmem [shape: f32[3,16,16], index: 9, kind: input, shape index: {}]
  %s10 = inlined_call_operand.vmem [shape: f32[16,1], index: 10, kind: input, shape index: {}]
  %s11 = inlined_call_operand.hbm [shape: f32[2,16,128], index: 11, kind: output, shape index: {}]
  %s12 = sld [smem:[#allocation0]]
  $region77: #{tpu_custom_call.1} parent=0
    _
  %s14 = ssub.s32 1, %s12
  %s15 = scalar_select 0, %s14, %s12
  $region1: #{tpu_custom_call.1} parent=0
    #allocation2 [shape = 'u8[16384]{0}', space=vmem, size = 0x4000, scoped, tag = 'output window, operand 0']
    #allocation3 [shape = 's32[2]{0}', space=sflag, size = 0x8, scoped, tag = 'scoped memory for tpu_custom_call.1']
    %16 = vsyncpa [#allocation3], 0
    %s17 = scalar_lea.sflag [#allocation3], 1
    %18 = vsyncpa %s17, 0
    loop: start=0, step=1, limit=4
    $region2: #{tpu_custom_call.1} parent=1 // loop_pre_header
      _
    $region3: #{tpu_custom_call.1} parent=1 // loop_header
      %s20 = sphi 0, %s24
      %p21 = scmp.ge.s32.totalorder %s20, 4
      %s30 = sphi 0, %s32
      %s33 = sphi 0, %s30
      %s34 = sphi 0, %s33
      %s50 = sphi 0, %s34
      %s54 = sphi 0, %s54
      %s56 = sphi 0, %s54
      %s57 = sphi 0, %s56
      %s71 = sphi 0, %s57
      %s75 = sphi 0, %s75
      %s77 = sphi 0, %s75
      %s78 = sphi 0, %s77
      %s92 = sphi 0, %s78
      %s96 = sphi 0, %s96
      %s98 = sphi 0, %s96
      %s99 = sphi 0, %s98
      %s113 = sphi 0, %s99
      %s117 = sphi 0, %s117
      %s119 = sphi 0, %s117
      %s120 = sphi 0, %s119
      %s134 = sphi 0, %s120
      %s138 = sphi 0, %s138
      %s140 = sphi 0, %s138
      %s141 = sphi 0, %s140
      %s155 = sphi 0, %s141
      %s159 = sphi 0, %s159
      %s161 = sphi 0, %s159
      %s162 = sphi 0, %s161
      %s176 = sphi 0, %s162
      %s180 = sphi 0, %s180
      %s182 = sphi 0, %s180
      %s183 = sphi 0, %s182
      %s197 = sphi 0, %s183
      %s201 = sphi 0, %s201
      %s203 = sphi 0, %s201
      %s204 = sphi 0, %s203
      %s218 = sphi 0, %s204
      %s222 = sphi 0, %s222
      %s224 = sphi 0, %s222
      %s225 = sphi 0, %s224
      %s239 = sphi 0, %s225
      %s243 = sphi 0, %s243
      %s245 = sphi 0, %s243
      %s246 = sphi 0, %s245
      %s260 = sphi 0, %s246
      %s266 = sphi 0, %s268
      %s269 = sphi 0, %s266
      %s270 = sphi 0, %s269
      %s286 = sphi 0, %s270
    $region4: #{tpu_custom_call.1} parent=1 // loop_header_branch
      %23 = sbr.rel (%p21) target = $region8
    $region5: #{tpu_custom_call.1} parent=1 // loop_body
      %s25 = ssub.s32 %s20, 1
      %s26 = ssub.s32 %s20, 2
      %s27 = sadd.s32 %s20, 1
      %s28 = ssub.s32 %s20, %s27
      %p29 = scmp.eq.s32.totalorder %s28, 0
      %s31 = sadd.s32 %s30, 1
      %s32 = scalar_select %p29, %s30, %s31
      %p35 = pneg %p29
      %p36 = scmp.eq.s32.totalorder %s20, 1
      %p37 = por %p35, %p36
      %p38 = scmp.ne.s32.totalorder %s30, %s33
      %p39 = scmp.eq.s32.totalorder %s20, 0
      %p40 = por %p38, %p39
      %p41 = scmp.ne.s32.totalorder %s30, %s33
      %p42 = scmp.eq.s32.totalorder %s25, 1
      %p43 = por %p41, %p42
      %p44 = scmp.ne.s32.totalorder %s33, %s34
      %p45 = scmp.eq.s32.totalorder %s25, 0
      %p46 = por %p44, %p45
      %p47 = scmp.ne.s32.totalorder %s33, %s34
      %p48 = scmp.eq.s32.totalorder %s26, 1
      %p49 = por %p47, %p48
      %p51 = scmp.ne.s32.totalorder %s34, %s50
      %p52 = scmp.eq.s32.totalorder %s26, 0
      %p53 = por %p51, %p52
      %s55 = sadd.s32 %s54, 1
      %p58 = scmp.eq.s32.totalorder %s20, 1
      %p59 = scmp.ne.s32.totalorder %s54, %s56
      %p60 = scmp.eq.s32.totalorder %s20, 0
      %p61 = por %p59, %p60
      %p62 = scmp.ne.s32.totalorder %s54, %s56
      %p63 = scmp.eq.s32.totalorder %s25, 1
      %p64 = por %p62, %p63
      %p65 = scmp.ne.s32.totalorder %s56, %s57
      %p66 = scmp.eq.s32.totalorder %s25, 0
      %p67 = por %p65, %p66
      %p68 = scmp.ne.s32.totalorder %s56, %s57
      %p69 = scmp.eq.s32.totalorder %s26, 1
      %p70 = por %p68, %p69
      %p72 = scmp.ne.s32.totalorder %s57, %s71
      %p73 = scmp.eq.s32.totalorder %s26, 0
      %p74 = por %p72, %p73
      %s76 = sadd.s32 %s75, 1
      %p79 = scmp.eq.s32.totalorder %s20, 1
      %p80 = scmp.ne.s32.totalorder %s75, %s77
      %p81 = scmp.eq.s32.totalorder %s20, 0
      %p82 = por %p80, %p81
      %p83 = scmp.ne.s32.totalorder %s75, %s77
      %p84 = scmp.eq.s32.totalorder %s25, 1
      %p85 = por %p83, %p84
      %p86 = scmp.ne.s32.totalorder %s77, %s78
      %p87 = scmp.eq.s32.totalorder %s25, 0
      %p88 = por %p86, %p87
      %p89 = scmp.ne.s32.totalorder %s77, %s78
      %p90 = scmp.eq.s32.totalorder %s26, 1
      %p91 = por %p89, %p90
      %p93 = scmp.ne.s32.totalorder %s78, %s92
      %p94 = scmp.eq.s32.totalorder %s26, 0
      %p95 = por %p93, %p94
      %s97 = sadd.s32 %s96, 1
      %p100 = scmp.eq.s32.totalorder %s20, 1
      %p101 = scmp.ne.s32.totalorder %s96, %s98
      %p102 = scmp.eq.s32.totalorder %s20, 0
      %p103 = por %p101, %p102
      %p104 = scmp.ne.s32.totalorder %s96, %s98
      %p105 = scmp.eq.s32.totalorder %s25, 1
      %p106 = por %p104, %p105
      %p107 = scmp.ne.s32.totalorder %s98, %s99
      %p108 = scmp.eq.s32.totalorder %s25, 0
      %p109 = por %p107, %p108
      %p110 = scmp.ne.s32.totalorder %s98, %s99
      %p111 = scmp.eq.s32.totalorder %s26, 1
      %p112 = por %p110, %p111
      %p114 = scmp.ne.s32.totalorder %s99, %s113
      %p115 = scmp.eq.s32.totalorder %s26, 0
      %p116 = por %p114, %p115
      %s118 = sadd.s32 %s117, 1
      %p121 = scmp.eq.s32.totalorder %s20, 1
      %p122 = scmp.ne.s32.totalorder %s117, %s119
      %p123 = scmp.eq.s32.totalorder %s20, 0
      %p124 = por %p122, %p123
      %p125 = scmp.ne.s32.totalorder %s117, %s119
      %p126 = scmp.eq.s32.totalorder %s25, 1
      %p127 = por %p125, %p126
      %p128 = scmp.ne.s32.totalorder %s119, %s120
      %p129 = scmp.eq.s32.totalorder %s25, 0
      %p130 = por %p128, %p129
      %p131 = scmp.ne.s32.totalorder %s119, %s120
      %p132 = scmp.eq.s32.totalorder %s26, 1
      %p133 = por %p131, %p132
      %p135 = scmp.ne.s32.totalorder %s120, %s134
      %p136 = scmp.eq.s32.totalorder %s26, 0
      %p137 = por %p135, %p136
      %s139 = sadd.s32 %s138, 1
      %p142 = scmp.eq.s32.totalorder %s20, 1
      %p143 = scmp.ne.s32.totalorder %s138, %s140
      %p144 = scmp.eq.s32.totalorder %s20, 0
      %p145 = por %p143, %p144
      %p146 = scmp.ne.s32.totalorder %s138, %s140
      %p147 = scmp.eq.s32.totalorder %s25, 1
      %p148 = por %p146, %p147
      %p149 = scmp.ne.s32.totalorder %s140, %s141
      %p150 = scmp.eq.s32.totalorder %s25, 0
      %p151 = por %p149, %p150
      %p152 = scmp.ne.s32.totalorder %s140, %s141
      %p153 = scmp.eq.s32.totalorder %s26, 1
      %p154 = por %p152, %p153
      %p156 = scmp.ne.s32.totalorder %s141, %s155
      %p157 = scmp.eq.s32.totalorder %s26, 0
      %p158 = por %p156, %p157
      %s160 = sadd.s32 %s159, 1
      %p163 = scmp.eq.s32.totalorder %s20, 1
      %p164 = scmp.ne.s32.totalorder %s159, %s161
      %p165 = scmp.eq.s32.totalorder %s20, 0
      %p166 = por %p164, %p165
      %p167 = scmp.ne.s32.totalorder %s159, %s161
      %p168 = scmp.eq.s32.totalorder %s25, 1
      %p169 = por %p167, %p168
      %p170 = scmp.ne.s32.totalorder %s161, %s162
      %p171 = scmp.eq.s32.totalorder %s25, 0
      %p172 = por %p170, %p171
      %p173 = scmp.ne.s32.totalorder %s161, %s162
      %p174 = scmp.eq.s32.totalorder %s26, 1
      %p175 = por %p173, %p174
      %p177 = scmp.ne.s32.totalorder %s162, %s176
      %p178 = scmp.eq.s32.totalorder %s26, 0
      %p179 = por %p177, %p178
      %s181 = sadd.s32 %s180, 1
      %p184 = scmp.eq.s32.totalorder %s20, 1
      %p185 = scmp.ne.s32.totalorder %s180, %s182
      %p186 = scmp.eq.s32.totalorder %s20, 0
      %p187 = por %p185, %p186
      %p188 = scmp.ne.s32.totalorder %s180, %s182
      %p189 = scmp.eq.s32.totalorder %s25, 1
      %p190 = por %p188, %p189
      %p191 = scmp.ne.s32.totalorder %s182, %s183
      %p192 = scmp.eq.s32.totalorder %s25, 0
      %p193 = por %p191, %p192
      %p194 = scmp.ne.s32.totalorder %s182, %s183
      %p195 = scmp.eq.s32.totalorder %s26, 1
      %p196 = por %p194, %p195
      %p198 = scmp.ne.s32.totalorder %s183, %s197
      %p199 = scmp.eq.s32.totalorder %s26, 0
      %p200 = por %p198, %p199
      %s202 = sadd.s32 %s201, 1
      %p205 = scmp.eq.s32.totalorder %s20, 1
      %p206 = scmp.ne.s32.totalorder %s201, %s203
      %p207 = scmp.eq.s32.totalorder %s20, 0
      %p208 = por %p206, %p207
      %p209 = scmp.ne.s32.totalorder %s201, %s203
      %p210 = scmp.eq.s32.totalorder %s25, 1
      %p211 = por %p209, %p210
      %p212 = scmp.ne.s32.totalorder %s203, %s204
      %p213 = scmp.eq.s32.totalorder %s25, 0
      %p214 = por %p212, %p213
      %p215 = scmp.ne.s32.totalorder %s203, %s204
      %p216 = scmp.eq.s32.totalorder %s26, 1
      %p217 = por %p215, %p216
      %p219 = scmp.ne.s32.totalorder %s204, %s218
      %p220 = scmp.eq.s32.totalorder %s26, 0
      %p221 = por %p219, %p220
      %s223 = sadd.s32 %s222, 1
      %p226 = scmp.eq.s32.totalorder %s20, 1
      %p227 = scmp.ne.s32.totalorder %s222, %s224
      %p228 = scmp.eq.s32.totalorder %s20, 0
      %p229 = por %p227, %p228
      %p230 = scmp.ne.s32.totalorder %s222, %s224
      %p231 = scmp.eq.s32.totalorder %s25, 1
      %p232 = por %p230, %p231
      %p233 = scmp.ne.s32.totalorder %s224, %s225
      %p234 = scmp.eq.s32.totalorder %s25, 0
      %p235 = por %p233, %p234
      %p236 = scmp.ne.s32.totalorder %s224, %s225
      %p237 = scmp.eq.s32.totalorder %s26, 1
      %p238 = por %p236, %p237
      %p240 = scmp.ne.s32.totalorder %s225, %s239
      %p241 = scmp.eq.s32.totalorder %s26, 0
      %p242 = por %p240, %p241
      %s244 = sadd.s32 %s243, 1
      %p247 = scmp.eq.s32.totalorder %s20, 1
      %p248 = scmp.ne.s32.totalorder %s243, %s245
      %p249 = scmp.eq.s32.totalorder %s20, 0
      %p250 = por %p248, %p249
      %p251 = scmp.ne.s32.totalorder %s243, %s245
      %p252 = scmp.eq.s32.totalorder %s25, 1
      %p253 = por %p251, %p252
      %p254 = scmp.ne.s32.totalorder %s245, %s246
      %p255 = scmp.eq.s32.totalorder %s25, 0
      %p256 = por %p254, %p255
      %p257 = scmp.ne.s32.totalorder %s245, %s246
      %p258 = scmp.eq.s32.totalorder %s26, 1
      %p259 = por %p257, %p258
      %p261 = scmp.ne.s32.totalorder %s246, %s260
      %p262 = scmp.eq.s32.totalorder %s26, 0
      %p263 = por %p261, %p262
      %s264 = ssub.s32 %s20, %s27
      %p265 = scmp.eq.s32.totalorder %s264, 0
      %s267 = sadd.s32 %s266, 1
      %s268 = scalar_select %p265, %s266, %s267
      %p271 = pneg %p265
      %p272 = scmp.eq.s32.totalorder %s20, 1
      %p273 = por %p271, %p272
      %p274 = scmp.ne.s32.totalorder %s266, %s269
      %p275 = scmp.eq.s32.totalorder %s20, 0
      %p276 = por %p274, %p275
      %p277 = scmp.ne.s32.totalorder %s266, %s269
      %p278 = scmp.eq.s32.totalorder %s25, 1
      %p279 = por %p277, %p278
      %p280 = scmp.ne.s32.totalorder %s269, %s270
      %p281 = scmp.eq.s32.totalorder %s25, 0
      %p282 = por %p280, %p281
      %p283 = scmp.ne.s32.totalorder %s269, %s270
      %p284 = scmp.eq.s32.totalorder %s26, 1
      %p285 = por %p283, %p284
      %p287 = scmp.ne.s32.totalorder %s270, %s286
      %p288 = scmp.eq.s32.totalorder %s26, 0
      %p289 = por %p287, %p288
      %p290 = scmp.le.s32.totalorder 1, %s20
      %p291 = scmp.lt.s32.totalorder %s20, 3
      %p292 = pnand %p290, %p291
      %p293 = pneg %p292
      // Predicated region
      $region9: #{tpu_custom_call.1} parent=5 // pred_check
        _
      $region10: #{tpu_custom_call.1} parent=5 // pred_check_branch
        %295 = sbr.rel (%p292) target = $region12
      $region11: #{tpu_custom_call.1} parent=5 // pred_region
        %s296 = ssub.s32 %s20, 1
        // Predicated region
        $region13: #{tpu_custom_call.1} parent=11 // pred_check
          %p297 = pneg %p67
        $region14: #{tpu_custom_call.1} parent=11 // pred_check_branch
          %299 = sbr.rel (%p297) target = $region16
        $region15: #{tpu_custom_call.1} parent=11 // pred_region
          _
        $region16: #{tpu_custom_call.1} parent=11 // pred_fallthru
          _
        // Predicated region
        $region17: #{tpu_custom_call.1} parent=11 // pred_check
          %p300 = pneg %p88
        $region18: #{tpu_custom_call.1} parent=11 // pred_check_branch
          %302 = sbr.rel (%p300) target = $region20
        $region19: #{tpu_custom_call.1} parent=11 // pred_region
          _
        $region20: #{tpu_custom_call.1} parent=11 // pred_fallthru
          _
        // Predicated region
        $region21: #{tpu_custom_call.1} parent=11 // pred_check
          %p303 = pneg %p109
        $region22: #{tpu_custom_call.1} parent=11 // pred_check_branch
          %305 = sbr.rel (%p303) target = $region24
        $region23: #{tpu_custom_call.1} parent=11 // pred_region
          _
        $region24: #{tpu_custom_call.1} parent=11 // pred_fallthru
          _
        // Predicated region
        $region25: #{tpu_custom_call.1} parent=11 // pred_check
          %p306 = pneg %p130
        $region26: #{tpu_custom_call.1} parent=11 // pred_check_branch
          %308 = sbr.rel (%p306) target = $region28
        $region27: #{tpu_custom_call.1} parent=11 // pred_region
          _
        $region28: #{tpu_custom_call.1} parent=11 // pred_fallthru
          _
        // Predicated region
        $region29: #{tpu_custom_call.1} parent=11 // pred_check
          %p309 = pneg %p151
        $region30: #{tpu_custom_call.1} parent=11 // pred_check_branch
          %311 = sbr.rel (%p309) target = $region32
        $region31: #{tpu_custom_call.1} parent=11 // pred_region
          _
        $region32: #{tpu_custom_call.1} parent=11 // pred_fallthru
          _
        // Predicated region
        $region33: #{tpu_custom_call.1} parent=11 // pred_check
          %p312 = pneg %p172
        $region34: #{tpu_custom_call.1} parent=11 // pred_check_branch
          %314 = sbr.rel (%p312) target = $region36
        $region35: #{tpu_custom_call.1} parent=11 // pred_region
          _
        $region36: #{tpu_custom_call.1} parent=11 // pred_fallthru
          _
        // Predicated region
        $region37: #{tpu_custom_call.1} parent=11 // pred_check
          %p315 = pneg %p193
        $region38: #{tpu_custom_call.1} parent=11 // pred_check_branch
          %317 = sbr.rel (%p315) target = $region40
        $region39: #{tpu_custom_call.1} parent=11 // pred_region
          _
        $region40: #{tpu_custom_call.1} parent=11 // pred_fallthru
          _
        // Predicated region
        $region41: #{tpu_custom_call.1} parent=11 // pred_check
          %p318 = pneg %p214
        $region42: #{tpu_custom_call.1} parent=11 // pred_check_branch
          %320 = sbr.rel (%p318) target = $region44
        $region43: #{tpu_custom_call.1} parent=11 // pred_region
          _
        $region44: #{tpu_custom_call.1} parent=11 // pred_fallthru
          _
        // Predicated region
        $region45: #{tpu_custom_call.1} parent=11 // pred_check
          %p321 = pneg %p235
        $region46: #{tpu_custom_call.1} parent=11 // pred_check_branch
          %323 = sbr.rel (%p321) target = $region48
        $region47: #{tpu_custom_call.1} parent=11 // pred_region
          _
        $region48: #{tpu_custom_call.1} parent=11 // pred_fallthru
          _
        // Predicated region
        $region49: #{tpu_custom_call.1} parent=11 // pred_check
          %p324 = pneg %p256
        $region50: #{tpu_custom_call.1} parent=11 // pred_check_branch
          %326 = sbr.rel (%p324) target = $region52
        $region51: #{tpu_custom_call.1} parent=11 // pred_region
          _
        $region52: #{tpu_custom_call.1} parent=11 // pred_fallthru
          _
      $region12: #{tpu_custom_call.1} parent=5 // pred_fallthru
        _
      %p327 = scmp.lt.s32.totalorder %s20, 2
      // Predicated region
      $region53: #{tpu_custom_call.1} parent=5 // pred_check
        %p328 = pneg %p327
      $region54: #{tpu_custom_call.1} parent=5 // pred_check_branch
        %330 = sbr.rel (%p328) target = $region56
      $region55: #{tpu_custom_call.1} parent=5 // pred_region
        // Predicated region
        $region57: #{tpu_custom_call.1} parent=55 // pred_check
          %p331 = pneg %p40
        $region58: #{tpu_custom_call.1} parent=55 // pred_check_branch
          %333 = sbr.rel (%p331) target = $region60
        $region59: #{tpu_custom_call.1} parent=55 // pred_region
          %p334 = scmp.lt.s32.totalorder %s20, 1
          %s335 = scalar_select %p334, %s20, 1
          %s336 = smul.addr %s335, 32
          %s337 = smul.addr %s336, 8
          %s338 = scalar_lea.vmem %s0, %s337
        $region60: #{tpu_custom_call.1} parent=55 // pred_fallthru
          _
      $region56: #{tpu_custom_call.1} parent=5 // pred_fallthru
        _
      %p339 = scmp.le.s32.totalorder 1, %s20
      %p340 = scmp.lt.s32.totalorder %s20, 3
      %p341 = pnand %p339, %p340
      %p342 = pneg %p341
      // Predicated region
      $region61: #{tpu_custom_call.1} parent=5 // pred_check
        _
      $region62: #{tpu_custom_call.1} parent=5 // pred_check_branch
        %344 = sbr.rel (%p341) target = $region64
      $region63: #{tpu_custom_call.1} parent=5 // pred_region
        %s345 = ssub.s32 %s20, 1
        %p346 = scmp.lt.s32.totalorder %s25, 1
        %s347 = scalar_select %p346, %s25, 1
        %s348 = smul.addr %s347, 32
        %s349 = smul.addr %s348, 8
        %s350 = scalar_lea.vmem %s0, %s349
        %p351 = pneg %p46
        %p352 = pneg %p43
        %p353 = pneg %p67
        %p354 = pneg %p64
        %p355 = pneg %p88
        %p356 = pneg %p85
        %p357 = pneg %p109
        %p358 = pneg %p106
        %p359 = pneg %p130
        %p360 = pneg %p127
        %p361 = pneg %p151
        %p362 = pneg %p148
        %p363 = pneg %p172
        %p364 = pneg %p169
        %p365 = pneg %p193
        %p366 = pneg %p190
        %p367 = pneg %p214
        %p368 = pneg %p211
        %p369 = pneg %p235
        %p370 = pneg %p232
        %p371 = pneg %p256
        %p372 = pneg %p253
        %p373 = pneg %p282
        %p374 = pneg %p279
        %s375 = sand.u32 %s269, 1
        %s376 = scalar_lea.sflag [#allocation3], %s375
        %s377 = sand.u32 %s269, 1
        %s378 = smul.addr %s377, 16
        %s379 = scalar_lea.vmem [#allocation2], %s378
        %p380 = scmp.lt.s32.totalorder %s25, 1
        %s381 = scalar_select %p380, %s25, 1
        %s382 = smul.addr %s381, 32
        %s383 = smul.addr %s382, 8
        %s384 = scalar_lea.vmem %s0, %s383
        %v385 = vld [vmem:[%s384] sm:$0xff]
        %v386 = vld [vmem:[%s384 + $0x8] sm:$0xff]
        %v387 = vld [vmem:[%s384 + $0x10] sm:$0xff]
        %v388 = vld [vmem:[%s384 + $0x18] sm:$0xff]
        %v389 = vld [vmem:[%s384 + $0x20] sm:$0xff]
        %v390 = vld [vmem:[%s384 + $0x28] sm:$0xff]
        %v391 = vld [vmem:[%s384 + $0x30] sm:$0xff]
        %v392 = vld [vmem:[%s384 + $0x38] sm:$0xff]
        %v393 = vld [vmem:[%s384 + $0x40] sm:$0xff]
        %v394 = vld [vmem:[%s384 + $0x48] sm:$0xff]
        %v395 = vld [vmem:[%s384 + $0x50] sm:$0xff]
        %v396 = vld [vmem:[%s384 + $0x58] sm:$0xff]
        %v397 = vld [vmem:[%s384 + $0x60] sm:$0xff]
        %v398 = vld [vmem:[%s384 + $0x68] sm:$0xff]
        %v399 = vld [vmem:[%s384 + $0x70] sm:$0xff]
        %v400 = vld [vmem:[%s384 + $0x78] sm:$0xff]
        %v401 = vld [vmem:[%s384 + $0x80] sm:$0xf]
        %v402 = vld [vmem:[%s384 + $0x88] sm:$0xf]
        %v403 = vld [vmem:[%s384 + $0x90] sm:$0xf]
        %v404 = vld [vmem:[%s384 + $0x98] sm:$0xf]
        %v405 = vld [vmem:[%s384 + $0xa0] sm:$0xf]
        %v406 = vld [vmem:[%s384 + $0xa8] sm:$0xf]
        %v407 = vld [vmem:[%s384 + $0xb0] sm:$0xf]
        %v408 = vld [vmem:[%s384 + $0xb8] sm:$0xf]
        %v409 = vld [vmem:[%s384 + $0xc0] sm:$0xf]
        %v410 = vld [vmem:[%s384 + $0xc8] sm:$0xf]
        %v411 = vld [vmem:[%s384 + $0xd0] sm:$0xf]
        %v412 = vld [vmem:[%s384 + $0xd8] sm:$0xf]
        %v413 = vld [vmem:[%s384 + $0xe0] sm:$0xf]
        %v414 = vld [vmem:[%s384 + $0xe8] sm:$0xf]
        %v415 = vld [vmem:[%s384 + $0xf0] sm:$0xf]
        %v416 = vld [vmem:[%s384 + $0xf8] sm:$0xf]
        %v417 = vld [vmem:[%s1] sm:$0xff]
        %v418 = vld [vmem:[%s2] sm:$0xff]
        %420 = vset.pattern.permute.xlu0 0
        %421 = vperm.xlu0 %420, %v418
        %v422 = vpop.permute.xlu0 %421
        %vm424 = vcmask 97280
        %v426 = vsel %vm424, %v417, 0
        %vm428 = vcmask 1043456
        %v430 = vsel %vm428, %v401, 0
        %v433 = vsel %vm428, %v402, 0
        %v436 = vsel %vm428, %v403, 0
        %v439 = vsel %vm428, %v404, 0
        %v442 = vsel %vm428, %v405, 0
        %v445 = vsel %vm428, %v406, 0
        %v448 = vsel %vm428, %v407, 0
        %v451 = vsel %vm428, %v408, 0
        %v454 = vsel %vm428, %v409, 0
        %v457 = vsel %vm428, %v410, 0
        %v460 = vsel %vm428, %v411, 0
        %v463 = vsel %vm428, %v412, 0
        %v466 = vsel %vm428, %v413, 0
        %v469 = vsel %vm428, %v414, 0
        %v472 = vsel %vm428, %v415, 0
        %v475 = vsel %vm428, %v416, 0
        %477 = vmatprep.subr.mxu0 0.0
        %478 = vmatpush1.msra.mxu0 0.0
        %479 = vmatprep.subr.mxu0 0.0
        %480 = vmatpush1.msra.mxu0 0.0
        %481 = vmatprep.subr.mxu0 0.0
        %482 = vmatpush1.msra.mxu0 0.0
        %483 = vmatprep.subr.mxu0 0.0
        %484 = vmatpush1.msra.mxu0 0.0
        %485 = vmatprep.subr.mxu0 0.0
        %486 = vmatpush1.msra.mxu0 0.0
        %487 = vmatprep.subr.mxu0 0.0
        %488 = vmatpush1.msra.mxu0 0.0
        %489 = vmatprep.subr.mxu0 0.0
        %490 = vmatpush1.msra.mxu0 0.0
        %491 = vmatprep.subr.mxu0 0.0
        %492 = vmatpush1.msra.mxu0 0.0
        %493 = vmatprep.subr.mxu0 0.0
        %494 = vmatpush1.msra.mxu0 0.0
        %495 = vmatprep.subr.mxu0 0.0
        %496 = vmatpush1.msra.mxu0 0.0
        %497 = vmatprep.subr.mxu0 0.0
        %498 = vmatpush1.msra.mxu0 0.0
        %499 = vmatprep.subr.mxu0 0.0
        %500 = vmatpush1.msra.mxu0 0.0
        %501 = vmatprep.subr.mxu0 0.0
        %502 = vmatpush1.msra.mxu0 0.0
        %503 = vmatprep.subr.mxu0 0.0
        %504 = vmatpush1.msra.mxu0 0.0
        %505 = vmatprep.subr.mxu0 %v433
        %506 = vmatpush1.msra.mxu0 %v430
        %507 = vmatprep.subr.mxu0 %v386
        %508 = vmatpush1.msra.mxu0 %v385
        %509 = vmatprep.subr.mxu0 0.0
        %510 = vmatpush2.msra.mxu0 0.0
        %511 = vmatprep.subr.mxu0 0.0
        %512 = vmatpush2.msra.mxu0 0.0
        %513 = vmatprep.subr.mxu0 0.0
        %514 = vmatpush2.msra.mxu0 0.0
        %515 = vmatprep.subr.mxu0 0.0
        %516 = vmatpush2.msra.mxu0 0.0
        %517 = vmatprep.subr.mxu0 0.0
        %518 = vmatpush2.msra.mxu0 0.0
        %519 = vmatprep.subr.mxu0 0.0
        %520 = vmatpush2.msra.mxu0 0.0
        %521 = vmatprep.subr.mxu0 0.0
        %522 = vmatpush2.msra.mxu0 0.0
        %523 = vmatprep.subr.mxu0 0.0
        %524 = vmatpush2.msra.mxu0 0.0
        %525 = vmatprep.subr.mxu0 0.0
        %526 = vmatpush2.msra.mxu0 0.0
        %527 = vmatprep.subr.mxu0 0.0
        %528 = vmatpush2.msra.mxu0 0.0
        %529 = vmatprep.subr.mxu0 0.0
        %530 = vmatpush2.msra.mxu0 0.0
        %531 = vmatprep.subr.mxu0 0.0
        %532 = vmatpush2.msra.mxu0 0.0
        %533 = vmatprep.subr.mxu0 0.0
        %534 = vmatpush2.msra.mxu0 0.0
        %535 = vmatprep.subr.mxu0 0.0
        %536 = vmatpush2.msra.mxu0 0.0
        %537 = vmatprep.subr.mxu0 0.0
        %538 = vmatpush2.msra.mxu0 0.0
        %539 = vmatprep.subr.mxu0 0.0
        %540 = vmatpush2.msra.mxu0 0.0
        %541 = vmatprep.mubr.f32.mxu0 0.0
        %542 = vmatmul.mubr.f32.gmra.mxu0 %v426
        %v543 = vpop.f32.mrf.mxu0
        %v544 = vadd.f32 %v422, %v543
        %v545 = vpop.f32.mrf.mxu0
        %v546 = vadd.f32 %v422, %v545
        %547 = vdwg.mxu0
        %548 = vmatprep.subr.mxu0 0.0
        %549 = vmatpush1.msra.mxu0 0.0
        %550 = vmatprep.subr.mxu0 0.0
        %551 = vmatpush1.msra.mxu0 0.0
        %552 = vmatprep.subr.mxu0 0.0
        %553 = vmatpush1.msra.mxu0 0.0
        %554 = vmatprep.subr.mxu0 0.0
        %555 = vmatpush1.msra.mxu0 0.0
        %556 = vmatprep.subr.mxu0 0.0
        %557 = vmatpush1.msra.mxu0 0.0
        %558 = vmatprep.subr.mxu0 0.0
        %559 = vmatpush1.msra.mxu0 0.0
        %560 = vmatprep.subr.mxu0 0.0
        %561 = vmatpush1.msra.mxu0 0.0
        %562 = vmatprep.subr.mxu0 0.0
        %563 = vmatpush1.msra.mxu0 0.0
        %564 = vmatprep.subr.mxu0 0.0
        %565 = vmatpush1.msra.mxu0 0.0
        %566 = vmatprep.subr.mxu0 0.0
        %567 = vmatpush1.msra.mxu0 0.0
        %568 = vmatprep.subr.mxu0 0.0
        %569 = vmatpush1.msra.mxu0 0.0
        %570 = vmatprep.subr.mxu0 0.0
        %571 = vmatpush1.msra.mxu0 0.0
        %572 = vmatprep.subr.mxu0 0.0
        %573 = vmatpush1.msra.mxu0 0.0
        %574 = vmatprep.subr.mxu0 0.0
        %575 = vmatpush1.msra.mxu0 0.0
        %576 = vmatprep.subr.mxu0 %v439
        %577 = vmatpush1.msra.mxu0 %v436
        %578 = vmatprep.subr.mxu0 %v388
        %579 = vmatpush1.msra.mxu0 %v387
        %580 = vmatprep.subr.mxu0 0.0
        %581 = vmatpush2.msra.mxu0 0.0
        %582 = vmatprep.subr.mxu0 0.0
        %583 = vmatpush2.msra.mxu0 0.0
        %584 = vmatprep.subr.mxu0 0.0
        %585 = vmatpush2.msra.mxu0 0.0
        %586 = vmatprep.subr.mxu0 0.0
        %587 = vmatpush2.msra.mxu0 0.0
        %588 = vmatprep.subr.mxu0 0.0
        %589 = vmatpush2.msra.mxu0 0.0
        %590 = vmatprep.subr.mxu0 0.0
        %591 = vmatpush2.msra.mxu0 0.0
        %592 = vmatprep.subr.mxu0 0.0
        %593 = vmatpush2.msra.mxu0 0.0
        %594 = vmatprep.subr.mxu0 0.0
        %595 = vmatpush2.msra.mxu0 0.0
        %596 = vmatprep.subr.mxu0 0.0
        %597 = vmatpush2.msra.mxu0 0.0
        %598 = vmatprep.subr.mxu0 0.0
        %599 = vmatpush2.msra.mxu0 0.0
        %600 = vmatprep.subr.mxu0 0.0
        %601 = vmatpush2.msra.mxu0 0.0
        %602 = vmatprep.subr.mxu0 0.0
        %603 = vmatpush2.msra.mxu0 0.0
        %604 = vmatprep.subr.mxu0 0.0
        %605 = vmatpush2.msra.mxu0 0.0
        %606 = vmatprep.subr.mxu0 0.0
        %607 = vmatpush2.msra.mxu0 0.0
        %608 = vmatprep.subr.mxu0 0.0
        %609 = vmatpush2.msra.mxu0 0.0
        %610 = vmatprep.subr.mxu0 0.0
        %611 = vmatpush2.msra.mxu0 0.0
        %612 = vmatprep.mubr.f32.mxu0 0.0
        %613 = vmatmul.mubr.f32.gmra.mxu0 %v426
        %v614 = vpop.f32.mrf.mxu0
        %v615 = vadd.f32 %v422, %v614
        %v616 = vpop.f32.mrf.mxu0
        %v617 = vadd.f32 %v422, %v616
        %618 = vdwg.mxu0
        %619 = vmatprep.subr.mxu0 0.0
        %620 = vmatpush1.msra.mxu0 0.0
        %621 = vmatprep.subr.mxu0 0.0
        %622 = vmatpush1.msra.mxu0 0.0
        %623 = vmatprep.subr.mxu0 0.0
        %624 = vmatpush1.msra.mxu0 0.0
        %625 = vmatprep.subr.mxu0 0.0
        %626 = vmatpush1.msra.mxu0 0.0
        %627 = vmatprep.subr.mxu0 0.0
        %628 = vmatpush1.msra.mxu0 0.0
        %629 = vmatprep.subr.mxu0 0.0
        %630 = vmatpush1.msra.mxu0 0.0
        %631 = vmatprep.subr.mxu0 0.0
        %632 = vmatpush1.msra.mxu0 0.0
        %633 = vmatprep.subr.mxu0 0.0
        %634 = vmatpush1.msra.mxu0 0.0
        %635 = vmatprep.subr.mxu0 0.0
        %636 = vmatpush1.msra.mxu0 0.0
        %637 = vmatprep.subr.mxu0 0.0
        %638 = vmatpush1.msra.mxu0 0.0
        %639 = vmatprep.subr.mxu0 0.0
        %640 = vmatpush1.msra.mxu0 0.0
        %641 = vmatprep.subr.mxu0 0.0
        %642 = vmatpush1.msra.mxu0 0.0
        %643 = vmatprep.subr.mxu0 0.0
        %644 = vmatpush1.msra.mxu0 0.0
        %645 = vmatprep.subr.mxu0 0.0
        %646 = vmatpush1.msra.mxu0 0.0
        %647 = vmatprep.subr.mxu0 %v445
        %648 = vmatpush1.msra.mxu0 %v442
        %649 = vmatprep.subr.mxu0 %v390
        %650 = vmatpush1.msra.mxu0 %v389
        %651 = vmatprep.subr.mxu0 0.0
        %652 = vmatpush2.msra.mxu0 0.0
        %653 = vmatprep.subr.mxu0 0.0
        %654 = vmatpush2.msra.mxu0 0.0
        %655 = vmatprep.subr.mxu0 0.0
        %656 = vmatpush2.msra.mxu0 0.0
        %657 = vmatprep.subr.mxu0 0.0
        %658 = vmatpush2.msra.mxu0 0.0
        %659 = vmatprep.subr.mxu0 0.0
        %660 = vmatpush2.msra.mxu0 0.0
        %661 = vmatprep.subr.mxu0 0.0
        %662 = vmatpush2.msra.mxu0 0.0
        %663 = vmatprep.subr.mxu0 0.0
        %664 = vmatpush2.msra.mxu0 0.0
        %665 = vmatprep.subr.mxu0 0.0
        %666 = vmatpush2.msra.mxu0 0.0
        %667 = vmatprep.subr.mxu0 0.0
        %668 = vmatpush2.msra.mxu0 0.0
        %669 = vmatprep.subr.mxu0 0.0
        %670 = vmatpush2.msra.mxu0 0.0
        %671 = vmatprep.subr.mxu0 0.0
        %672 = vmatpush2.msra.mxu0 0.0
        %673 = vmatprep.subr.mxu0 0.0
        %674 = vmatpush2.msra.mxu0 0.0
        %675 = vmatprep.subr.mxu0 0.0
        %676 = vmatpush2.msra.mxu0 0.0
        %677 = vmatprep.subr.mxu0 0.0
        %678 = vmatpush2.msra.mxu0 0.0
        %679 = vmatprep.subr.mxu0 0.0
        %680 = vmatpush2.msra.mxu0 0.0
        %681 = vmatprep.subr.mxu0 0.0
        %682 = vmatpush2.msra.mxu0 0.0
        %683 = vmatprep.mubr.f32.mxu0 0.0
        %684 = vmatmul.mubr.f32.gmra.mxu0 %v426
        %v685 = vpop.f32.mrf.mxu0
        %v686 = vadd.f32 %v422, %v685
        %v687 = vpop.f32.mrf.mxu0
        %v688 = vadd.f32 %v422, %v687
        %689 = vdwg.mxu0
        %690 = vmatprep.subr.mxu0 0.0
        %691 = vmatpush1.msra.mxu0 0.0
        %692 = vmatprep.subr.mxu0 0.0
        %693 = vmatpush1.msra.mxu0 0.0
        %694 = vmatprep.subr.mxu0 0.0
        %695 = vmatpush1.msra.mxu0 0.0
        %696 = vmatprep.subr.mxu0 0.0
        %697 = vmatpush1.msra.mxu0 0.0
        %698 = vmatprep.subr.mxu0 0.0
        %699 = vmatpush1.msra.mxu0 0.0
        %700 = vmatprep.subr.mxu0 0.0
        %701 = vmatpush1.msra.mxu0 0.0
        %702 = vmatprep.subr.mxu0 0.0
        %703 = vmatpush1.msra.mxu0 0.0
        %704 = vmatprep.subr.mxu0 0.0
        %705 = vmatpush1.msra.mxu0 0.0
        %706 = vmatprep.subr.mxu0 0.0
        %707 = vmatpush1.msra.mxu0 0.0
        %708 = vmatprep.subr.mxu0 0.0
        %709 = vmatpush1.msra.mxu0 0.0
        %710 = vmatprep.subr.mxu0 0.0
        %711 = vmatpush1.msra.mxu0 0.0
        %712 = vmatprep.subr.mxu0 0.0
        %713 = vmatpush1.msra.mxu0 0.0
        %714 = vmatprep.subr.mxu0 0.0
        %715 = vmatpush1.msra.mxu0 0.0
        %716 = vmatprep.subr.mxu0 0.0
        %717 = vmatpush1.msra.mxu0 0.0
        %718 = vmatprep.subr.mxu0 %v451
        %719 = vmatpush1.msra.mxu0 %v448
        %720 = vmatprep.subr.mxu0 %v392
        %721 = vmatpush1.msra.mxu0 %v391
        %722 = vmatprep.subr.mxu0 0.0
        %723 = vmatpush2.msra.mxu0 0.0
        %724 = vmatprep.subr.mxu0 0.0
        %725 = vmatpush2.msra.mxu0 0.0
        %726 = vmatprep.subr.mxu0 0.0
        %727 = vmatpush2.msra.mxu0 0.0
        %728 = vmatprep.subr.mxu0 0.0
        %729 = vmatpush2.msra.mxu0 0.0
        %730 = vmatprep.subr.mxu0 0.0
        %731 = vmatpush2.msra.mxu0 0.0
        %732 = vmatprep.subr.mxu0 0.0
        %733 = vmatpush2.msra.mxu0 0.0
        %734 = vmatprep.subr.mxu0 0.0
        %735 = vmatpush2.msra.mxu0 0.0
        %736 = vmatprep.subr.mxu0 0.0
        %737 = vmatpush2.msra.mxu0 0.0
        %738 = vmatprep.subr.mxu0 0.0
        %739 = vmatpush2.msra.mxu0 0.0
        %740 = vmatprep.subr.mxu0 0.0
        %741 = vmatpush2.msra.mxu0 0.0
        %742 = vmatprep.subr.mxu0 0.0
        %743 = vmatpush2.msra.mxu0 0.0
        %744 = vmatprep.subr.mxu0 0.0
        %745 = vmatpush2.msra.mxu0 0.0
        %746 = vmatprep.subr.mxu0 0.0
        %747 = vmatpush2.msra.mxu0 0.0
        %748 = vmatprep.subr.mxu0 0.0
        %749 = vmatpush2.msra.mxu0 0.0
        %750 = vmatprep.subr.mxu0 0.0
        %751 = vmatpush2.msra.mxu0 0.0
        %752 = vmatprep.subr.mxu0 0.0
        %753 = vmatpush2.msra.mxu0 0.0
        %754 = vmatprep.mubr.f32.mxu0 0.0
        %755 = vmatmul.mubr.f32.gmra.mxu0 %v426
        %v756 = vpop.f32.mrf.mxu0
        %v757 = vadd.f32 %v422, %v756
        %v758 = vpop.f32.mrf.mxu0
        %v759 = vadd.f32 %v422, %v758
        %760 = vdwg.mxu0
        %761 = vmatprep.subr.mxu0 0.0
        %762 = vmatpush1.msra.mxu0 0.0
        %763 = vmatprep.subr.mxu0 0.0
        %764 = vmatpush1.msra.mxu0 0.0
        %765 = vmatprep.subr.mxu0 0.0
        %766 = vmatpush1.msra.mxu0 0.0
        %767 = vmatprep.subr.mxu0 0.0
        %768 = vmatpush1.msra.mxu0 0.0
        %769 = vmatprep.subr.mxu0 0.0
        %770 = vmatpush1.msra.mxu0 0.0
        %771 = vmatprep.subr.mxu0 0.0
        %772 = vmatpush1.msra.mxu0 0.0
        %773 = vmatprep.subr.mxu0 0.0
        %774 = vmatpush1.msra.mxu0 0.0
        %775 = vmatprep.subr.mxu0 0.0
        %776 = vmatpush1.msra.mxu0 0.0
        %777 = vmatprep.subr.mxu0 0.0
        %778 = vmatpush1.msra.mxu0 0.0
        %779 = vmatprep.subr.mxu0 0.0
        %780 = vmatpush1.msra.mxu0 0.0
        %781 = vmatprep.subr.mxu0 0.0
        %782 = vmatpush1.msra.mxu0 0.0
        %783 = vmatprep.subr.mxu0 0.0
        %784 = vmatpush1.msra.mxu0 0.0
        %785 = vmatprep.subr.mxu0 0.0
        %786 = vmatpush1.msra.mxu0 0.0
        %787 = vmatprep.subr.mxu0 0.0
        %788 = vmatpush1.msra.mxu0 0.0
        %789 = vmatprep.subr.mxu0 %v457
        %790 = vmatpush1.msra.mxu0 %v454
        %791 = vmatprep.subr.mxu0 %v394
        %792 = vmatpush1.msra.mxu0 %v393
        %793 = vmatprep.subr.mxu0 0.0
        %794 = vmatpush2.msra.mxu0 0.0
        %795 = vmatprep.subr.mxu0 0.0
        %796 = vmatpush2.msra.mxu0 0.0
        %797 = vmatprep.subr.mxu0 0.0
        %798 = vmatpush2.msra.mxu0 0.0
        %799 = vmatprep.subr.mxu0 0.0
        %800 = vmatpush2.msra.mxu0 0.0
        %801 = vmatprep.subr.mxu0 0.0
        %802 = vmatpush2.msra.mxu0 0.0
        %803 = vmatprep.subr.mxu0 0.0
        %804 = vmatpush2.msra.mxu0 0.0
        %805 = vmatprep.subr.mxu0 0.0
        %806 = vmatpush2.msra.mxu0 0.0
        %807 = vmatprep.subr.mxu0 0.0
        %808 = vmatpush2.msra.mxu0 0.0
        %809 = vmatprep.subr.mxu0 0.0
        %810 = vmatpush2.msra.mxu0 0.0
        %811 = vmatprep.subr.mxu0 0.0
        %812 = vmatpush2.msra.mxu0 0.0
        %813 = vmatprep.subr.mxu0 0.0
        %814 = vmatpush2.msra.mxu0 0.0
        %815 = vmatprep.subr.mxu0 0.0
        %816 = vmatpush2.msra.mxu0 0.0
        %817 = vmatprep.subr.mxu0 0.0
        %818 = vmatpush2.msra.mxu0 0.0
        %819 = vmatprep.subr.mxu0 0.0
        %820 = vmatpush2.msra.mxu0 0.0
        %821 = vmatprep.subr.mxu0 0.0
        %822 = vmatpush2.msra.mxu0 0.0
        %823 = vmatprep.subr.mxu0 0.0
        %824 = vmatpush2.msra.mxu0 0.0
        %825 = vmatprep.mubr.f32.mxu0 0.0
        %826 = vmatmul.mubr.f32.gmra.mxu0 %v426
        %v827 = vpop.f32.mrf.mxu0
        %v828 = vadd.f32 %v422, %v827
        %v829 = vpop.f32.mrf.mxu0
        %v830 = vadd.f32 %v422, %v829
        %831 = vdwg.mxu0
        %832 = vmatprep.subr.mxu0 0.0
        %833 = vmatpush1.msra.mxu0 0.0
        %834 = vmatprep.subr.mxu0 0.0
        %835 = vmatpush1.msra.mxu0 0.0
        %836 = vmatprep.subr.mxu0 0.0
        %837 = vmatpush1.msra.mxu0 0.0
        %838 = vmatprep.subr.mxu0 0.0
        %839 = vmatpush1.msra.mxu0 0.0
        %840 = vmatprep.subr.mxu0 0.0
        %841 = vmatpush1.msra.mxu0 0.0
        %842 = vmatprep.subr.mxu0 0.0
        %843 = vmatpush1.msra.mxu0 0.0
        %844 = vmatprep.subr.mxu0 0.0
        %845 = vmatpush1.msra.mxu0 0.0
        %846 = vmatprep.subr.mxu0 0.0
        %847 = vmatpush1.msra.mxu0 0.0
        %848 = vmatprep.subr.mxu0 0.0
        %849 = vmatpush1.msra.mxu0 0.0
        %850 = vmatprep.subr.mxu0 0.0
        %851 = vmatpush1.msra.mxu0 0.0
        %852 = vmatprep.subr.mxu0 0.0
        %853 = vmatpush1.msra.mxu0 0.0
        %854 = vmatprep.subr.mxu0 0.0
        %855 = vmatpush1.msra.mxu0 0.0
        %856 = vmatprep.subr.mxu0 0.0
        %857 = vmatpush1.msra.mxu0 0.0
        %858 = vmatprep.subr.mxu0 0.0
        %859 = vmatpush1.msra.mxu0 0.0
        %860 = vmatprep.subr.mxu0 %v463
        %861 = vmatpush1.msra.mxu0 %v460
        %862 = vmatprep.subr.mxu0 %v396
        %863 = vmatpush1.msra.mxu0 %v395
        %864 = vmatprep.subr.mxu0 0.0
        %865 = vmatpush2.msra.mxu0 0.0
        %866 = vmatprep.subr.mxu0 0.0
        %867 = vmatpush2.msra.mxu0 0.0
        %868 = vmatprep.subr.mxu0 0.0
        %869 = vmatpush2.msra.mxu0 0.0
        %870 = vmatprep.subr.mxu0 0.0
        %871 = vmatpush2.msra.mxu0 0.0
        %872 = vmatprep.subr.mxu0 0.0
        %873 = vmatpush2.msra.mxu0 0.0
        %874 = vmatprep.subr.mxu0 0.0
        %875 = vmatpush2.msra.mxu0 0.0
        %876 = vmatprep.subr.mxu0 0.0
        %877 = vmatpush2.msra.mxu0 0.0
        %878 = vmatprep.subr.mxu0 0.0
        %879 = vmatpush2.msra.mxu0 0.0
        %880 = vmatprep.subr.mxu0 0.0
        %881 = vmatpush2.msra.mxu0 0.0
        %882 = vmatprep.subr.mxu0 0.0
        %883 = vmatpush2.msra.mxu0 0.0
        %884 = vmatprep.subr.mxu0 0.0
        %885 = vmatpush2.msra.mxu0 0.0
        %886 = vmatprep.subr.mxu0 0.0
        %887 = vmatpush2.msra.mxu0 0.0
        %888 = vmatprep.subr.mxu0 0.0
        %889 = vmatpush2.msra.mxu0 0.0
        %890 = vmatprep.subr.mxu0 0.0
        %891 = vmatpush2.msra.mxu0 0.0
        %892 = vmatprep.subr.mxu0 0.0
        %893 = vmatpush2.msra.mxu0 0.0
        %894 = vmatprep.subr.mxu0 0.0
        %895 = vmatpush2.msra.mxu0 0.0
        %896 = vmatprep.mubr.f32.mxu0 0.0
        %897 = vmatmul.mubr.f32.gmra.mxu0 %v426
        %v898 = vpop.f32.mrf.mxu0
        %v899 = vadd.f32 %v422, %v898
        %v900 = vpop.f32.mrf.mxu0
        %v901 = vadd.f32 %v422, %v900
        %902 = vdwg.mxu0
        %903 = vmatprep.subr.mxu0 0.0
        %904 = vmatpush1.msra.mxu0 0.0
        %905 = vmatprep.subr.mxu0 0.0
        %906 = vmatpush1.msra.mxu0 0.0
        %907 = vmatprep.subr.mxu0 0.0
        %908 = vmatpush1.msra.mxu0 0.0
        %909 = vmatprep.subr.mxu0 0.0
        %910 = vmatpush1.msra.mxu0 0.0
        %911 = vmatprep.subr.mxu0 0.0
        %912 = vmatpush1.msra.mxu0 0.0
        %913 = vmatprep.subr.mxu0 0.0
        %914 = vmatpush1.msra.mxu0 0.0
        %915 = vmatprep.subr.mxu0 0.0
        %916 = vmatpush1.msra.mxu0 0.0
        %917 = vmatprep.subr.mxu0 0.0
        %918 = vmatpush1.msra.mxu0 0.0
        %919 = vmatprep.subr.mxu0 0.0
        %920 = vmatpush1.msra.mxu0 0.0
        %921 = vmatprep.subr.mxu0 0.0
        %922 = vmatpush1.msra.mxu0 0.0
        %923 = vmatprep.subr.mxu0 0.0
        %924 = vmatpush1.msra.mxu0 0.0
        %925 = vmatprep.subr.mxu0 0.0
        %926 = vmatpush1.msra.mxu0 0.0
        %927 = vmatprep.subr.mxu0 0.0
        %928 = vmatpush1.msra.mxu0 0.0
        %929 = vmatprep.subr.mxu0 0.0
        %930 = vmatpush1.msra.mxu0 0.0
        %931 = vmatprep.subr.mxu0 %v469
        %932 = vmatpush1.msra.mxu0 %v466
        %933 = vmatprep.subr.mxu0 %v398
        %934 = vmatpush1.msra.mxu0 %v397
        %935 = vmatprep.subr.mxu0 0.0
        %936 = vmatpush2.msra.mxu0 0.0
        %937 = vmatprep.subr.mxu0 0.0
        %938 = vmatpush2.msra.mxu0 0.0
        %939 = vmatprep.subr.mxu0 0.0
        %940 = vmatpush2.msra.mxu0 0.0
        %941 = vmatprep.subr.mxu0 0.0
        %942 = vmatpush2.msra.mxu0 0.0
        %943 = vmatprep.subr.mxu0 0.0
        %944 = vmatpush2.msra.mxu0 0.0
        %945 = vmatprep.subr.mxu0 0.0
        %946 = vmatpush2.msra.mxu0 0.0
        %947 = vmatprep.subr.mxu0 0.0
        %948 = vmatpush2.msra.mxu0 0.0
        %949 = vmatprep.subr.mxu0 0.0
        %950 = vmatpush2.msra.mxu0 0.0
        %951 = vmatprep.subr.mxu0 0.0
        %952 = vmatpush2.msra.mxu0 0.0
        %953 = vmatprep.subr.mxu0 0.0
        %954 = vmatpush2.msra.mxu0 0.0
        %955 = vmatprep.subr.mxu0 0.0
        %956 = vmatpush2.msra.mxu0 0.0
        %957 = vmatprep.subr.mxu0 0.0
        %958 = vmatpush2.msra.mxu0 0.0
        %959 = vmatprep.subr.mxu0 0.0
        %960 = vmatpush2.msra.mxu0 0.0
        %961 = vmatprep.subr.mxu0 0.0
        %962 = vmatpush2.msra.mxu0 0.0
        %963 = vmatprep.subr.mxu0 0.0
        %964 = vmatpush2.msra.mxu0 0.0
        %965 = vmatprep.subr.mxu0 0.0
        %966 = vmatpush2.msra.mxu0 0.0
        %967 = vmatprep.mubr.f32.mxu0 0.0
        %968 = vmatmul.mubr.f32.gmra.mxu0 %v426
        %v969 = vpop.f32.mrf.mxu0
        %v970 = vadd.f32 %v422, %v969
        %v971 = vpop.f32.mrf.mxu0
        %v972 = vadd.f32 %v422, %v971
        %973 = vdwg.mxu0
        %974 = vmatprep.subr.mxu0 0.0
        %975 = vmatpush1.msra.mxu0 0.0
        %976 = vmatprep.subr.mxu0 0.0
        %977 = vmatpush1.msra.mxu0 0.0
        %978 = vmatprep.subr.mxu0 0.0
        %979 = vmatpush1.msra.mxu0 0.0
        %980 = vmatprep.subr.mxu0 0.0
        %981 = vmatpush1.msra.mxu0 0.0
        %982 = vmatprep.subr.mxu0 0.0
        %983 = vmatpush1.msra.mxu0 0.0
        %984 = vmatprep.subr.mxu0 0.0
        %985 = vmatpush1.msra.mxu0 0.0
        %986 = vmatprep.subr.mxu0 0.0
        %987 = vmatpush1.msra.mxu0 0.0
        %988 = vmatprep.subr.mxu0 0.0
        %989 = vmatpush1.msra.mxu0 0.0
        %990 = vmatprep.subr.mxu0 0.0
        %991 = vmatpush1.msra.mxu0 0.0
        %992 = vmatprep.subr.mxu0 0.0
        %993 = vmatpush1.msra.mxu0 0.0
        %994 = vmatprep.subr.mxu0 0.0
        %995 = vmatpush1.msra.mxu0 0.0
        %996 = vmatprep.subr.mxu0 0.0
        %997 = vmatpush1.msra.mxu0 0.0
        %998 = vmatprep.subr.mxu0 0.0
        %999 = vmatpush1.msra.mxu0 0.0
        %1000 = vmatprep.subr.mxu0 0.0
        %1001 = vmatpush1.msra.mxu0 0.0
        %1002 = vmatprep.subr.mxu0 %v475
        %1003 = vmatpush1.msra.mxu0 %v472
        %1004 = vmatprep.subr.mxu0 %v400
        %1005 = vmatpush1.msra.mxu0 %v399
        %1006 = vmatprep.subr.mxu0 0.0
        %1007 = vmatpush2.msra.mxu0 0.0
        %1008 = vmatprep.subr.mxu0 0.0
        %1009 = vmatpush2.msra.mxu0 0.0
        %1010 = vmatprep.subr.mxu0 0.0
        %1011 = vmatpush2.msra.mxu0 0.0
        %1012 = vmatprep.subr.mxu0 0.0
        %1013 = vmatpush2.msra.mxu0 0.0
        %1014 = vmatprep.subr.mxu0 0.0
        %1015 = vmatpush2.msra.mxu0 0.0
        %1016 = vmatprep.subr.mxu0 0.0
        %1017 = vmatpush2.msra.mxu0 0.0
        %1018 = vmatprep.subr.mxu0 0.0
        %1019 = vmatpush2.msra.mxu0 0.0
        %1020 = vmatprep.subr.mxu0 0.0
        %1021 = vmatpush2.msra.mxu0 0.0
        %1022 = vmatprep.subr.mxu0 0.0
        %1023 = vmatpush2.msra.mxu0 0.0
        %1024 = vmatprep.subr.mxu0 0.0
        %1025 = vmatpush2.msra.mxu0 0.0
        %1026 = vmatprep.subr.mxu0 0.0
        %1027 = vmatpush2.msra.mxu0 0.0
        %1028 = vmatprep.subr.mxu0 0.0
        %1029 = vmatpush2.msra.mxu0 0.0
        %1030 = vmatprep.subr.mxu0 0.0
        %1031 = vmatpush2.msra.mxu0 0.0
        %1032 = vmatprep.subr.mxu0 0.0
        %1033 = vmatpush2.msra.mxu0 0.0
        %1034 = vmatprep.subr.mxu0 0.0
        %1035 = vmatpush2.msra.mxu0 0.0
        %1036 = vmatprep.subr.mxu0 0.0
        %1037 = vmatpush2.msra.mxu0 0.0
        %1038 = vmatprep.mubr.f32.mxu0 0.0
        %1039 = vmatmul.mubr.f32.gmra.mxu0 %v426
        %v1040 = vpop.f32.mrf.mxu0
        %v1041 = vadd.f32 %v422, %v1040
        %v1042 = vpop.f32.mrf.mxu0
        %v1043 = vadd.f32 %v422, %v1042
        %1044 = vdwg.mxu0
        %v1045 = vxor.u32 %v544, 2147483648
        %v1046 = vxor.u32 %v546, 2147483648
        %v1047 = vxor.u32 %v615, 2147483648
        %v1048 = vxor.u32 %v617, 2147483648
        %v1049 = vxor.u32 %v686, 2147483648
        %v1050 = vxor.u32 %v688, 2147483648
        %v1051 = vxor.u32 %v757, 2147483648
        %v1052 = vxor.u32 %v759, 2147483648
        %v1053 = vxor.u32 %v828, 2147483648
        %v1054 = vxor.u32 %v830, 2147483648
        %v1055 = vxor.u32 %v899, 2147483648
        %v1056 = vxor.u32 %v901, 2147483648
        %v1057 = vxor.u32 %v970, 2147483648
        %v1058 = vxor.u32 %v972, 2147483648
        %v1059 = vxor.u32 %v1041, 2147483648
        %v1060 = vxor.u32 %v1043, 2147483648
        %v1061 = vmul.f32 %v1045, 1.442695
        %v1062 = vpow.pop %v1061
        %v1063 = vmul.f32 %v1046, 1.442695
        %v1064 = vpow.pop %v1063
        %v1065 = vmul.f32 %v1047, 1.442695
        %v1066 = vpow.pop %v1065
        %v1067 = vmul.f32 %v1048, 1.442695
        %v1068 = vpow.pop %v1067
        %v1069 = vmul.f32 %v1049, 1.442695
        %v1070 = vpow.pop %v1069
        %v1071 = vmul.f32 %v1050, 1.442695
        %v1072 = vpow.pop %v1071
        %v1073 = vmul.f32 %v1051, 1.442695
        %v1074 = vpow.pop %v1073
        %v1075 = vmul.f32 %v1052, 1.442695
        %v1076 = vpow.pop %v1075
        %v1077 = vmul.f32 %v1053, 1.442695
        %v1078 = vpow.pop %v1077
        %v1079 = vmul.f32 %v1054, 1.442695
        %v1080 = vpow.pop %v1079
        %v1081 = vmul.f32 %v1055, 1.442695
        %v1082 = vpow.pop %v1081
        %v1083 = vmul.f32 %v1056, 1.442695
        %v1084 = vpow.pop %v1083
        %v1085 = vmul.f32 %v1057, 1.442695
        %v1086 = vpow.pop %v1085
        %v1087 = vmul.f32 %v1058, 1.442695
        %v1088 = vpow.pop %v1087
        %v1089 = vmul.f32 %v1059, 1.442695
        %v1090 = vpow.pop %v1089
        %v1091 = vmul.f32 %v1060, 1.442695
        %v1092 = vpow.pop %v1091
        %v1093 = vadd.f32 %v1062, 1.0
        %v1094 = vadd.f32 %v1064, 1.0
        %v1095 = vadd.f32 %v1066, 1.0
        %v1096 = vadd.f32 %v1068, 1.0
        %v1097 = vadd.f32 %v1070, 1.0
        %v1098 = vadd.f32 %v1072, 1.0
        %v1099 = vadd.f32 %v1074, 1.0
        %v1100 = vadd.f32 %v1076, 1.0
        %v1101 = vadd.f32 %v1078, 1.0
        %v1102 = vadd.f32 %v1080, 1.0
        %v1103 = vadd.f32 %v1082, 1.0
        %v1104 = vadd.f32 %v1084, 1.0
        %v1105 = vadd.f32 %v1086, 1.0
        %v1106 = vadd.f32 %v1088, 1.0
        %v1107 = vadd.f32 %v1090, 1.0
        %v1108 = vadd.f32 %v1092, 1.0
        %v1109 = vrcp.pop %v1093
        %v1110 = vmul.f32 1.0, %v1109
        %v1111 = vrcp.pop %v1094
        %v1112 = vmul.f32 1.0, %v1111
        %v1113 = vrcp.pop %v1095
        %v1114 = vmul.f32 1.0, %v1113
        %v1115 = vrcp.pop %v1096
        %v1116 = vmul.f32 1.0, %v1115
        %v1117 = vrcp.pop %v1097
        %v1118 = vmul.f32 1.0, %v1117
        %v1119 = vrcp.pop %v1098
        %v1120 = vmul.f32 1.0, %v1119
        %v1121 = vrcp.pop %v1099
        %v1122 = vmul.f32 1.0, %v1121
        %v1123 = vrcp.pop %v1100
        %v1124 = vmul.f32 1.0, %v1123
        %v1125 = vrcp.pop %v1101
        %v1126 = vmul.f32 1.0, %v1125
        %v1127 = vrcp.pop %v1102
        %v1128 = vmul.f32 1.0, %v1127
        %v1129 = vrcp.pop %v1103
        %v1130 = vmul.f32 1.0, %v1129
        %v1131 = vrcp.pop %v1104
        %v1132 = vmul.f32 1.0, %v1131
        %v1133 = vrcp.pop %v1105
        %v1134 = vmul.f32 1.0, %v1133
        %v1135 = vrcp.pop %v1106
        %v1136 = vmul.f32 1.0, %v1135
        %v1137 = vrcp.pop %v1107
        %v1138 = vmul.f32 1.0, %v1137
        %v1139 = vrcp.pop %v1108
        %v1140 = vmul.f32 1.0, %v1139
        %v1141 = vld [vmem:[%s3] sm:$0xff]
        %v1142 = vld [vmem:[%s4] sm:$0xff]
        %1144 = vset.pattern.permute.xlu0 0
        %1145 = vperm.xlu0 %1144, %v1142
        %v1146 = vpop.permute.xlu0 %1145
        %vm1148 = vcmask 64512
        %v1150 = vsel %vm1148, %v1141, 0
        %1152 = vmatprep.subr.mxu0 0.0
        %1153 = vmatpush1.msra.mxu0 0.0
        %1154 = vmatprep.subr.mxu0 0.0
        %1155 = vmatpush1.msra.mxu0 0.0
        %1156 = vmatprep.subr.mxu0 0.0
        %1157 = vmatpush1.msra.mxu0 0.0
        %1158 = vmatprep.subr.mxu0 0.0
        %1159 = vmatpush1.msra.mxu0 0.0
        %1160 = vmatprep.subr.mxu0 0.0
        %1161 = vmatpush1.msra.mxu0 0.0
        %1162 = vmatprep.subr.mxu0 0.0
        %1163 = vmatpush1.msra.mxu0 0.0
        %1164 = vmatprep.subr.mxu0 0.0
        %1165 = vmatpush1.msra.mxu0 0.0
        %1166 = vmatprep.subr.mxu0 0.0
        %1167 = vmatpush1.msra.mxu0 0.0
        %1168 = vmatprep.subr.mxu0 0.0
        %1169 = vmatpush1.msra.mxu0 0.0
        %1170 = vmatprep.subr.mxu0 0.0
        %1171 = vmatpush1.msra.mxu0 0.0
        %1172 = vmatprep.subr.mxu0 0.0
        %1173 = vmatpush1.msra.mxu0 0.0
        %1174 = vmatprep.subr.mxu0 0.0
        %1175 = vmatpush1.msra.mxu0 0.0
        %1176 = vmatprep.subr.mxu0 0.0
        %1177 = vmatpush1.msra.mxu0 0.0
        %1178 = vmatprep.subr.mxu0 0.0
        %1179 = vmatpush1.msra.mxu0 0.0
        %1180 = vmatprep.subr.mxu0 0.0
        %1181 = vmatpush1.msra.mxu0 0.0
        %1182 = vmatprep.subr.mxu0 %v1112
        %1183 = vmatpush1.msra.mxu0 %v1110
        %1184 = vmatprep.subr.mxu0 0.0
        %1185 = vmatpush2.msra.mxu0 0.0
        %1186 = vmatprep.subr.mxu0 0.0
        %1187 = vmatpush2.msra.mxu0 0.0
        %1188 = vmatprep.subr.mxu0 0.0
        %1189 = vmatpush2.msra.mxu0 0.0
        %1190 = vmatprep.subr.mxu0 0.0
        %1191 = vmatpush2.msra.mxu0 0.0
        %1192 = vmatprep.subr.mxu0 0.0
        %1193 = vmatpush2.msra.mxu0 0.0
        %1194 = vmatprep.subr.mxu0 0.0
        %1195 = vmatpush2.msra.mxu0 0.0
        %1196 = vmatprep.subr.mxu0 0.0
        %1197 = vmatpush2.msra.mxu0 0.0
        %1198 = vmatprep.subr.mxu0 0.0
        %1199 = vmatpush2.msra.mxu0 0.0
        %1200 = vmatprep.subr.mxu0 0.0
        %1201 = vmatpush2.msra.mxu0 0.0
        %1202 = vmatprep.subr.mxu0 0.0
        %1203 = vmatpush2.msra.mxu0 0.0
        %1204 = vmatprep.subr.mxu0 0.0
        %1205 = vmatpush2.msra.mxu0 0.0
        %1206 = vmatprep.subr.mxu0 0.0
        %1207 = vmatpush2.msra.mxu0 0.0
        %1208 = vmatprep.subr.mxu0 0.0
        %1209 = vmatpush2.msra.mxu0 0.0
        %1210 = vmatprep.subr.mxu0 0.0
        %1211 = vmatpush2.msra.mxu0 0.0
        %1212 = vmatprep.subr.mxu0 0.0
        %1213 = vmatpush2.msra.mxu0 0.0
        %1214 = vmatprep.subr.mxu0 0.0
        %1215 = vmatpush2.msra.mxu0 0.0
        %1216 = vmatprep.mubr.f32.mxu0 0.0
        %1217 = vmatmul.mubr.f32.gmra.mxu0 %v1150
        %v1218 = vpop.f32.mrf.mxu0
        %v1219 = vadd.f32 %v1146, %v1218
        %v1220 = vpop.f32.mrf.mxu0
        %v1221 = vadd.f32 %v1146, %v1220
        %1222 = vdwg.mxu0
        %1223 = vmatprep.subr.mxu0 0.0
        %1224 = vmatpush1.msra.mxu0 0.0
        %1225 = vmatprep.subr.mxu0 0.0
        %1226 = vmatpush1.msra.mxu0 0.0
        %1227 = vmatprep.subr.mxu0 0.0
        %1228 = vmatpush1.msra.mxu0 0.0
        %1229 = vmatprep.subr.mxu0 0.0
        %1230 = vmatpush1.msra.mxu0 0.0
        %1231 = vmatprep.subr.mxu0 0.0
        %1232 = vmatpush1.msra.mxu0 0.0
        %1233 = vmatprep.subr.mxu0 0.0
        %1234 = vmatpush1.msra.mxu0 0.0
        %1235 = vmatprep.subr.mxu0 0.0
        %1236 = vmatpush1.msra.mxu0 0.0
        %1237 = vmatprep.subr.mxu0 0.0
        %1238 = vmatpush1.msra.mxu0 0.0
        %1239 = vmatprep.subr.mxu0 0.0
        %1240 = vmatpush1.msra.mxu0 0.0
        %1241 = vmatprep.subr.mxu0 0.0
        %1242 = vmatpush1.msra.mxu0 0.0
        %1243 = vmatprep.subr.mxu0 0.0
        %1244 = vmatpush1.msra.mxu0 0.0
        %1245 = vmatprep.subr.mxu0 0.0
        %1246 = vmatpush1.msra.mxu0 0.0
        %1247 = vmatprep.subr.mxu0 0.0
        %1248 = vmatpush1.msra.mxu0 0.0
        %1249 = vmatprep.subr.mxu0 0.0
        %1250 = vmatpush1.msra.mxu0 0.0
        %1251 = vmatprep.subr.mxu0 0.0
        %1252 = vmatpush1.msra.mxu0 0.0
        %1253 = vmatprep.subr.mxu0 %v1116
        %1254 = vmatpush1.msra.mxu0 %v1114
        %1255 = vmatprep.subr.mxu0 0.0
        %1256 = vmatpush2.msra.mxu0 0.0
        %1257 = vmatprep.subr.mxu0 0.0
        %1258 = vmatpush2.msra.mxu0 0.0
        %1259 = vmatprep.subr.mxu0 0.0
        %1260 = vmatpush2.msra.mxu0 0.0
        %1261 = vmatprep.subr.mxu0 0.0
        %1262 = vmatpush2.msra.mxu0 0.0
        %1263 = vmatprep.subr.mxu0 0.0
        %1264 = vmatpush2.msra.mxu0 0.0
        %1265 = vmatprep.subr.mxu0 0.0
        %1266 = vmatpush2.msra.mxu0 0.0
        %1267 = vmatprep.subr.mxu0 0.0
        %1268 = vmatpush2.msra.mxu0 0.0
        %1269 = vmatprep.subr.mxu0 0.0
        %1270 = vmatpush2.msra.mxu0 0.0
        %1271 = vmatprep.subr.mxu0 0.0
        %1272 = vmatpush2.msra.mxu0 0.0
        %1273 = vmatprep.subr.mxu0 0.0
        %1274 = vmatpush2.msra.mxu0 0.0
        %1275 = vmatprep.subr.mxu0 0.0
        %1276 = vmatpush2.msra.mxu0 0.0
        %1277 = vmatprep.subr.mxu0 0.0
        %1278 = vmatpush2.msra.mxu0 0.0
        %1279 = vmatprep.subr.mxu0 0.0
        %1280 = vmatpush2.msra.mxu0 0.0
        %1281 = vmatprep.subr.mxu0 0.0
        %1282 = vmatpush2.msra.mxu0 0.0
        %1283 = vmatprep.subr.mxu0 0.0
        %1284 = vmatpush2.msra.mxu0 0.0
        %1285 = vmatprep.subr.mxu0 0.0
        %1286 = vmatpush2.msra.mxu0 0.0
        %1287 = vmatprep.mubr.f32.mxu0 0.0
        %1288 = vmatmul.mubr.f32.gmra.mxu0 %v1150
        %v1289 = vpop.f32.mrf.mxu0
        %v1290 = vadd.f32 %v1146, %v1289
        %v1291 = vpop.f32.mrf.mxu0
        %v1292 = vadd.f32 %v1146, %v1291
        %1293 = vdwg.mxu0
        %1294 = vmatprep.subr.mxu0 0.0
        %1295 = vmatpush1.msra.mxu0 0.0
        %1296 = vmatprep.subr.mxu0 0.0
        %1297 = vmatpush1.msra.mxu0 0.0
        %1298 = vmatprep.subr.mxu0 0.0
        %1299 = vmatpush1.msra.mxu0 0.0
        %1300 = vmatprep.subr.mxu0 0.0
        %1301 = vmatpush1.msra.mxu0 0.0
        %1302 = vmatprep.subr.mxu0 0.0
        %1303 = vmatpush1.msra.mxu0 0.0
        %1304 = vmatprep.subr.mxu0 0.0
        %1305 = vmatpush1.msra.mxu0 0.0
        %1306 = vmatprep.subr.mxu0 0.0
        %1307 = vmatpush1.msra.mxu0 0.0
        %1308 = vmatprep.subr.mxu0 0.0
        %1309 = vmatpush1.msra.mxu0 0.0
        %1310 = vmatprep.subr.mxu0 0.0
        %1311 = vmatpush1.msra.mxu0 0.0
        %1312 = vmatprep.subr.mxu0 0.0
        %1313 = vmatpush1.msra.mxu0 0.0
        %1314 = vmatprep.subr.mxu0 0.0
        %1315 = vmatpush1.msra.mxu0 0.0
        %1316 = vmatprep.subr.mxu0 0.0
        %1317 = vmatpush1.msra.mxu0 0.0
        %1318 = vmatprep.subr.mxu0 0.0
        %1319 = vmatpush1.msra.mxu0 0.0
        %1320 = vmatprep.subr.mxu0 0.0
        %1321 = vmatpush1.msra.mxu0 0.0
        %1322 = vmatprep.subr.mxu0 0.0
        %1323 = vmatpush1.msra.mxu0 0.0
        %1324 = vmatprep.subr.mxu0 %v1120
        %1325 = vmatpush1.msra.mxu0 %v1118
        %1326 = vmatprep.subr.mxu0 0.0
        %1327 = vmatpush2.msra.mxu0 0.0
        %1328 = vmatprep.subr.mxu0 0.0
        %1329 = vmatpush2.msra.mxu0 0.0
        %1330 = vmatprep.subr.mxu0 0.0
        %1331 = vmatpush2.msra.mxu0 0.0
        %1332 = vmatprep.subr.mxu0 0.0
        %1333 = vmatpush2.msra.mxu0 0.0
        %1334 = vmatprep.subr.mxu0 0.0
        %1335 = vmatpush2.msra.mxu0 0.0
        %1336 = vmatprep.subr.mxu0 0.0
        %1337 = vmatpush2.msra.mxu0 0.0
        %1338 = vmatprep.subr.mxu0 0.0
        %1339 = vmatpush2.msra.mxu0 0.0
        %1340 = vmatprep.subr.mxu0 0.0
        %1341 = vmatpush2.msra.mxu0 0.0
        %1342 = vmatprep.subr.mxu0 0.0
        %1343 = vmatpush2.msra.mxu0 0.0
        %1344 = vmatprep.subr.mxu0 0.0
        %1345 = vmatpush2.msra.mxu0 0.0
        %1346 = vmatprep.subr.mxu0 0.0
        %1347 = vmatpush2.msra.mxu0 0.0
        %1348 = vmatprep.subr.mxu0 0.0
        %1349 = vmatpush2.msra.mxu0 0.0
        %1350 = vmatprep.subr.mxu0 0.0
        %1351 = vmatpush2.msra.mxu0 0.0
        %1352 = vmatprep.subr.mxu0 0.0
        %1353 = vmatpush2.msra.mxu0 0.0
        %1354 = vmatprep.subr.mxu0 0.0
        %1355 = vmatpush2.msra.mxu0 0.0
        %1356 = vmatprep.subr.mxu0 0.0
        %1357 = vmatpush2.msra.mxu0 0.0
        %1358 = vmatprep.mubr.f32.mxu0 0.0
        %1359 = vmatmul.mubr.f32.gmra.mxu0 %v1150
        %v1360 = vpop.f32.mrf.mxu0
        %v1361 = vadd.f32 %v1146, %v1360
        %v1362 = vpop.f32.mrf.mxu0
        %v1363 = vadd.f32 %v1146, %v1362
        %1364 = vdwg.mxu0
        %1365 = vmatprep.subr.mxu0 0.0
        %1366 = vmatpush1.msra.mxu0 0.0
        %1367 = vmatprep.subr.mxu0 0.0
        %1368 = vmatpush1.msra.mxu0 0.0
        %1369 = vmatprep.subr.mxu0 0.0
        %1370 = vmatpush1.msra.mxu0 0.0
        %1371 = vmatprep.subr.mxu0 0.0
        %1372 = vmatpush1.msra.mxu0 0.0
        %1373 = vmatprep.subr.mxu0 0.0
        %1374 = vmatpush1.msra.mxu0 0.0
        %1375 = vmatprep.subr.mxu0 0.0
        %1376 = vmatpush1.msra.mxu0 0.0
        %1377 = vmatprep.subr.mxu0 0.0
        %1378 = vmatpush1.msra.mxu0 0.0
        %1379 = vmatprep.subr.mxu0 0.0
        %1380 = vmatpush1.msra.mxu0 0.0
        %1381 = vmatprep.subr.mxu0 0.0
        %1382 = vmatpush1.msra.mxu0 0.0
        %1383 = vmatprep.subr.mxu0 0.0
        %1384 = vmatpush1.msra.mxu0 0.0
        %1385 = vmatprep.subr.mxu0 0.0
        %1386 = vmatpush1.msra.mxu0 0.0
        %1387 = vmatprep.subr.mxu0 0.0
        %1388 = vmatpush1.msra.mxu0 0.0
        %1389 = vmatprep.subr.mxu0 0.0
        %1390 = vmatpush1.msra.mxu0 0.0
        %1391 = vmatprep.subr.mxu0 0.0
        %1392 = vmatpush1.msra.mxu0 0.0
        %1393 = vmatprep.subr.mxu0 0.0
        %1394 = vmatpush1.msra.mxu0 0.0
        %1395 = vmatprep.subr.mxu0 %v1124
        %1396 = vmatpush1.msra.mxu0 %v1122
        %1397 = vmatprep.subr.mxu0 0.0
        %1398 = vmatpush2.msra.mxu0 0.0
        %1399 = vmatprep.subr.mxu0 0.0
        %1400 = vmatpush2.msra.mxu0 0.0
        %1401 = vmatprep.subr.mxu0 0.0
        %1402 = vmatpush2.msra.mxu0 0.0
        %1403 = vmatprep.subr.mxu0 0.0
        %1404 = vmatpush2.msra.mxu0 0.0
        %1405 = vmatprep.subr.mxu0 0.0
        %1406 = vmatpush2.msra.mxu0 0.0
        %1407 = vmatprep.subr.mxu0 0.0
        %1408 = vmatpush2.msra.mxu0 0.0
        %1409 = vmatprep.subr.mxu0 0.0
        %1410 = vmatpush2.msra.mxu0 0.0
        %1411 = vmatprep.subr.mxu0 0.0
        %1412 = vmatpush2.msra.mxu0 0.0
        %1413 = vmatprep.subr.mxu0 0.0
        %1414 = vmatpush2.msra.mxu0 0.0
        %1415 = vmatprep.subr.mxu0 0.0
        %1416 = vmatpush2.msra.mxu0 0.0
        %1417 = vmatprep.subr.mxu0 0.0
        %1418 = vmatpush2.msra.mxu0 0.0
        %1419 = vmatprep.subr.mxu0 0.0
        %1420 = vmatpush2.msra.mxu0 0.0
        %1421 = vmatprep.subr.mxu0 0.0
        %1422 = vmatpush2.msra.mxu0 0.0
        %1423 = vmatprep.subr.mxu0 0.0
        %1424 = vmatpush2.msra.mxu0 0.0
        %1425 = vmatprep.subr.mxu0 0.0
        %1426 = vmatpush2.msra.mxu0 0.0
        %1427 = vmatprep.subr.mxu0 0.0
        %1428 = vmatpush2.msra.mxu0 0.0
        %1429 = vmatprep.mubr.f32.mxu0 0.0
        %1430 = vmatmul.mubr.f32.gmra.mxu0 %v1150
        %v1431 = vpop.f32.mrf.mxu0
        %v1432 = vadd.f32 %v1146, %v1431
        %v1433 = vpop.f32.mrf.mxu0
        %v1434 = vadd.f32 %v1146, %v1433
        %1435 = vdwg.mxu0
        %1436 = vmatprep.subr.mxu0 0.0
        %1437 = vmatpush1.msra.mxu0 0.0
        %1438 = vmatprep.subr.mxu0 0.0
        %1439 = vmatpush1.msra.mxu0 0.0
        %1440 = vmatprep.subr.mxu0 0.0
        %1441 = vmatpush1.msra.mxu0 0.0
        %1442 = vmatprep.subr.mxu0 0.0
        %1443 = vmatpush1.msra.mxu0 0.0
        %1444 = vmatprep.subr.mxu0 0.0
        %1445 = vmatpush1.msra.mxu0 0.0
        %1446 = vmatprep.subr.mxu0 0.0
        %1447 = vmatpush1.msra.mxu0 0.0
        %1448 = vmatprep.subr.mxu0 0.0
        %1449 = vmatpush1.msra.mxu0 0.0
        %1450 = vmatprep.subr.mxu0 0.0
        %1451 = vmatpush1.msra.mxu0 0.0
        %1452 = vmatprep.subr.mxu0 0.0
        %1453 = vmatpush1.msra.mxu0 0.0
        %1454 = vmatprep.subr.mxu0 0.0
        %1455 = vmatpush1.msra.mxu0 0.0
        %1456 = vmatprep.subr.mxu0 0.0
        %1457 = vmatpush1.msra.mxu0 0.0
        %1458 = vmatprep.subr.mxu0 0.0
        %1459 = vmatpush1.msra.mxu0 0.0
        %1460 = vmatprep.subr.mxu0 0.0
        %1461 = vmatpush1.msra.mxu0 0.0
        %1462 = vmatprep.subr.mxu0 0.0
        %1463 = vmatpush1.msra.mxu0 0.0
        %1464 = vmatprep.subr.mxu0 0.0
        %1465 = vmatpush1.msra.mxu0 0.0
        %1466 = vmatprep.subr.mxu0 %v1128
        %1467 = vmatpush1.msra.mxu0 %v1126
        %1468 = vmatprep.subr.mxu0 0.0
        %1469 = vmatpush2.msra.mxu0 0.0
        %1470 = vmatprep.subr.mxu0 0.0
        %1471 = vmatpush2.msra.mxu0 0.0
        %1472 = vmatprep.subr.mxu0 0.0
        %1473 = vmatpush2.msra.mxu0 0.0
        %1474 = vmatprep.subr.mxu0 0.0
        %1475 = vmatpush2.msra.mxu0 0.0
        %1476 = vmatprep.subr.mxu0 0.0
        %1477 = vmatpush2.msra.mxu0 0.0
        %1478 = vmatprep.subr.mxu0 0.0
        %1479 = vmatpush2.msra.mxu0 0.0
        %1480 = vmatprep.subr.mxu0 0.0
        %1481 = vmatpush2.msra.mxu0 0.0
        %1482 = vmatprep.subr.mxu0 0.0
        %1483 = vmatpush2.msra.mxu0 0.0
        %1484 = vmatprep.subr.mxu0 0.0
        %1485 = vmatpush2.msra.mxu0 0.0
        %1486 = vmatprep.subr.mxu0 0.0
        %1487 = vmatpush2.msra.mxu0 0.0
        %1488 = vmatprep.subr.mxu0 0.0
        %1489 = vmatpush2.msra.mxu0 0.0
        %1490 = vmatprep.subr.mxu0 0.0
        %1491 = vmatpush2.msra.mxu0 0.0
        %1492 = vmatprep.subr.mxu0 0.0
        %1493 = vmatpush2.msra.mxu0 0.0
        %1494 = vmatprep.subr.mxu0 0.0
        %1495 = vmatpush2.msra.mxu0 0.0
        %1496 = vmatprep.subr.mxu0 0.0
        %1497 = vmatpush2.msra.mxu0 0.0
        %1498 = vmatprep.subr.mxu0 0.0
        %1499 = vmatpush2.msra.mxu0 0.0
        %1500 = vmatprep.mubr.f32.mxu0 0.0
        %1501 = vmatmul.mubr.f32.gmra.mxu0 %v1150
        %v1502 = vpop.f32.mrf.mxu0
        %v1503 = vadd.f32 %v1146, %v1502
        %v1504 = vpop.f32.mrf.mxu0
        %v1505 = vadd.f32 %v1146, %v1504
        %1506 = vdwg.mxu0
        %1507 = vmatprep.subr.mxu0 0.0
        %1508 = vmatpush1.msra.mxu0 0.0
        %1509 = vmatprep.subr.mxu0 0.0
        %1510 = vmatpush1.msra.mxu0 0.0
        %1511 = vmatprep.subr.mxu0 0.0
        %1512 = vmatpush1.msra.mxu0 0.0
        %1513 = vmatprep.subr.mxu0 0.0
        %1514 = vmatpush1.msra.mxu0 0.0
        %1515 = vmatprep.subr.mxu0 0.0
        %1516 = vmatpush1.msra.mxu0 0.0
        %1517 = vmatprep.subr.mxu0 0.0
        %1518 = vmatpush1.msra.mxu0 0.0
        %1519 = vmatprep.subr.mxu0 0.0
        %1520 = vmatpush1.msra.mxu0 0.0
        %1521 = vmatprep.subr.mxu0 0.0
        %1522 = vmatpush1.msra.mxu0 0.0
        %1523 = vmatprep.subr.mxu0 0.0
        %1524 = vmatpush1.msra.mxu0 0.0
        %1525 = vmatprep.subr.mxu0 0.0
        %1526 = vmatpush1.msra.mxu0 0.0
        %1527 = vmatprep.subr.mxu0 0.0
        %1528 = vmatpush1.msra.mxu0 0.0
        %1529 = vmatprep.subr.mxu0 0.0
        %1530 = vmatpush1.msra.mxu0 0.0
        %1531 = vmatprep.subr.mxu0 0.0
        %1532 = vmatpush1.msra.mxu0 0.0
        %1533 = vmatprep.subr.mxu0 0.0
        %1534 = vmatpush1.msra.mxu0 0.0
        %1535 = vmatprep.subr.mxu0 0.0
        %1536 = vmatpush1.msra.mxu0 0.0
        %1537 = vmatprep.subr.mxu0 %v1132
        %1538 = vmatpush1.msra.mxu0 %v1130
        %1539 = vmatprep.subr.mxu0 0.0
        %1540 = vmatpush2.msra.mxu0 0.0
        %1541 = vmatprep.subr.mxu0 0.0
        %1542 = vmatpush2.msra.mxu0 0.0
        %1543 = vmatprep.subr.mxu0 0.0
        %1544 = vmatpush2.msra.mxu0 0.0
        %1545 = vmatprep.subr.mxu0 0.0
        %1546 = vmatpush2.msra.mxu0 0.0
        %1547 = vmatprep.subr.mxu0 0.0
        %1548 = vmatpush2.msra.mxu0 0.0
        %1549 = vmatprep.subr.mxu0 0.0
        %1550 = vmatpush2.msra.mxu0 0.0
        %1551 = vmatprep.subr.mxu0 0.0
        %1552 = vmatpush2.msra.mxu0 0.0
        %1553 = vmatprep.subr.mxu0 0.0
        %1554 = vmatpush2.msra.mxu0 0.0
        %1555 = vmatprep.subr.mxu0 0.0
        %1556 = vmatpush2.msra.mxu0 0.0
        %1557 = vmatprep.subr.mxu0 0.0
        %1558 = vmatpush2.msra.mxu0 0.0
        %1559 = vmatprep.subr.mxu0 0.0
        %1560 = vmatpush2.msra.mxu0 0.0
        %1561 = vmatprep.subr.mxu0 0.0
        %1562 = vmatpush2.msra.mxu0 0.0
        %1563 = vmatprep.subr.mxu0 0.0
        %1564 = vmatpush2.msra.mxu0 0.0
        %1565 = vmatprep.subr.mxu0 0.0
        %1566 = vmatpush2.msra.mxu0 0.0
        %1567 = vmatprep.subr.mxu0 0.0
        %1568 = vmatpush2.msra.mxu0 0.0
        %1569 = vmatprep.subr.mxu0 0.0
        %1570 = vmatpush2.msra.mxu0 0.0
        %1571 = vmatprep.mubr.f32.mxu0 0.0
        %1572 = vmatmul.mubr.f32.gmra.mxu0 %v1150
        %v1573 = vpop.f32.mrf.mxu0
        %v1574 = vadd.f32 %v1146, %v1573
        %v1575 = vpop.f32.mrf.mxu0
        %v1576 = vadd.f32 %v1146, %v1575
        %1577 = vdwg.mxu0
        %1578 = vmatprep.subr.mxu0 0.0
        %1579 = vmatpush1.msra.mxu0 0.0
        %1580 = vmatprep.subr.mxu0 0.0
        %1581 = vmatpush1.msra.mxu0 0.0
        %1582 = vmatprep.subr.mxu0 0.0
        %1583 = vmatpush1.msra.mxu0 0.0
        %1584 = vmatprep.subr.mxu0 0.0
        %1585 = vmatpush1.msra.mxu0 0.0
        %1586 = vmatprep.subr.mxu0 0.0
        %1587 = vmatpush1.msra.mxu0 0.0
        %1588 = vmatprep.subr.mxu0 0.0
        %1589 = vmatpush1.msra.mxu0 0.0
        %1590 = vmatprep.subr.mxu0 0.0
        %1591 = vmatpush1.msra.mxu0 0.0
        %1592 = vmatprep.subr.mxu0 0.0
        %1593 = vmatpush1.msra.mxu0 0.0
        %1594 = vmatprep.subr.mxu0 0.0
        %1595 = vmatpush1.msra.mxu0 0.0
        %1596 = vmatprep.subr.mxu0 0.0
        %1597 = vmatpush1.msra.mxu0 0.0
        %1598 = vmatprep.subr.mxu0 0.0
        %1599 = vmatpush1.msra.mxu0 0.0
        %1600 = vmatprep.subr.mxu0 0.0
        %1601 = vmatpush1.msra.mxu0 0.0
        %1602 = vmatprep.subr.mxu0 0.0
        %1603 = vmatpush1.msra.mxu0 0.0
        %1604 = vmatprep.subr.mxu0 0.0
        %1605 = vmatpush1.msra.mxu0 0.0
        %1606 = vmatprep.subr.mxu0 0.0
        %1607 = vmatpush1.msra.mxu0 0.0
        %1608 = vmatprep.subr.mxu0 %v1136
        %1609 = vmatpush1.msra.mxu0 %v1134
        %1610 = vmatprep.subr.mxu0 0.0
        %1611 = vmatpush2.msra.mxu0 0.0
        %1612 = vmatprep.subr.mxu0 0.0
        %1613 = vmatpush2.msra.mxu0 0.0
        %1614 = vmatprep.subr.mxu0 0.0
        %1615 = vmatpush2.msra.mxu0 0.0
        %1616 = vmatprep.subr.mxu0 0.0
        %1617 = vmatpush2.msra.mxu0 0.0
        %1618 = vmatprep.subr.mxu0 0.0
        %1619 = vmatpush2.msra.mxu0 0.0
        %1620 = vmatprep.subr.mxu0 0.0
        %1621 = vmatpush2.msra.mxu0 0.0
        %1622 = vmatprep.subr.mxu0 0.0
        %1623 = vmatpush2.msra.mxu0 0.0
        %1624 = vmatprep.subr.mxu0 0.0
        %1625 = vmatpush2.msra.mxu0 0.0
        %1626 = vmatprep.subr.mxu0 0.0
        %1627 = vmatpush2.msra.mxu0 0.0
        %1628 = vmatprep.subr.mxu0 0.0
        %1629 = vmatpush2.msra.mxu0 0.0
        %1630 = vmatprep.subr.mxu0 0.0
        %1631 = vmatpush2.msra.mxu0 0.0
        %1632 = vmatprep.subr.mxu0 0.0
        %1633 = vmatpush2.msra.mxu0 0.0
        %1634 = vmatprep.subr.mxu0 0.0
        %1635 = vmatpush2.msra.mxu0 0.0
        %1636 = vmatprep.subr.mxu0 0.0
        %1637 = vmatpush2.msra.mxu0 0.0
        %1638 = vmatprep.subr.mxu0 0.0
        %1639 = vmatpush2.msra.mxu0 0.0
        %1640 = vmatprep.subr.mxu0 0.0
        %1641 = vmatpush2.msra.mxu0 0.0
        %1642 = vmatprep.mubr.f32.mxu0 0.0
        %1643 = vmatmul.mubr.f32.gmra.mxu0 %v1150
        %v1644 = vpop.f32.mrf.mxu0
        %v1645 = vadd.f32 %v1146, %v1644
        %v1646 = vpop.f32.mrf.mxu0
        %v1647 = vadd.f32 %v1146, %v1646
        %1648 = vdwg.mxu0
        %1649 = vmatprep.subr.mxu0 0.0
        %1650 = vmatpush1.msra.mxu0 0.0
        %1651 = vmatprep.subr.mxu0 0.0
        %1652 = vmatpush1.msra.mxu0 0.0
        %1653 = vmatprep.subr.mxu0 0.0
        %1654 = vmatpush1.msra.mxu0 0.0
        %1655 = vmatprep.subr.mxu0 0.0
        %1656 = vmatpush1.msra.mxu0 0.0
        %1657 = vmatprep.subr.mxu0 0.0
        %1658 = vmatpush1.msra.mxu0 0.0
        %1659 = vmatprep.subr.mxu0 0.0
        %1660 = vmatpush1.msra.mxu0 0.0
        %1661 = vmatprep.subr.mxu0 0.0
        %1662 = vmatpush1.msra.mxu0 0.0
        %1663 = vmatprep.subr.mxu0 0.0
        %1664 = vmatpush1.msra.mxu0 0.0
        %1665 = vmatprep.subr.mxu0 0.0
        %1666 = vmatpush1.msra.mxu0 0.0
        %1667 = vmatprep.subr.mxu0 0.0
        %1668 = vmatpush1.msra.mxu0 0.0
        %1669 = vmatprep.subr.mxu0 0.0
        %1670 = vmatpush1.msra.mxu0 0.0
        %1671 = vmatprep.subr.mxu0 0.0
        %1672 = vmatpush1.msra.mxu0 0.0
        %1673 = vmatprep.subr.mxu0 0.0
        %1674 = vmatpush1.msra.mxu0 0.0
        %1675 = vmatprep.subr.mxu0 0.0
        %1676 = vmatpush1.msra.mxu0 0.0
        %1677 = vmatprep.subr.mxu0 0.0
        %1678 = vmatpush1.msra.mxu0 0.0
        %1679 = vmatprep.subr.mxu0 %v1140
        %1680 = vmatpush1.msra.mxu0 %v1138
        %1681 = vmatprep.subr.mxu0 0.0
        %1682 = vmatpush2.msra.mxu0 0.0
        %1683 = vmatprep.subr.mxu0 0.0
        %1684 = vmatpush2.msra.mxu0 0.0
        %1685 = vmatprep.subr.mxu0 0.0
        %1686 = vmatpush2.msra.mxu0 0.0
        %1687 = vmatprep.subr.mxu0 0.0
        %1688 = vmatpush2.msra.mxu0 0.0
        %1689 = vmatprep.subr.mxu0 0.0
        %1690 = vmatpush2.msra.mxu0 0.0
        %1691 = vmatprep.subr.mxu0 0.0
        %1692 = vmatpush2.msra.mxu0 0.0
        %1693 = vmatprep.subr.mxu0 0.0
        %1694 = vmatpush2.msra.mxu0 0.0
        %1695 = vmatprep.subr.mxu0 0.0
        %1696 = vmatpush2.msra.mxu0 0.0
        %1697 = vmatprep.subr.mxu0 0.0
        %1698 = vmatpush2.msra.mxu0 0.0
        %1699 = vmatprep.subr.mxu0 0.0
        %1700 = vmatpush2.msra.mxu0 0.0
        %1701 = vmatprep.subr.mxu0 0.0
        %1702 = vmatpush2.msra.mxu0 0.0
        %1703 = vmatprep.subr.mxu0 0.0
        %1704 = vmatpush2.msra.mxu0 0.0
        %1705 = vmatprep.subr.mxu0 0.0
        %1706 = vmatpush2.msra.mxu0 0.0
        %1707 = vmatprep.subr.mxu0 0.0
        %1708 = vmatpush2.msra.mxu0 0.0
        %1709 = vmatprep.subr.mxu0 0.0
        %1710 = vmatpush2.msra.mxu0 0.0
        %1711 = vmatprep.subr.mxu0 0.0
        %1712 = vmatpush2.msra.mxu0 0.0
        %1713 = vmatprep.mubr.f32.mxu0 0.0
        %1714 = vmatmul.mubr.f32.gmra.mxu0 %v1150
        %v1715 = vpop.f32.mrf.mxu0
        %v1716 = vadd.f32 %v1146, %v1715
        %v1717 = vpop.f32.mrf.mxu0
        %v1718 = vadd.f32 %v1146, %v1717
        %1719 = vdwg.mxu0
        %v1720 = vmax.f32 %v1219, %v1221
        %v1721 = vmax.f32 %v1720, %v1290
        %v1722 = vmax.f32 %v1721, %v1292
        %v1723 = vmax.f32 %v1722, %v1361
        %v1724 = vmax.f32 %v1723, %v1363
        %v1725 = vmax.f32 %v1724, %v1432
        %v1726 = vmax.f32 %v1725, %v1434
        %v1727 = vmax.f32 %v1726, %v1503
        %v1728 = vmax.f32 %v1727, %v1505
        %v1729 = vmax.f32 %v1728, %v1574
        %v1730 = vmax.f32 %v1729, %v1576
        %v1731 = vmax.f32 %v1730, %v1645
        %v1732 = vmax.f32 %v1731, %v1647
        %v1733 = vmax.f32 %v1732, %v1716
        %v1734 = vmax.f32 %v1733, %v1718
        %v1735 = vlaneseq
        %v1736 = vand.u32 %v1735, 127
        %vm1737 = vcmp.lt.s32.totalorder %v1736, 16
        %v1738 = vsel %vm1737, 1, 0
        %vm1739 = vcmp.eq.s32.totalorder %v1738, 1
        %v1740 = vsel %vm1739, %v1734, 0.0
        %v1741 = vld [vmem:[%s5] sm:$0xff]
        %v1742 = vld [vmem:[%s5 + $0x8] sm:$0xff]
        %v1743 = vld [vmem:[%s5 + $0x10] sm:$0xff]
        %v1744 = vld [vmem:[%s5 + $0x18] sm:$0xff]
        %v1745 = vld [vmem:[%s5 + $0x20] sm:$0xff]
        %v1746 = vld [vmem:[%s5 + $0x28] sm:$0xff]
        %v1747 = vld [vmem:[%s6] sm:$0xff]
        %v1748 = vld [vmem:[%s6 + $0x8] sm:$0xff]
        %1749 = vrot.lane.b32.xlu0 %v1740, 1
        %v1750 = vpop.permute.xlu0 %1749
        %1751 = vrot.lane.b32.xlu0 %v1740, 127
        %v1752 = vpop.permute.xlu0 %1751
        %v1754 = vsel %vm1148, %v1743, 0
        %v1757 = vsel %vm1148, %v1744, 0
        %1759 = vmatprep.subr.mxu0 0.0
        %1760 = vmatpush1.msra.mxu0 0.0
        %1761 = vmatprep.subr.mxu0 0.0
        %1762 = vmatpush1.msra.mxu0 0.0
        %1763 = vmatprep.subr.mxu0 0.0
        %1764 = vmatpush1.msra.mxu0 0.0
        %1765 = vmatprep.subr.mxu0 0.0
        %1766 = vmatpush1.msra.mxu0 0.0
        %1767 = vmatprep.subr.mxu0 0.0
        %1768 = vmatpush1.msra.mxu0 0.0
        %1769 = vmatprep.subr.mxu0 0.0
        %1770 = vmatpush1.msra.mxu0 0.0
        %1771 = vmatprep.subr.mxu0 0.0
        %1772 = vmatpush1.msra.mxu0 0.0
        %1773 = vmatprep.subr.mxu0 0.0
        %1774 = vmatpush1.msra.mxu0 0.0
        %1775 = vmatprep.subr.mxu0 0.0
        %1776 = vmatpush1.msra.mxu0 0.0
        %1777 = vmatprep.subr.mxu0 0.0
        %1778 = vmatpush1.msra.mxu0 0.0
        %1779 = vmatprep.subr.mxu0 0.0
        %1780 = vmatpush1.msra.mxu0 0.0
        %1781 = vmatprep.subr.mxu0 0.0
        %1782 = vmatpush1.msra.mxu0 0.0
        %1783 = vmatprep.subr.mxu0 0.0
        %1784 = vmatpush1.msra.mxu0 0.0
        %1785 = vmatprep.subr.mxu0 0.0
        %1786 = vmatpush1.msra.mxu0 0.0
        %1787 = vmatprep.subr.mxu0 0.0
        %1788 = vmatpush1.msra.mxu0 0.0
        %1789 = vmatprep.subr.mxu0 0.0
        %1790 = vmatpush1.msra.mxu0 %v1740
        %1791 = vmatprep.subr.mxu0 0.0
        %1792 = vmatpush2.msra.mxu0 0.0
        %1793 = vmatprep.subr.mxu0 0.0
        %1794 = vmatpush2.msra.mxu0 0.0
        %1795 = vmatprep.subr.mxu0 0.0
        %1796 = vmatpush2.msra.mxu0 0.0
        %1797 = vmatprep.subr.mxu0 0.0
        %1798 = vmatpush2.msra.mxu0 0.0
        %1799 = vmatprep.subr.mxu0 0.0
        %1800 = vmatpush2.msra.mxu0 0.0
        %1801 = vmatprep.subr.mxu0 0.0
        %1802 = vmatpush2.msra.mxu0 0.0
        %1803 = vmatprep.subr.mxu0 0.0
        %1804 = vmatpush2.msra.mxu0 0.0
        %1805 = vmatprep.subr.mxu0 0.0
        %1806 = vmatpush2.msra.mxu0 0.0
        %1807 = vmatprep.subr.mxu0 0.0
        %1808 = vmatpush2.msra.mxu0 0.0
        %1809 = vmatprep.subr.mxu0 0.0
        %1810 = vmatpush2.msra.mxu0 0.0
        %1811 = vmatprep.subr.mxu0 0.0
        %1812 = vmatpush2.msra.mxu0 0.0
        %1813 = vmatprep.subr.mxu0 0.0
        %1814 = vmatpush2.msra.mxu0 0.0
        %1815 = vmatprep.subr.mxu0 0.0
        %1816 = vmatpush2.msra.mxu0 0.0
        %1817 = vmatprep.subr.mxu0 0.0
        %1818 = vmatpush2.msra.mxu0 0.0
        %1819 = vmatprep.subr.mxu0 0.0
        %1820 = vmatpush2.msra.mxu0 0.0
        %1821 = vmatprep.subr.mxu0 0.0
        %1822 = vmatpush2.msra.mxu0 0.0
        %1823 = vmatprep.mubr.f32.mxu0 0.0
        %1824 = vmatmul.mubr.f32.gmra.mxu0 %v1754
        %v1825 = vpop.f32.mrf.mxu0
        %v1826 = vadd.f32 0.0, %v1825
        %v1827 = vpop.f32.mrf.mxu0
        %1828 = vmatprep.mubr.f32.mxu0 0.0
        %1829 = vmatmul.mubr.f32.gmra.mxu0 %v1757
        %v1830 = vpop.f32.mrf.mxu0
        %v1831 = vadd.f32 0.0, %v1830
        %v1832 = vpop.f32.mrf.mxu0
        %1833 = vdwg.mxu0
        %v1835 = vsel %vm1148, %v1741, 0
        %v1838 = vsel %vm1148, %v1742, 0
        %1840 = vmatprep.subr.mxu0 0.0
        %1841 = vmatpush1.msra.mxu0 0.0
        %1842 = vmatprep.subr.mxu0 0.0
        %1843 = vmatpush1.msra.mxu0 0.0
        %1844 = vmatprep.subr.mxu0 0.0
        %1845 = vmatpush1.msra.mxu0 0.0
        %1846 = vmatprep.subr.mxu0 0.0
        %1847 = vmatpush1.msra.mxu0 0.0
        %1848 = vmatprep.subr.mxu0 0.0
        %1849 = vmatpush1.msra.mxu0 0.0
        %1850 = vmatprep.subr.mxu0 0.0
        %1851 = vmatpush1.msra.mxu0 0.0
        %1852 = vmatprep.subr.mxu0 0.0
        %1853 = vmatpush1.msra.mxu0 0.0
        %1854 = vmatprep.subr.mxu0 0.0
        %1855 = vmatpush1.msra.mxu0 0.0
        %1856 = vmatprep.subr.mxu0 0.0
        %1857 = vmatpush1.msra.mxu0 0.0
        %1858 = vmatprep.subr.mxu0 0.0
        %1859 = vmatpush1.msra.mxu0 0.0
        %1860 = vmatprep.subr.mxu0 0.0
        %1861 = vmatpush1.msra.mxu0 0.0
        %1862 = vmatprep.subr.mxu0 0.0
        %1863 = vmatpush1.msra.mxu0 0.0
        %1864 = vmatprep.subr.mxu0 0.0
        %1865 = vmatpush1.msra.mxu0 0.0
        %1866 = vmatprep.subr.mxu0 0.0
        %1867 = vmatpush1.msra.mxu0 0.0
        %1868 = vmatprep.subr.mxu0 0.0
        %1869 = vmatpush1.msra.mxu0 0.0
        %1870 = vmatprep.subr.mxu0 0.0
        %1871 = vmatpush1.msra.mxu0 %v1750
        %1872 = vmatprep.subr.mxu0 0.0
        %1873 = vmatpush2.msra.mxu0 0.0
        %1874 = vmatprep.subr.mxu0 0.0
        %1875 = vmatpush2.msra.mxu0 0.0
        %1876 = vmatprep.subr.mxu0 0.0
        %1877 = vmatpush2.msra.mxu0 0.0
        %1878 = vmatprep.subr.mxu0 0.0
        %1879 = vmatpush2.msra.mxu0 0.0
        %1880 = vmatprep.subr.mxu0 0.0
        %1881 = vmatpush2.msra.mxu0 0.0
        %1882 = vmatprep.subr.mxu0 0.0
        %1883 = vmatpush2.msra.mxu0 0.0
        %1884 = vmatprep.subr.mxu0 0.0
        %1885 = vmatpush2.msra.mxu0 0.0
        %1886 = vmatprep.subr.mxu0 0.0
        %1887 = vmatpush2.msra.mxu0 0.0
        %1888 = vmatprep.subr.mxu0 0.0
        %1889 = vmatpush2.msra.mxu0 0.0
        %1890 = vmatprep.subr.mxu0 0.0
        %1891 = vmatpush2.msra.mxu0 0.0
        %1892 = vmatprep.subr.mxu0 0.0
        %1893 = vmatpush2.msra.mxu0 0.0
        %1894 = vmatprep.subr.mxu0 0.0
        %1895 = vmatpush2.msra.mxu0 0.0
        %1896 = vmatprep.subr.mxu0 0.0
        %1897 = vmatpush2.msra.mxu0 0.0
        %1898 = vmatprep.subr.mxu0 0.0
        %1899 = vmatpush2.msra.mxu0 0.0
        %1900 = vmatprep.subr.mxu0 0.0
        %1901 = vmatpush2.msra.mxu0 0.0
        %1902 = vmatprep.subr.mxu0 0.0
        %1903 = vmatpush2.msra.mxu0 0.0
        %1904 = vmatprep.mubr.f32.mxu0 0.0
        %1905 = vmatmul.mubr.f32.gmra.mxu0 %v1835
        %v1906 = vpop.f32.mrf.mxu0
        %v1907 = vadd.f32 %v1826, %v1906
        %v1908 = vpop.f32.mrf.mxu0
        %1909 = vmatprep.mubr.f32.mxu0 0.0
        %1910 = vmatmul.mubr.f32.gmra.mxu0 %v1838
        %v1911 = vpop.f32.mrf.mxu0
        %v1912 = vadd.f32 %v1831, %v1911
        %v1913 = vpop.f32.mrf.mxu0
        %1914 = vdwg.mxu0
        %v1916 = vsel %vm1148, %v1745, 0
        %v1919 = vsel %vm1148, %v1746, 0
        %1921 = vmatprep.subr.mxu0 0.0
        %1922 = vmatpush1.msra.mxu0 0.0
        %1923 = vmatprep.subr.mxu0 0.0
        %1924 = vmatpush1.msra.mxu0 0.0
        %1925 = vmatprep.subr.mxu0 0.0
        %1926 = vmatpush1.msra.mxu0 0.0
        %1927 = vmatprep.subr.mxu0 0.0
        %1928 = vmatpush1.msra.mxu0 0.0
        %1929 = vmatprep.subr.mxu0 0.0
        %1930 = vmatpush1.msra.mxu0 0.0
        %1931 = vmatprep.subr.mxu0 0.0
        %1932 = vmatpush1.msra.mxu0 0.0
        %1933 = vmatprep.subr.mxu0 0.0
        %1934 = vmatpush1.msra.mxu0 0.0
        %1935 = vmatprep.subr.mxu0 0.0
        %1936 = vmatpush1.msra.mxu0 0.0
        %1937 = vmatprep.subr.mxu0 0.0
        %1938 = vmatpush1.msra.mxu0 0.0
        %1939 = vmatprep.subr.mxu0 0.0
        %1940 = vmatpush1.msra.mxu0 0.0
        %1941 = vmatprep.subr.mxu0 0.0
        %1942 = vmatpush1.msra.mxu0 0.0
        %1943 = vmatprep.subr.mxu0 0.0
        %1944 = vmatpush1.msra.mxu0 0.0
        %1945 = vmatprep.subr.mxu0 0.0
        %1946 = vmatpush1.msra.mxu0 0.0
        %1947 = vmatprep.subr.mxu0 0.0
        %1948 = vmatpush1.msra.mxu0 0.0
        %1949 = vmatprep.subr.mxu0 0.0
        %1950 = vmatpush1.msra.mxu0 0.0
        %1951 = vmatprep.subr.mxu0 0.0
        %1952 = vmatpush1.msra.mxu0 %v1752
        %1953 = vmatprep.subr.mxu0 0.0
        %1954 = vmatpush2.msra.mxu0 0.0
        %1955 = vmatprep.subr.mxu0 0.0
        %1956 = vmatpush2.msra.mxu0 0.0
        %1957 = vmatprep.subr.mxu0 0.0
        %1958 = vmatpush2.msra.mxu0 0.0
        %1959 = vmatprep.subr.mxu0 0.0
        %1960 = vmatpush2.msra.mxu0 0.0
        %1961 = vmatprep.subr.mxu0 0.0
        %1962 = vmatpush2.msra.mxu0 0.0
        %1963 = vmatprep.subr.mxu0 0.0
        %1964 = vmatpush2.msra.mxu0 0.0
        %1965 = vmatprep.subr.mxu0 0.0
        %1966 = vmatpush2.msra.mxu0 0.0
        %1967 = vmatprep.subr.mxu0 0.0
        %1968 = vmatpush2.msra.mxu0 0.0
        %1969 = vmatprep.subr.mxu0 0.0
        %1970 = vmatpush2.msra.mxu0 0.0
        %1971 = vmatprep.subr.mxu0 0.0
        %1972 = vmatpush2.msra.mxu0 0.0
        %1973 = vmatprep.subr.mxu0 0.0
        %1974 = vmatpush2.msra.mxu0 0.0
        %1975 = vmatprep.subr.mxu0 0.0
        %1976 = vmatpush2.msra.mxu0 0.0
        %1977 = vmatprep.subr.mxu0 0.0
        %1978 = vmatpush2.msra.mxu0 0.0
        %1979 = vmatprep.subr.mxu0 0.0
        %1980 = vmatpush2.msra.mxu0 0.0
        %1981 = vmatprep.subr.mxu0 0.0
        %1982 = vmatpush2.msra.mxu0 0.0
        %1983 = vmatprep.subr.mxu0 0.0
        %1984 = vmatpush2.msra.mxu0 0.0
        %1985 = vmatprep.mubr.f32.mxu0 0.0
        %1986 = vmatmul.mubr.f32.gmra.mxu0 %v1916
        %v1987 = vpop.f32.mrf.mxu0
        %v1988 = vadd.f32 0.0, %v1987
        %v1989 = vpop.f32.mrf.mxu0
        %1990 = vmatprep.mubr.f32.mxu0 0.0
        %1991 = vmatmul.mubr.f32.gmra.mxu0 %v1919
        %v1992 = vpop.f32.mrf.mxu0
        %v1993 = vadd.f32 0.0, %v1992
        %v1994 = vpop.f32.mrf.mxu0
        %1995 = vdwg.mxu0
        %v1996 = vadd.f32 %v1907, %v1988
        %v1997 = vadd.f32 %v1912, %v1993
        %1999 = vset.pattern.permute.xlu0 0
        %2000 = vperm.xlu0 %1999, %v1747
        %v2001 = vpop.permute.xlu0 %2000
        %2004 = vset.pattern.permute.xlu0 0
        %2005 = vperm.xlu0 %2004, %v1748
        %v2006 = vpop.permute.xlu0 %2005
        %v2008 = vadd.f32 %v1996, %v2001
        %v2009 = vadd.f32 %v1997, %v2006
        %v2010 = vmax.f32 %v2008, 0.0
        %v2011 = vmax.f32 %v2009, 0.0
        %v2012 = vsel %vm1739, %v2010, 0.0
        %v2013 = vsel %vm1739, %v2011, 0.0
        %v2014 = vld [vmem:[%s7] sm:$0xff]
        %v2015 = vld [vmem:[%s7 + $0x8] sm:$0xff]
        %v2016 = vld [vmem:[%s7 + $0x10] sm:$0xff]
        %v2017 = vld [vmem:[%s7 + $0x18] sm:$0xff]
        %v2018 = vld [vmem:[%s7 + $0x20] sm:$0xff]
        %v2019 = vld [vmem:[%s7 + $0x28] sm:$0xff]
        %v2020 = vld [vmem:[%s8] sm:$0xff]
        %v2021 = vld [vmem:[%s8 + $0x8] sm:$0xff]
        %2022 = vrot.lane.b32.xlu0 %v2012, 1
        %v2023 = vpop.permute.xlu0 %2022
        %2024 = vrot.lane.b32.xlu0 %v2013, 1
        %v2025 = vpop.permute.xlu0 %2024
        %2026 = vrot.lane.b32.xlu0 %v2012, 127
        %v2027 = vpop.permute.xlu0 %2026
        %2028 = vrot.lane.b32.xlu0 %v2013, 127
        %v2029 = vpop.permute.xlu0 %2028
        %vm2030 = vcmask 130048
        %v2032 = vsel %vm2030, %v2016, 0
        %v2035 = vsel %vm2030, %v2017, 0
        %2037 = vmatprep.subr.mxu0 0.0
        %2038 = vmatpush1.msra.mxu0 0.0
        %2039 = vmatprep.subr.mxu0 0.0
        %2040 = vmatpush1.msra.mxu0 0.0
        %2041 = vmatprep.subr.mxu0 0.0
        %2042 = vmatpush1.msra.mxu0 0.0
        %2043 = vmatprep.subr.mxu0 0.0
        %2044 = vmatpush1.msra.mxu0 0.0
        %2045 = vmatprep.subr.mxu0 0.0
        %2046 = vmatpush1.msra.mxu0 0.0
        %2047 = vmatprep.subr.mxu0 0.0
        %2048 = vmatpush1.msra.mxu0 0.0
        %2049 = vmatprep.subr.mxu0 0.0
        %2050 = vmatpush1.msra.mxu0 0.0
        %2051 = vmatprep.subr.mxu0 0.0
        %2052 = vmatpush1.msra.mxu0 0.0
        %2053 = vmatprep.subr.mxu0 0.0
        %2054 = vmatpush1.msra.mxu0 0.0
        %2055 = vmatprep.subr.mxu0 0.0
        %2056 = vmatpush1.msra.mxu0 0.0
        %2057 = vmatprep.subr.mxu0 0.0
        %2058 = vmatpush1.msra.mxu0 0.0
        %2059 = vmatprep.subr.mxu0 0.0
        %2060 = vmatpush1.msra.mxu0 0.0
        %2061 = vmatprep.subr.mxu0 0.0
        %2062 = vmatpush1.msra.mxu0 0.0
        %2063 = vmatprep.subr.mxu0 0.0
        %2064 = vmatpush1.msra.mxu0 0.0
        %2065 = vmatprep.subr.mxu0 0.0
        %2066 = vmatpush1.msra.mxu0 %v2013
        %2067 = vmatprep.subr.mxu0 0.0
        %2068 = vmatpush1.msra.mxu0 %v2012
        %2069 = vmatprep.subr.mxu0 0.0
        %2070 = vmatpush2.msra.mxu0 0.0
        %2071 = vmatprep.subr.mxu0 0.0
        %2072 = vmatpush2.msra.mxu0 0.0
        %2073 = vmatprep.subr.mxu0 0.0
        %2074 = vmatpush2.msra.mxu0 0.0
        %2075 = vmatprep.subr.mxu0 0.0
        %2076 = vmatpush2.msra.mxu0 0.0
        %2077 = vmatprep.subr.mxu0 0.0
        %2078 = vmatpush2.msra.mxu0 0.0
        %2079 = vmatprep.subr.mxu0 0.0
        %2080 = vmatpush2.msra.mxu0 0.0
        %2081 = vmatprep.subr.mxu0 0.0
        %2082 = vmatpush2.msra.mxu0 0.0
        %2083 = vmatprep.subr.mxu0 0.0
        %2084 = vmatpush2.msra.mxu0 0.0
        %2085 = vmatprep.subr.mxu0 0.0
        %2086 = vmatpush2.msra.mxu0 0.0
        %2087 = vmatprep.subr.mxu0 0.0
        %2088 = vmatpush2.msra.mxu0 0.0
        %2089 = vmatprep.subr.mxu0 0.0
        %2090 = vmatpush2.msra.mxu0 0.0
        %2091 = vmatprep.subr.mxu0 0.0
        %2092 = vmatpush2.msra.mxu0 0.0
        %2093 = vmatprep.subr.mxu0 0.0
        %2094 = vmatpush2.msra.mxu0 0.0
        %2095 = vmatprep.subr.mxu0 0.0
        %2096 = vmatpush2.msra.mxu0 0.0
        %2097 = vmatprep.subr.mxu0 0.0
        %2098 = vmatpush2.msra.mxu0 0.0
        %2099 = vmatprep.subr.mxu0 0.0
        %2100 = vmatpush2.msra.mxu0 0.0
        %2101 = vmatprep.mubr.f32.mxu0 0.0
        %2102 = vmatmul.mubr.f32.gmra.mxu0 %v2032
        %v2103 = vpop.f32.mrf.mxu0
        %v2104 = vadd.f32 0.0, %v2103
        %v2105 = vpop.f32.mrf.mxu0
        %2106 = vmatprep.mubr.f32.mxu0 0.0
        %2107 = vmatmul.mubr.f32.gmra.mxu0 %v2035
        %v2108 = vpop.f32.mrf.mxu0
        %v2109 = vadd.f32 0.0, %v2108
        %v2110 = vpop.f32.mrf.mxu0
        %2111 = vdwg.mxu0
        %v2113 = vsel %vm2030, %v2014, 0
        %v2116 = vsel %vm2030, %v2015, 0
        %2118 = vmatprep.subr.mxu0 0.0
        %2119 = vmatpush1.msra.mxu0 0.0
        %2120 = vmatprep.subr.mxu0 0.0
        %2121 = vmatpush1.msra.mxu0 0.0
        %2122 = vmatprep.subr.mxu0 0.0
        %2123 = vmatpush1.msra.mxu0 0.0
        %2124 = vmatprep.subr.mxu0 0.0
        %2125 = vmatpush1.msra.mxu0 0.0
        %2126 = vmatprep.subr.mxu0 0.0
        %2127 = vmatpush1.msra.mxu0 0.0
        %2128 = vmatprep.subr.mxu0 0.0
        %2129 = vmatpush1.msra.mxu0 0.0
        %2130 = vmatprep.subr.mxu0 0.0
        %2131 = vmatpush1.msra.mxu0 0.0
        %2132 = vmatprep.subr.mxu0 0.0
        %2133 = vmatpush1.msra.mxu0 0.0
        %2134 = vmatprep.subr.mxu0 0.0
        %2135 = vmatpush1.msra.mxu0 0.0
        %2136 = vmatprep.subr.mxu0 0.0
        %2137 = vmatpush1.msra.mxu0 0.0
        %2138 = vmatprep.subr.mxu0 0.0
        %2139 = vmatpush1.msra.mxu0 0.0
        %2140 = vmatprep.subr.mxu0 0.0
        %2141 = vmatpush1.msra.mxu0 0.0
        %2142 = vmatprep.subr.mxu0 0.0
        %2143 = vmatpush1.msra.mxu0 0.0
        %2144 = vmatprep.subr.mxu0 0.0
        %2145 = vmatpush1.msra.mxu0 0.0
        %2146 = vmatprep.subr.mxu0 0.0
        %2147 = vmatpush1.msra.mxu0 %v2025
        %2148 = vmatprep.subr.mxu0 0.0
        %2149 = vmatpush1.msra.mxu0 %v2023
        %2150 = vmatprep.subr.mxu0 0.0
        %2151 = vmatpush2.msra.mxu0 0.0
        %2152 = vmatprep.subr.mxu0 0.0
        %2153 = vmatpush2.msra.mxu0 0.0
        %2154 = vmatprep.subr.mxu0 0.0
        %2155 = vmatpush2.msra.mxu0 0.0
        %2156 = vmatprep.subr.mxu0 0.0
        %2157 = vmatpush2.msra.mxu0 0.0
        %2158 = vmatprep.subr.mxu0 0.0
        %2159 = vmatpush2.msra.mxu0 0.0
        %2160 = vmatprep.subr.mxu0 0.0
        %2161 = vmatpush2.msra.mxu0 0.0
        %2162 = vmatprep.subr.mxu0 0.0
        %2163 = vmatpush2.msra.mxu0 0.0
        %2164 = vmatprep.subr.mxu0 0.0
        %2165 = vmatpush2.msra.mxu0 0.0
        %2166 = vmatprep.subr.mxu0 0.0
        %2167 = vmatpush2.msra.mxu0 0.0
        %2168 = vmatprep.subr.mxu0 0.0
        %2169 = vmatpush2.msra.mxu0 0.0
        %2170 = vmatprep.subr.mxu0 0.0
        %2171 = vmatpush2.msra.mxu0 0.0
        %2172 = vmatprep.subr.mxu0 0.0
        %2173 = vmatpush2.msra.mxu0 0.0
        %2174 = vmatprep.subr.mxu0 0.0
        %2175 = vmatpush2.msra.mxu0 0.0
        %2176 = vmatprep.subr.mxu0 0.0
        %2177 = vmatpush2.msra.mxu0 0.0
        %2178 = vmatprep.subr.mxu0 0.0
        %2179 = vmatpush2.msra.mxu0 0.0
        %2180 = vmatprep.subr.mxu0 0.0
        %2181 = vmatpush2.msra.mxu0 0.0
        %2182 = vmatprep.mubr.f32.mxu0 0.0
        %2183 = vmatmul.mubr.f32.gmra.mxu0 %v2113
        %v2184 = vpop.f32.mrf.mxu0
        %v2185 = vadd.f32 %v2104, %v2184
        %v2186 = vpop.f32.mrf.mxu0
        %2187 = vmatprep.mubr.f32.mxu0 0.0
        %2188 = vmatmul.mubr.f32.gmra.mxu0 %v2116
        %v2189 = vpop.f32.mrf.mxu0
        %v2190 = vadd.f32 %v2109, %v2189
        %v2191 = vpop.f32.mrf.mxu0
        %2192 = vdwg.mxu0
        %v2194 = vsel %vm2030, %v2018, 0
        %v2197 = vsel %vm2030, %v2019, 0
        %2199 = vmatprep.subr.mxu0 0.0
        %2200 = vmatpush1.msra.mxu0 0.0
        %2201 = vmatprep.subr.mxu0 0.0
        %2202 = vmatpush1.msra.mxu0 0.0
        %2203 = vmatprep.subr.mxu0 0.0
        %2204 = vmatpush1.msra.mxu0 0.0
        %2205 = vmatprep.subr.mxu0 0.0
        %2206 = vmatpush1.msra.mxu0 0.0
        %2207 = vmatprep.subr.mxu0 0.0
        %2208 = vmatpush1.msra.mxu0 0.0
        %2209 = vmatprep.subr.mxu0 0.0
        %2210 = vmatpush1.msra.mxu0 0.0
        %2211 = vmatprep.subr.mxu0 0.0
        %2212 = vmatpush1.msra.mxu0 0.0
        %2213 = vmatprep.subr.mxu0 0.0
        %2214 = vmatpush1.msra.mxu0 0.0
        %2215 = vmatprep.subr.mxu0 0.0
        %2216 = vmatpush1.msra.mxu0 0.0
        %2217 = vmatprep.subr.mxu0 0.0
        %2218 = vmatpush1.msra.mxu0 0.0
        %2219 = vmatprep.subr.mxu0 0.0
        %2220 = vmatpush1.msra.mxu0 0.0
        %2221 = vmatprep.subr.mxu0 0.0
        %2222 = vmatpush1.msra.mxu0 0.0
        %2223 = vmatprep.subr.mxu0 0.0
        %2224 = vmatpush1.msra.mxu0 0.0
        %2225 = vmatprep.subr.mxu0 0.0
        %2226 = vmatpush1.msra.mxu0 0.0
        %2227 = vmatprep.subr.mxu0 0.0
        %2228 = vmatpush1.msra.mxu0 %v2029
        %2229 = vmatprep.subr.mxu0 0.0
        %2230 = vmatpush1.msra.mxu0 %v2027
        %2231 = vmatprep.subr.mxu0 0.0
        %2232 = vmatpush2.msra.mxu0 0.0
        %2233 = vmatprep.subr.mxu0 0.0
        %2234 = vmatpush2.msra.mxu0 0.0
        %2235 = vmatprep.subr.mxu0 0.0
        %2236 = vmatpush2.msra.mxu0 0.0
        %2237 = vmatprep.subr.mxu0 0.0
        %2238 = vmatpush2.msra.mxu0 0.0
        %2239 = vmatprep.subr.mxu0 0.0
        %2240 = vmatpush2.msra.mxu0 0.0
        %2241 = vmatprep.subr.mxu0 0.0
        %2242 = vmatpush2.msra.mxu0 0.0
        %2243 = vmatprep.subr.mxu0 0.0
        %2244 = vmatpush2.msra.mxu0 0.0
        %2245 = vmatprep.subr.mxu0 0.0
        %2246 = vmatpush2.msra.mxu0 0.0
        %2247 = vmatprep.subr.mxu0 0.0
        %2248 = vmatpush2.msra.mxu0 0.0
        %2249 = vmatprep.subr.mxu0 0.0
        %2250 = vmatpush2.msra.mxu0 0.0
        %2251 = vmatprep.subr.mxu0 0.0
        %2252 = vmatpush2.msra.mxu0 0.0
        %2253 = vmatprep.subr.mxu0 0.0
        %2254 = vmatpush2.msra.mxu0 0.0
        %2255 = vmatprep.subr.mxu0 0.0
        %2256 = vmatpush2.msra.mxu0 0.0
        %2257 = vmatprep.subr.mxu0 0.0
        %2258 = vmatpush2.msra.mxu0 0.0
        %2259 = vmatprep.subr.mxu0 0.0
        %2260 = vmatpush2.msra.mxu0 0.0
        %2261 = vmatprep.subr.mxu0 0.0
        %2262 = vmatpush2.msra.mxu0 0.0
        %2263 = vmatprep.mubr.f32.mxu0 0.0
        %2264 = vmatmul.mubr.f32.gmra.mxu0 %v2194
        %v2265 = vpop.f32.mrf.mxu0
        %v2266 = vadd.f32 0.0, %v2265
        %v2267 = vpop.f32.mrf.mxu0
        %2268 = vmatprep.mubr.f32.mxu0 0.0
        %2269 = vmatmul.mubr.f32.gmra.mxu0 %v2197
        %v2270 = vpop.f32.mrf.mxu0
        %v2271 = vadd.f32 0.0, %v2270
        %v2272 = vpop.f32.mrf.mxu0
        %2273 = vdwg.mxu0
        %v2274 = vadd.f32 %v2185, %v2266
        %v2275 = vadd.f32 %v2190, %v2271
        %2277 = vset.pattern.permute.xlu0 0
        %2278 = vperm.xlu0 %2277, %v2020
        %v2279 = vpop.permute.xlu0 %2278
        %2282 = vset.pattern.permute.xlu0 0
        %2283 = vperm.xlu0 %2282, %v2021
        %v2284 = vpop.permute.xlu0 %2283
        %v2286 = vadd.f32 %v2274, %v2279
        %v2287 = vadd.f32 %v2275, %v2284
        %v2288 = vmax.f32 %v2286, 0.0
        %v2289 = vmax.f32 %v2287, 0.0
        %v2290 = vsel %vm1739, %v2288, 0.0
        %v2291 = vsel %vm1739, %v2289, 0.0
        %s2292 = scalar_lea.vmem %s7, 48
        %v2293 = vld [vmem:[%s2292] sm:$0xff]
        %v2294 = vld [vmem:[%s2292 + $0x8] sm:$0xff]
        %v2295 = vld [vmem:[%s2292 + $0x10] sm:$0xff]
        %v2296 = vld [vmem:[%s2292 + $0x18] sm:$0xff]
        %v2297 = vld [vmem:[%s2292 + $0x20] sm:$0xff]
        %v2298 = vld [vmem:[%s2292 + $0x28] sm:$0xff]
        %s2299 = scalar_lea.vmem %s8, 16
        %v2300 = vld [vmem:[%s2299] sm:$0xff]
        %v2301 = vld [vmem:[%s2299 + $0x8] sm:$0xff]
        %2302 = vrot.lane.b32.xlu0 %v2290, 1
        %v2303 = vpop.permute.xlu0 %2302
        %2304 = vrot.lane.b32.xlu0 %v2291, 1
        %v2305 = vpop.permute.xlu0 %2304
        %2306 = vrot.lane.b32.xlu0 %v2290, 127
        %v2307 = vpop.permute.xlu0 %2306
        %2308 = vrot.lane.b32.xlu0 %v2291, 127
        %v2309 = vpop.permute.xlu0 %2308
        %v2311 = vsel %vm2030, %v2295, 0
        %v2314 = vsel %vm2030, %v2296, 0
        %2316 = vmatprep.subr.mxu0 0.0
        %2317 = vmatpush1.msra.mxu0 0.0
        %2318 = vmatprep.subr.mxu0 0.0
        %2319 = vmatpush1.msra.mxu0 0.0
        %2320 = vmatprep.subr.mxu0 0.0
        %2321 = vmatpush1.msra.mxu0 0.0
        %2322 = vmatprep.subr.mxu0 0.0
        %2323 = vmatpush1.msra.mxu0 0.0
        %2324 = vmatprep.subr.mxu0 0.0
        %2325 = vmatpush1.msra.mxu0 0.0
        %2326 = vmatprep.subr.mxu0 0.0
        %2327 = vmatpush1.msra.mxu0 0.0
        %2328 = vmatprep.subr.mxu0 0.0
        %2329 = vmatpush1.msra.mxu0 0.0
        %2330 = vmatprep.subr.mxu0 0.0
        %2331 = vmatpush1.msra.mxu0 0.0
        %2332 = vmatprep.subr.mxu0 0.0
        %2333 = vmatpush1.msra.mxu0 0.0
        %2334 = vmatprep.subr.mxu0 0.0
        %2335 = vmatpush1.msra.mxu0 0.0
        %2336 = vmatprep.subr.mxu0 0.0
        %2337 = vmatpush1.msra.mxu0 0.0
        %2338 = vmatprep.subr.mxu0 0.0
        %2339 = vmatpush1.msra.mxu0 0.0
        %2340 = vmatprep.subr.mxu0 0.0
        %2341 = vmatpush1.msra.mxu0 0.0
        %2342 = vmatprep.subr.mxu0 0.0
        %2343 = vmatpush1.msra.mxu0 0.0
        %2344 = vmatprep.subr.mxu0 0.0
        %2345 = vmatpush1.msra.mxu0 %v2291
        %2346 = vmatprep.subr.mxu0 0.0
        %2347 = vmatpush1.msra.mxu0 %v2290
        %2348 = vmatprep.subr.mxu0 0.0
        %2349 = vmatpush2.msra.mxu0 0.0
        %2350 = vmatprep.subr.mxu0 0.0
        %2351 = vmatpush2.msra.mxu0 0.0
        %2352 = vmatprep.subr.mxu0 0.0
        %2353 = vmatpush2.msra.mxu0 0.0
        %2354 = vmatprep.subr.mxu0 0.0
        %2355 = vmatpush2.msra.mxu0 0.0
        %2356 = vmatprep.subr.mxu0 0.0
        %2357 = vmatpush2.msra.mxu0 0.0
        %2358 = vmatprep.subr.mxu0 0.0
        %2359 = vmatpush2.msra.mxu0 0.0
        %2360 = vmatprep.subr.mxu0 0.0
        %2361 = vmatpush2.msra.mxu0 0.0
        %2362 = vmatprep.subr.mxu0 0.0
        %2363 = vmatpush2.msra.mxu0 0.0
        %2364 = vmatprep.subr.mxu0 0.0
        %2365 = vmatpush2.msra.mxu0 0.0
        %2366 = vmatprep.subr.mxu0 0.0
        %2367 = vmatpush2.msra.mxu0 0.0
        %2368 = vmatprep.subr.mxu0 0.0
        %2369 = vmatpush2.msra.mxu0 0.0
        %2370 = vmatprep.subr.mxu0 0.0
        %2371 = vmatpush2.msra.mxu0 0.0
        %2372 = vmatprep.subr.mxu0 0.0
        %2373 = vmatpush2.msra.mxu0 0.0
        %2374 = vmatprep.subr.mxu0 0.0
        %2375 = vmatpush2.msra.mxu0 0.0
        %2376 = vmatprep.subr.mxu0 0.0
        %2377 = vmatpush2.msra.mxu0 0.0
        %2378 = vmatprep.subr.mxu0 0.0
        %2379 = vmatpush2.msra.mxu0 0.0
        %2380 = vmatprep.mubr.f32.mxu0 0.0
        %2381 = vmatmul.mubr.f32.gmra.mxu0 %v2311
        %v2382 = vpop.f32.mrf.mxu0
        %v2383 = vadd.f32 0.0, %v2382
        %v2384 = vpop.f32.mrf.mxu0
        %2385 = vmatprep.mubr.f32.mxu0 0.0
        %2386 = vmatmul.mubr.f32.gmra.mxu0 %v2314
        %v2387 = vpop.f32.mrf.mxu0
        %v2388 = vadd.f32 0.0, %v2387
        %v2389 = vpop.f32.mrf.mxu0
        %2390 = vdwg.mxu0
        %v2392 = vsel %vm2030, %v2293, 0
        %v2395 = vsel %vm2030, %v2294, 0
        %2397 = vmatprep.subr.mxu0 0.0
        %2398 = vmatpush1.msra.mxu0 0.0
        %2399 = vmatprep.subr.mxu0 0.0
        %2400 = vmatpush1.msra.mxu0 0.0
        %2401 = vmatprep.subr.mxu0 0.0
        %2402 = vmatpush1.msra.mxu0 0.0
        %2403 = vmatprep.subr.mxu0 0.0
        %2404 = vmatpush1.msra.mxu0 0.0
        %2405 = vmatprep.subr.mxu0 0.0
        %2406 = vmatpush1.msra.mxu0 0.0
        %2407 = vmatprep.subr.mxu0 0.0
        %2408 = vmatpush1.msra.mxu0 0.0
        %2409 = vmatprep.subr.mxu0 0.0
        %2410 = vmatpush1.msra.mxu0 0.0
        %2411 = vmatprep.subr.mxu0 0.0
        %2412 = vmatpush1.msra.mxu0 0.0
        %2413 = vmatprep.subr.mxu0 0.0
        %2414 = vmatpush1.msra.mxu0 0.0
        %2415 = vmatprep.subr.mxu0 0.0
        %2416 = vmatpush1.msra.mxu0 0.0
        %2417 = vmatprep.subr.mxu0 0.0
        %2418 = vmatpush1.msra.mxu0 0.0
        %2419 = vmatprep.subr.mxu0 0.0
        %2420 = vmatpush1.msra.mxu0 0.0
        %2421 = vmatprep.subr.mxu0 0.0
        %2422 = vmatpush1.msra.mxu0 0.0
        %2423 = vmatprep.subr.mxu0 0.0
        %2424 = vmatpush1.msra.mxu0 0.0
        %2425 = vmatprep.subr.mxu0 0.0
        %2426 = vmatpush1.msra.mxu0 %v2305
        %2427 = vmatprep.subr.mxu0 0.0
        %2428 = vmatpush1.msra.mxu0 %v2303
        %2429 = vmatprep.subr.mxu0 0.0
        %2430 = vmatpush2.msra.mxu0 0.0
        %2431 = vmatprep.subr.mxu0 0.0
        %2432 = vmatpush2.msra.mxu0 0.0
        %2433 = vmatprep.subr.mxu0 0.0
        %2434 = vmatpush2.msra.mxu0 0.0
        %2435 = vmatprep.subr.mxu0 0.0
        %2436 = vmatpush2.msra.mxu0 0.0
        %2437 = vmatprep.subr.mxu0 0.0
        %2438 = vmatpush2.msra.mxu0 0.0
        %2439 = vmatprep.subr.mxu0 0.0
        %2440 = vmatpush2.msra.mxu0 0.0
        %2441 = vmatprep.subr.mxu0 0.0
        %2442 = vmatpush2.msra.mxu0 0.0
        %2443 = vmatprep.subr.mxu0 0.0
        %2444 = vmatpush2.msra.mxu0 0.0
        %2445 = vmatprep.subr.mxu0 0.0
        %2446 = vmatpush2.msra.mxu0 0.0
        %2447 = vmatprep.subr.mxu0 0.0
        %2448 = vmatpush2.msra.mxu0 0.0
        %2449 = vmatprep.subr.mxu0 0.0
        %2450 = vmatpush2.msra.mxu0 0.0
        %2451 = vmatprep.subr.mxu0 0.0
        %2452 = vmatpush2.msra.mxu0 0.0
        %2453 = vmatprep.subr.mxu0 0.0
        %2454 = vmatpush2.msra.mxu0 0.0
        %2455 = vmatprep.subr.mxu0 0.0
        %2456 = vmatpush2.msra.mxu0 0.0
        %2457 = vmatprep.subr.mxu0 0.0
        %2458 = vmatpush2.msra.mxu0 0.0
        %2459 = vmatprep.subr.mxu0 0.0
        %2460 = vmatpush2.msra.mxu0 0.0
        %2461 = vmatprep.mubr.f32.mxu0 0.0
        %2462 = vmatmul.mubr.f32.gmra.mxu0 %v2392
        %v2463 = vpop.f32.mrf.mxu0
        %v2464 = vadd.f32 %v2383, %v2463
        %v2465 = vpop.f32.mrf.mxu0
        %2466 = vmatprep.mubr.f32.mxu0 0.0
        %2467 = vmatmul.mubr.f32.gmra.mxu0 %v2395
        %v2468 = vpop.f32.mrf.mxu0
        %v2469 = vadd.f32 %v2388, %v2468
        %v2470 = vpop.f32.mrf.mxu0
        %2471 = vdwg.mxu0
        %v2473 = vsel %vm2030, %v2297, 0
        %v2476 = vsel %vm2030, %v2298, 0
        %2478 = vmatprep.subr.mxu0 0.0
        %2479 = vmatpush1.msra.mxu0 0.0
        %2480 = vmatprep.subr.mxu0 0.0
        %2481 = vmatpush1.msra.mxu0 0.0
        %2482 = vmatprep.subr.mxu0 0.0
        %2483 = vmatpush1.msra.mxu0 0.0
        %2484 = vmatprep.subr.mxu0 0.0
        %2485 = vmatpush1.msra.mxu0 0.0
        %2486 = vmatprep.subr.mxu0 0.0
        %2487 = vmatpush1.msra.mxu0 0.0
        %2488 = vmatprep.subr.mxu0 0.0
        %2489 = vmatpush1.msra.mxu0 0.0
        %2490 = vmatprep.subr.mxu0 0.0
        %2491 = vmatpush1.msra.mxu0 0.0
        %2492 = vmatprep.subr.mxu0 0.0
        %2493 = vmatpush1.msra.mxu0 0.0
        %2494 = vmatprep.subr.mxu0 0.0
        %2495 = vmatpush1.msra.mxu0 0.0
        %2496 = vmatprep.subr.mxu0 0.0
        %2497 = vmatpush1.msra.mxu0 0.0
        %2498 = vmatprep.subr.mxu0 0.0
        %2499 = vmatpush1.msra.mxu0 0.0
        %2500 = vmatprep.subr.mxu0 0.0
        %2501 = vmatpush1.msra.mxu0 0.0
        %2502 = vmatprep.subr.mxu0 0.0
        %2503 = vmatpush1.msra.mxu0 0.0
        %2504 = vmatprep.subr.mxu0 0.0
        %2505 = vmatpush1.msra.mxu0 0.0
        %2506 = vmatprep.subr.mxu0 0.0
        %2507 = vmatpush1.msra.mxu0 %v2309
        %2508 = vmatprep.subr.mxu0 0.0
        %2509 = vmatpush1.msra.mxu0 %v2307
        %2510 = vmatprep.subr.mxu0 0.0
        %2511 = vmatpush2.msra.mxu0 0.0
        %2512 = vmatprep.subr.mxu0 0.0
        %2513 = vmatpush2.msra.mxu0 0.0
        %2514 = vmatprep.subr.mxu0 0.0
        %2515 = vmatpush2.msra.mxu0 0.0
        %2516 = vmatprep.subr.mxu0 0.0
        %2517 = vmatpush2.msra.mxu0 0.0
        %2518 = vmatprep.subr.mxu0 0.0
        %2519 = vmatpush2.msra.mxu0 0.0
        %2520 = vmatprep.subr.mxu0 0.0
        %2521 = vmatpush2.msra.mxu0 0.0
        %2522 = vmatprep.subr.mxu0 0.0
        %2523 = vmatpush2.msra.mxu0 0.0
        %2524 = vmatprep.subr.mxu0 0.0
        %2525 = vmatpush2.msra.mxu0 0.0
        %2526 = vmatprep.subr.mxu0 0.0
        %2527 = vmatpush2.msra.mxu0 0.0
        %2528 = vmatprep.subr.mxu0 0.0
        %2529 = vmatpush2.msra.mxu0 0.0
        %2530 = vmatprep.subr.mxu0 0.0
        %2531 = vmatpush2.msra.mxu0 0.0
        %2532 = vmatprep.subr.mxu0 0.0
        %2533 = vmatpush2.msra.mxu0 0.0
        %2534 = vmatprep.subr.mxu0 0.0
        %2535 = vmatpush2.msra.mxu0 0.0
        %2536 = vmatprep.subr.mxu0 0.0
        %2537 = vmatpush2.msra.mxu0 0.0
        %2538 = vmatprep.subr.mxu0 0.0
        %2539 = vmatpush2.msra.mxu0 0.0
        %2540 = vmatprep.subr.mxu0 0.0
        %2541 = vmatpush2.msra.mxu0 0.0
        %2542 = vmatprep.mubr.f32.mxu0 0.0
        %2543 = vmatmul.mubr.f32.gmra.mxu0 %v2473
        %v2544 = vpop.f32.mrf.mxu0
        %v2545 = vadd.f32 0.0, %v2544
        %v2546 = vpop.f32.mrf.mxu0
        %2547 = vmatprep.mubr.f32.mxu0 0.0
        %2548 = vmatmul.mubr.f32.gmra.mxu0 %v2476
        %v2549 = vpop.f32.mrf.mxu0
        %v2550 = vadd.f32 0.0, %v2549
        %v2551 = vpop.f32.mrf.mxu0
        %2552 = vdwg.mxu0
        %v2553 = vadd.f32 %v2464, %v2545
        %v2554 = vadd.f32 %v2469, %v2550
        %2556 = vset.pattern.permute.xlu0 0
        %2557 = vperm.xlu0 %2556, %v2300
        %v2558 = vpop.permute.xlu0 %2557
        %2561 = vset.pattern.permute.xlu0 0
        %2562 = vperm.xlu0 %2561, %v2301
        %v2563 = vpop.permute.xlu0 %2562
        %v2565 = vadd.f32 %v2553, %v2558
        %v2566 = vadd.f32 %v2554, %v2563
        %v2567 = vmax.f32 %v2565, 0.0
        %v2568 = vmax.f32 %v2566, 0.0
        %v2569 = vsel %vm1739, %v2567, 0.0
        %v2570 = vsel %vm1739, %v2568, 0.0
        %v2571 = vadd.f32 %v2569, %v2012
        %v2572 = vadd.f32 %v2570, %v2013
        %s2573 = scalar_lea.vmem %s7, 96
        %v2574 = vld [vmem:[%s2573] sm:$0xff]
        %v2575 = vld [vmem:[%s2573 + $0x8] sm:$0xff]
        %v2576 = vld [vmem:[%s2573 + $0x10] sm:$0xff]
        %v2577 = vld [vmem:[%s2573 + $0x18] sm:$0xff]
        %v2578 = vld [vmem:[%s2573 + $0x20] sm:$0xff]
        %v2579 = vld [vmem:[%s2573 + $0x28] sm:$0xff]
        %s2580 = scalar_lea.vmem %s8, 32
        %v2581 = vld [vmem:[%s2580] sm:$0xff]
        %v2582 = vld [vmem:[%s2580 + $0x8] sm:$0xff]
        %2583 = vrot.lane.b32.xlu0 %v2571, 1
        %v2584 = vpop.permute.xlu0 %2583
        %2585 = vrot.lane.b32.xlu0 %v2572, 1
        %v2586 = vpop.permute.xlu0 %2585
        %2587 = vrot.lane.b32.xlu0 %v2571, 127
        %v2588 = vpop.permute.xlu0 %2587
        %2589 = vrot.lane.b32.xlu0 %v2572, 127
        %v2590 = vpop.permute.xlu0 %2589
        %v2592 = vsel %vm2030, %v2576, 0
        %v2595 = vsel %vm2030, %v2577, 0
        %2597 = vmatprep.subr.mxu0 0.0
        %2598 = vmatpush1.msra.mxu0 0.0
        %2599 = vmatprep.subr.mxu0 0.0
        %2600 = vmatpush1.msra.mxu0 0.0
        %2601 = vmatprep.subr.mxu0 0.0
        %2602 = vmatpush1.msra.mxu0 0.0
        %2603 = vmatprep.subr.mxu0 0.0
        %2604 = vmatpush1.msra.mxu0 0.0
        %2605 = vmatprep.subr.mxu0 0.0
        %2606 = vmatpush1.msra.mxu0 0.0
        %2607 = vmatprep.subr.mxu0 0.0
        %2608 = vmatpush1.msra.mxu0 0.0
        %2609 = vmatprep.subr.mxu0 0.0
        %2610 = vmatpush1.msra.mxu0 0.0
        %2611 = vmatprep.subr.mxu0 0.0
        %2612 = vmatpush1.msra.mxu0 0.0
        %2613 = vmatprep.subr.mxu0 0.0
        %2614 = vmatpush1.msra.mxu0 0.0
        %2615 = vmatprep.subr.mxu0 0.0
        %2616 = vmatpush1.msra.mxu0 0.0
        %2617 = vmatprep.subr.mxu0 0.0
        %2618 = vmatpush1.msra.mxu0 0.0
        %2619 = vmatprep.subr.mxu0 0.0
        %2620 = vmatpush1.msra.mxu0 0.0
        %2621 = vmatprep.subr.mxu0 0.0
        %2622 = vmatpush1.msra.mxu0 0.0
        %2623 = vmatprep.subr.mxu0 0.0
        %2624 = vmatpush1.msra.mxu0 0.0
        %2625 = vmatprep.subr.mxu0 0.0
        %2626 = vmatpush1.msra.mxu0 %v2572
        %2627 = vmatprep.subr.mxu0 0.0
        %2628 = vmatpush1.msra.mxu0 %v2571
        %2629 = vmatprep.subr.mxu0 0.0
        %2630 = vmatpush2.msra.mxu0 0.0
        %2631 = vmatprep.subr.mxu0 0.0
        %2632 = vmatpush2.msra.mxu0 0.0
        %2633 = vmatprep.subr.mxu0 0.0
        %2634 = vmatpush2.msra.mxu0 0.0
        %2635 = vmatprep.subr.mxu0 0.0
        %2636 = vmatpush2.msra.mxu0 0.0
        %2637 = vmatprep.subr.mxu0 0.0
        %2638 = vmatpush2.msra.mxu0 0.0
        %2639 = vmatprep.subr.mxu0 0.0
        %2640 = vmatpush2.msra.mxu0 0.0
        %2641 = vmatprep.subr.mxu0 0.0
        %2642 = vmatpush2.msra.mxu0 0.0
        %2643 = vmatprep.subr.mxu0 0.0
        %2644 = vmatpush2.msra.mxu0 0.0
        %2645 = vmatprep.subr.mxu0 0.0
        %2646 = vmatpush2.msra.mxu0 0.0
        %2647 = vmatprep.subr.mxu0 0.0
        %2648 = vmatpush2.msra.mxu0 0.0
        %2649 = vmatprep.subr.mxu0 0.0
        %2650 = vmatpush2.msra.mxu0 0.0
        %2651 = vmatprep.subr.mxu0 0.0
        %2652 = vmatpush2.msra.mxu0 0.0
        %2653 = vmatprep.subr.mxu0 0.0
        %2654 = vmatpush2.msra.mxu0 0.0
        %2655 = vmatprep.subr.mxu0 0.0
        %2656 = vmatpush2.msra.mxu0 0.0
        %2657 = vmatprep.subr.mxu0 0.0
        %2658 = vmatpush2.msra.mxu0 0.0
        %2659 = vmatprep.subr.mxu0 0.0
        %2660 = vmatpush2.msra.mxu0 0.0
        %2661 = vmatprep.mubr.f32.mxu0 0.0
        %2662 = vmatmul.mubr.f32.gmra.mxu0 %v2592
        %v2663 = vpop.f32.mrf.mxu0
        %v2664 = vadd.f32 0.0, %v2663
        %v2665 = vpop.f32.mrf.mxu0
        %2666 = vmatprep.mubr.f32.mxu0 0.0
        %2667 = vmatmul.mubr.f32.gmra.mxu0 %v2595
        %v2668 = vpop.f32.mrf.mxu0
        %v2669 = vadd.f32 0.0, %v2668
        %v2670 = vpop.f32.mrf.mxu0
        %2671 = vdwg.mxu0
        %v2673 = vsel %vm2030, %v2574, 0
        %v2676 = vsel %vm2030, %v2575, 0
        %2678 = vmatprep.subr.mxu0 0.0
        %2679 = vmatpush1.msra.mxu0 0.0
        %2680 = vmatprep.subr.mxu0 0.0
        %2681 = vmatpush1.msra.mxu0 0.0
        %2682 = vmatprep.subr.mxu0 0.0
        %2683 = vmatpush1.msra.mxu0 0.0
        %2684 = vmatprep.subr.mxu0 0.0
        %2685 = vmatpush1.msra.mxu0 0.0
        %2686 = vmatprep.subr.mxu0 0.0
        %2687 = vmatpush1.msra.mxu0 0.0
        %2688 = vmatprep.subr.mxu0 0.0
        %2689 = vmatpush1.msra.mxu0 0.0
        %2690 = vmatprep.subr.mxu0 0.0
        %2691 = vmatpush1.msra.mxu0 0.0
        %2692 = vmatprep.subr.mxu0 0.0
        %2693 = vmatpush1.msra.mxu0 0.0
        %2694 = vmatprep.subr.mxu0 0.0
        %2695 = vmatpush1.msra.mxu0 0.0
        %2696 = vmatprep.subr.mxu0 0.0
        %2697 = vmatpush1.msra.mxu0 0.0
        %2698 = vmatprep.subr.mxu0 0.0
        %2699 = vmatpush1.msra.mxu0 0.0
        %2700 = vmatprep.subr.mxu0 0.0
        %2701 = vmatpush1.msra.mxu0 0.0
        %2702 = vmatprep.subr.mxu0 0.0
        %2703 = vmatpush1.msra.mxu0 0.0
        %2704 = vmatprep.subr.mxu0 0.0
        %2705 = vmatpush1.msra.mxu0 0.0
        %2706 = vmatprep.subr.mxu0 0.0
        %2707 = vmatpush1.msra.mxu0 %v2586
        %2708 = vmatprep.subr.mxu0 0.0
        %2709 = vmatpush1.msra.mxu0 %v2584
        %2710 = vmatprep.subr.mxu0 0.0
        %2711 = vmatpush2.msra.mxu0 0.0
        %2712 = vmatprep.subr.mxu0 0.0
        %2713 = vmatpush2.msra.mxu0 0.0
        %2714 = vmatprep.subr.mxu0 0.0
        %2715 = vmatpush2.msra.mxu0 0.0
        %2716 = vmatprep.subr.mxu0 0.0
        %2717 = vmatpush2.msra.mxu0 0.0
        %2718 = vmatprep.subr.mxu0 0.0
        %2719 = vmatpush2.msra.mxu0 0.0
        %2720 = vmatprep.subr.mxu0 0.0
        %2721 = vmatpush2.msra.mxu0 0.0
        %2722 = vmatprep.subr.mxu0 0.0
        %2723 = vmatpush2.msra.mxu0 0.0
        %2724 = vmatprep.subr.mxu0 0.0
        %2725 = vmatpush2.msra.mxu0 0.0
        %2726 = vmatprep.subr.mxu0 0.0
        %2727 = vmatpush2.msra.mxu0 0.0
        %2728 = vmatprep.subr.mxu0 0.0
        %2729 = vmatpush2.msra.mxu0 0.0
        %2730 = vmatprep.subr.mxu0 0.0
        %2731 = vmatpush2.msra.mxu0 0.0
        %2732 = vmatprep.subr.mxu0 0.0
        %2733 = vmatpush2.msra.mxu0 0.0
        %2734 = vmatprep.subr.mxu0 0.0
        %2735 = vmatpush2.msra.mxu0 0.0
        %2736 = vmatprep.subr.mxu0 0.0
        %2737 = vmatpush2.msra.mxu0 0.0
        %2738 = vmatprep.subr.mxu0 0.0
        %2739 = vmatpush2.msra.mxu0 0.0
        %2740 = vmatprep.subr.mxu0 0.0
        %2741 = vmatpush2.msra.mxu0 0.0
        %2742 = vmatprep.mubr.f32.mxu0 0.0
        %2743 = vmatmul.mubr.f32.gmra.mxu0 %v2673
        %v2744 = vpop.f32.mrf.mxu0
        %v2745 = vadd.f32 %v2664, %v2744
        %v2746 = vpop.f32.mrf.mxu0
        %2747 = vmatprep.mubr.f32.mxu0 0.0
        %2748 = vmatmul.mubr.f32.gmra.mxu0 %v2676
        %v2749 = vpop.f32.mrf.mxu0
        %v2750 = vadd.f32 %v2669, %v2749
        %v2751 = vpop.f32.mrf.mxu0
        %2752 = vdwg.mxu0
        %v2754 = vsel %vm2030, %v2578, 0
        %v2757 = vsel %vm2030, %v2579, 0
        %2759 = vmatprep.subr.mxu0 0.0
        %2760 = vmatpush1.msra.mxu0 0.0
        %2761 = vmatprep.subr.mxu0 0.0
        %2762 = vmatpush1.msra.mxu0 0.0
        %2763 = vmatprep.subr.mxu0 0.0
        %2764 = vmatpush1.msra.mxu0 0.0
        %2765 = vmatprep.subr.mxu0 0.0
        %2766 = vmatpush1.msra.mxu0 0.0
        %2767 = vmatprep.subr.mxu0 0.0
        %2768 = vmatpush1.msra.mxu0 0.0
        %2769 = vmatprep.subr.mxu0 0.0
        %2770 = vmatpush1.msra.mxu0 0.0
        %2771 = vmatprep.subr.mxu0 0.0
        %2772 = vmatpush1.msra.mxu0 0.0
        %2773 = vmatprep.subr.mxu0 0.0
        %2774 = vmatpush1.msra.mxu0 0.0
        %2775 = vmatprep.subr.mxu0 0.0
        %2776 = vmatpush1.msra.mxu0 0.0
        %2777 = vmatprep.subr.mxu0 0.0
        %2778 = vmatpush1.msra.mxu0 0.0
        %2779 = vmatprep.subr.mxu0 0.0
        %2780 = vmatpush1.msra.mxu0 0.0
        %2781 = vmatprep.subr.mxu0 0.0
        %2782 = vmatpush1.msra.mxu0 0.0
        %2783 = vmatprep.subr.mxu0 0.0
        %2784 = vmatpush1.msra.mxu0 0.0
        %2785 = vmatprep.subr.mxu0 0.0
        %2786 = vmatpush1.msra.mxu0 0.0
        %2787 = vmatprep.subr.mxu0 0.0
        %2788 = vmatpush1.msra.mxu0 %v2590
        %2789 = vmatprep.subr.mxu0 0.0
        %2790 = vmatpush1.msra.mxu0 %v2588
        %2791 = vmatprep.subr.mxu0 0.0
        %2792 = vmatpush2.msra.mxu0 0.0
        %2793 = vmatprep.subr.mxu0 0.0
        %2794 = vmatpush2.msra.mxu0 0.0
        %2795 = vmatprep.subr.mxu0 0.0
        %2796 = vmatpush2.msra.mxu0 0.0
        %2797 = vmatprep.subr.mxu0 0.0
        %2798 = vmatpush2.msra.mxu0 0.0
        %2799 = vmatprep.subr.mxu0 0.0
        %2800 = vmatpush2.msra.mxu0 0.0
        %2801 = vmatprep.subr.mxu0 0.0
        %2802 = vmatpush2.msra.mxu0 0.0
        %2803 = vmatprep.subr.mxu0 0.0
        %2804 = vmatpush2.msra.mxu0 0.0
        %2805 = vmatprep.subr.mxu0 0.0
        %2806 = vmatpush2.msra.mxu0 0.0
        %2807 = vmatprep.subr.mxu0 0.0
        %2808 = vmatpush2.msra.mxu0 0.0
        %2809 = vmatprep.subr.mxu0 0.0
        %2810 = vmatpush2.msra.mxu0 0.0
        %2811 = vmatprep.subr.mxu0 0.0
        %2812 = vmatpush2.msra.mxu0 0.0
        %2813 = vmatprep.subr.mxu0 0.0
        %2814 = vmatpush2.msra.mxu0 0.0
        %2815 = vmatprep.subr.mxu0 0.0
        %2816 = vmatpush2.msra.mxu0 0.0
        %2817 = vmatprep.subr.mxu0 0.0
        %2818 = vmatpush2.msra.mxu0 0.0
        %2819 = vmatprep.subr.mxu0 0.0
        %2820 = vmatpush2.msra.mxu0 0.0
        %2821 = vmatprep.subr.mxu0 0.0
        %2822 = vmatpush2.msra.mxu0 0.0
        %2823 = vmatprep.mubr.f32.mxu0 0.0
        %2824 = vmatmul.mubr.f32.gmra.mxu0 %v2754
        %v2825 = vpop.f32.mrf.mxu0
        %v2826 = vadd.f32 0.0, %v2825
        %v2827 = vpop.f32.mrf.mxu0
        %2828 = vmatprep.mubr.f32.mxu0 0.0
        %2829 = vmatmul.mubr.f32.gmra.mxu0 %v2757
        %v2830 = vpop.f32.mrf.mxu0
        %v2831 = vadd.f32 0.0, %v2830
        %v2832 = vpop.f32.mrf.mxu0
        %2833 = vdwg.mxu0
        %v2834 = vadd.f32 %v2745, %v2826
        %v2835 = vadd.f32 %v2750, %v2831
        %2837 = vset.pattern.permute.xlu0 0
        %2838 = vperm.xlu0 %2837, %v2581
        %v2839 = vpop.permute.xlu0 %2838
        %2842 = vset.pattern.permute.xlu0 0
        %2843 = vperm.xlu0 %2842, %v2582
        %v2844 = vpop.permute.xlu0 %2843
        %v2846 = vadd.f32 %v2834, %v2839
        %v2847 = vadd.f32 %v2835, %v2844
        %v2848 = vmax.f32 %v2846, 0.0
        %v2849 = vmax.f32 %v2847, 0.0
        %v2850 = vsel %vm1739, %v2848, 0.0
        %v2851 = vsel %vm1739, %v2849, 0.0
        %s2852 = scalar_lea.vmem %s7, 144
        %v2853 = vld [vmem:[%s2852] sm:$0xff]
        %v2854 = vld [vmem:[%s2852 + $0x8] sm:$0xff]
        %v2855 = vld [vmem:[%s2852 + $0x10] sm:$0xff]
        %v2856 = vld [vmem:[%s2852 + $0x18] sm:$0xff]
        %v2857 = vld [vmem:[%s2852 + $0x20] sm:$0xff]
        %v2858 = vld [vmem:[%s2852 + $0x28] sm:$0xff]
        %s2859 = scalar_lea.vmem %s8, 48
        %v2860 = vld [vmem:[%s2859] sm:$0xff]
        %v2861 = vld [vmem:[%s2859 + $0x8] sm:$0xff]
        %2862 = vrot.lane.b32.xlu0 %v2850, 1
        %v2863 = vpop.permute.xlu0 %2862
        %2864 = vrot.lane.b32.xlu0 %v2851, 1
        %v2865 = vpop.permute.xlu0 %2864
        %2866 = vrot.lane.b32.xlu0 %v2850, 127
        %v2867 = vpop.permute.xlu0 %2866
        %2868 = vrot.lane.b32.xlu0 %v2851, 127
        %v2869 = vpop.permute.xlu0 %2868
        %v2871 = vsel %vm2030, %v2855, 0
        %v2874 = vsel %vm2030, %v2856, 0
        %2876 = vmatprep.subr.mxu0 0.0
        %2877 = vmatpush1.msra.mxu0 0.0
        %2878 = vmatprep.subr.mxu0 0.0
        %2879 = vmatpush1.msra.mxu0 0.0
        %2880 = vmatprep.subr.mxu0 0.0
        %2881 = vmatpush1.msra.mxu0 0.0
        %2882 = vmatprep.subr.mxu0 0.0
        %2883 = vmatpush1.msra.mxu0 0.0
        %2884 = vmatprep.subr.mxu0 0.0
        %2885 = vmatpush1.msra.mxu0 0.0
        %2886 = vmatprep.subr.mxu0 0.0
        %2887 = vmatpush1.msra.mxu0 0.0
        %2888 = vmatprep.subr.mxu0 0.0
        %2889 = vmatpush1.msra.mxu0 0.0
        %2890 = vmatprep.subr.mxu0 0.0
        %2891 = vmatpush1.msra.mxu0 0.0
        %2892 = vmatprep.subr.mxu0 0.0
        %2893 = vmatpush1.msra.mxu0 0.0
        %2894 = vmatprep.subr.mxu0 0.0
        %2895 = vmatpush1.msra.mxu0 0.0
        %2896 = vmatprep.subr.mxu0 0.0
        %2897 = vmatpush1.msra.mxu0 0.0
        %2898 = vmatprep.subr.mxu0 0.0
        %2899 = vmatpush1.msra.mxu0 0.0
        %2900 = vmatprep.subr.mxu0 0.0
        %2901 = vmatpush1.msra.mxu0 0.0
        %2902 = vmatprep.subr.mxu0 0.0
        %2903 = vmatpush1.msra.mxu0 0.0
        %2904 = vmatprep.subr.mxu0 0.0
        %2905 = vmatpush1.msra.mxu0 %v2851
        %2906 = vmatprep.subr.mxu0 0.0
        %2907 = vmatpush1.msra.mxu0 %v2850
        %2908 = vmatprep.subr.mxu0 0.0
        %2909 = vmatpush2.msra.mxu0 0.0
        %2910 = vmatprep.subr.mxu0 0.0
        %2911 = vmatpush2.msra.mxu0 0.0
        %2912 = vmatprep.subr.mxu0 0.0
        %2913 = vmatpush2.msra.mxu0 0.0
        %2914 = vmatprep.subr.mxu0 0.0
        %2915 = vmatpush2.msra.mxu0 0.0
        %2916 = vmatprep.subr.mxu0 0.0
        %2917 = vmatpush2.msra.mxu0 0.0
        %2918 = vmatprep.subr.mxu0 0.0
        %2919 = vmatpush2.msra.mxu0 0.0
        %2920 = vmatprep.subr.mxu0 0.0
        %2921 = vmatpush2.msra.mxu0 0.0
        %2922 = vmatprep.subr.mxu0 0.0
        %2923 = vmatpush2.msra.mxu0 0.0
        %2924 = vmatprep.subr.mxu0 0.0
        %2925 = vmatpush2.msra.mxu0 0.0
        %2926 = vmatprep.subr.mxu0 0.0
        %2927 = vmatpush2.msra.mxu0 0.0
        %2928 = vmatprep.subr.mxu0 0.0
        %2929 = vmatpush2.msra.mxu0 0.0
        %2930 = vmatprep.subr.mxu0 0.0
        %2931 = vmatpush2.msra.mxu0 0.0
        %2932 = vmatprep.subr.mxu0 0.0
        %2933 = vmatpush2.msra.mxu0 0.0
        %2934 = vmatprep.subr.mxu0 0.0
        %2935 = vmatpush2.msra.mxu0 0.0
        %2936 = vmatprep.subr.mxu0 0.0
        %2937 = vmatpush2.msra.mxu0 0.0
        %2938 = vmatprep.subr.mxu0 0.0
        %2939 = vmatpush2.msra.mxu0 0.0
        %2940 = vmatprep.mubr.f32.mxu0 0.0
        %2941 = vmatmul.mubr.f32.gmra.mxu0 %v2871
        %v2942 = vpop.f32.mrf.mxu0
        %v2943 = vadd.f32 0.0, %v2942
        %v2944 = vpop.f32.mrf.mxu0
        %2945 = vmatprep.mubr.f32.mxu0 0.0
        %2946 = vmatmul.mubr.f32.gmra.mxu0 %v2874
        %v2947 = vpop.f32.mrf.mxu0
        %v2948 = vadd.f32 0.0, %v2947
        %v2949 = vpop.f32.mrf.mxu0
        %2950 = vdwg.mxu0
        %v2952 = vsel %vm2030, %v2853, 0
        %v2955 = vsel %vm2030, %v2854, 0
        %2957 = vmatprep.subr.mxu0 0.0
        %2958 = vmatpush1.msra.mxu0 0.0
        %2959 = vmatprep.subr.mxu0 0.0
        %2960 = vmatpush1.msra.mxu0 0.0
        %2961 = vmatprep.subr.mxu0 0.0
        %2962 = vmatpush1.msra.mxu0 0.0
        %2963 = vmatprep.subr.mxu0 0.0
        %2964 = vmatpush1.msra.mxu0 0.0
        %2965 = vmatprep.subr.mxu0 0.0
        %2966 = vmatpush1.msra.mxu0 0.0
        %2967 = vmatprep.subr.mxu0 0.0
        %2968 = vmatpush1.msra.mxu0 0.0
        %2969 = vmatprep.subr.mxu0 0.0
        %2970 = vmatpush1.msra.mxu0 0.0
        %2971 = vmatprep.subr.mxu0 0.0
        %2972 = vmatpush1.msra.mxu0 0.0
        %2973 = vmatprep.subr.mxu0 0.0
        %2974 = vmatpush1.msra.mxu0 0.0
        %2975 = vmatprep.subr.mxu0 0.0
        %2976 = vmatpush1.msra.mxu0 0.0
        %2977 = vmatprep.subr.mxu0 0.0
        %2978 = vmatpush1.msra.mxu0 0.0
        %2979 = vmatprep.subr.mxu0 0.0
        %2980 = vmatpush1.msra.mxu0 0.0
        %2981 = vmatprep.subr.mxu0 0.0
        %2982 = vmatpush1.msra.mxu0 0.0
        %2983 = vmatprep.subr.mxu0 0.0
        %2984 = vmatpush1.msra.mxu0 0.0
        %2985 = vmatprep.subr.mxu0 0.0
        %2986 = vmatpush1.msra.mxu0 %v2865
        %2987 = vmatprep.subr.mxu0 0.0
        %2988 = vmatpush1.msra.mxu0 %v2863
        %2989 = vmatprep.subr.mxu0 0.0
        %2990 = vmatpush2.msra.mxu0 0.0
        %2991 = vmatprep.subr.mxu0 0.0
        %2992 = vmatpush2.msra.mxu0 0.0
        %2993 = vmatprep.subr.mxu0 0.0
        %2994 = vmatpush2.msra.mxu0 0.0
        %2995 = vmatprep.subr.mxu0 0.0
        %2996 = vmatpush2.msra.mxu0 0.0
        %2997 = vmatprep.subr.mxu0 0.0
        %2998 = vmatpush2.msra.mxu0 0.0
        %2999 = vmatprep.subr.mxu0 0.0
        %3000 = vmatpush2.msra.mxu0 0.0
        %3001 = vmatprep.subr.mxu0 0.0
        %3002 = vmatpush2.msra.mxu0 0.0
        %3003 = vmatprep.subr.mxu0 0.0
        %3004 = vmatpush2.msra.mxu0 0.0
        %3005 = vmatprep.subr.mxu0 0.0
        %3006 = vmatpush2.msra.mxu0 0.0
        %3007 = vmatprep.subr.mxu0 0.0
        %3008 = vmatpush2.msra.mxu0 0.0
        %3009 = vmatprep.subr.mxu0 0.0
        %3010 = vmatpush2.msra.mxu0 0.0
        %3011 = vmatprep.subr.mxu0 0.0
        %3012 = vmatpush2.msra.mxu0 0.0
        %3013 = vmatprep.subr.mxu0 0.0
        %3014 = vmatpush2.msra.mxu0 0.0
        %3015 = vmatprep.subr.mxu0 0.0
        %3016 = vmatpush2.msra.mxu0 0.0
        %3017 = vmatprep.subr.mxu0 0.0
        %3018 = vmatpush2.msra.mxu0 0.0
        %3019 = vmatprep.subr.mxu0 0.0
        %3020 = vmatpush2.msra.mxu0 0.0
        %3021 = vmatprep.mubr.f32.mxu0 0.0
        %3022 = vmatmul.mubr.f32.gmra.mxu0 %v2952
        %v3023 = vpop.f32.mrf.mxu0
        %v3024 = vadd.f32 %v2943, %v3023
        %v3025 = vpop.f32.mrf.mxu0
        %3026 = vmatprep.mubr.f32.mxu0 0.0
        %3027 = vmatmul.mubr.f32.gmra.mxu0 %v2955
        %v3028 = vpop.f32.mrf.mxu0
        %v3029 = vadd.f32 %v2948, %v3028
        %v3030 = vpop.f32.mrf.mxu0
        %3031 = vdwg.mxu0
        %v3033 = vsel %vm2030, %v2857, 0
        %v3036 = vsel %vm2030, %v2858, 0
        %3038 = vmatprep.subr.mxu0 0.0
        %3039 = vmatpush1.msra.mxu0 0.0
        %3040 = vmatprep.subr.mxu0 0.0
        %3041 = vmatpush1.msra.mxu0 0.0
        %3042 = vmatprep.subr.mxu0 0.0
        %3043 = vmatpush1.msra.mxu0 0.0
        %3044 = vmatprep.subr.mxu0 0.0
        %3045 = vmatpush1.msra.mxu0 0.0
        %3046 = vmatprep.subr.mxu0 0.0
        %3047 = vmatpush1.msra.mxu0 0.0
        %3048 = vmatprep.subr.mxu0 0.0
        %3049 = vmatpush1.msra.mxu0 0.0
        %3050 = vmatprep.subr.mxu0 0.0
        %3051 = vmatpush1.msra.mxu0 0.0
        %3052 = vmatprep.subr.mxu0 0.0
        %3053 = vmatpush1.msra.mxu0 0.0
        %3054 = vmatprep.subr.mxu0 0.0
        %3055 = vmatpush1.msra.mxu0 0.0
        %3056 = vmatprep.subr.mxu0 0.0
        %3057 = vmatpush1.msra.mxu0 0.0
        %3058 = vmatprep.subr.mxu0 0.0
        %3059 = vmatpush1.msra.mxu0 0.0
        %3060 = vmatprep.subr.mxu0 0.0
        %3061 = vmatpush1.msra.mxu0 0.0
        %3062 = vmatprep.subr.mxu0 0.0
        %3063 = vmatpush1.msra.mxu0 0.0
        %3064 = vmatprep.subr.mxu0 0.0
        %3065 = vmatpush1.msra.mxu0 0.0
        %3066 = vmatprep.subr.mxu0 0.0
        %3067 = vmatpush1.msra.mxu0 %v2869
        %3068 = vmatprep.subr.mxu0 0.0
        %3069 = vmatpush1.msra.mxu0 %v2867
        %3070 = vmatprep.subr.mxu0 0.0
        %3071 = vmatpush2.msra.mxu0 0.0
        %3072 = vmatprep.subr.mxu0 0.0
        %3073 = vmatpush2.msra.mxu0 0.0
        %3074 = vmatprep.subr.mxu0 0.0
        %3075 = vmatpush2.msra.mxu0 0.0
        %3076 = vmatprep.subr.mxu0 0.0
        %3077 = vmatpush2.msra.mxu0 0.0
        %3078 = vmatprep.subr.mxu0 0.0
        %3079 = vmatpush2.msra.mxu0 0.0
        %3080 = vmatprep.subr.mxu0 0.0
        %3081 = vmatpush2.msra.mxu0 0.0
        %3082 = vmatprep.subr.mxu0 0.0
        %3083 = vmatpush2.msra.mxu0 0.0
        %3084 = vmatprep.subr.mxu0 0.0
        %3085 = vmatpush2.msra.mxu0 0.0
        %3086 = vmatprep.subr.mxu0 0.0
        %3087 = vmatpush2.msra.mxu0 0.0
        %3088 = vmatprep.subr.mxu0 0.0
        %3089 = vmatpush2.msra.mxu0 0.0
        %3090 = vmatprep.subr.mxu0 0.0
        %3091 = vmatpush2.msra.mxu0 0.0
        %3092 = vmatprep.subr.mxu0 0.0
        %3093 = vmatpush2.msra.mxu0 0.0
        %3094 = vmatprep.subr.mxu0 0.0
        %3095 = vmatpush2.msra.mxu0 0.0
        %3096 = vmatprep.subr.mxu0 0.0
        %3097 = vmatpush2.msra.mxu0 0.0
        %3098 = vmatprep.subr.mxu0 0.0
        %3099 = vmatpush2.msra.mxu0 0.0
        %3100 = vmatprep.subr.mxu0 0.0
        %3101 = vmatpush2.msra.mxu0 0.0
        %3102 = vmatprep.mubr.f32.mxu0 0.0
        %3103 = vmatmul.mubr.f32.gmra.mxu0 %v3033
        %v3104 = vpop.f32.mrf.mxu0
        %v3105 = vadd.f32 0.0, %v3104
        %v3106 = vpop.f32.mrf.mxu0
        %3107 = vmatprep.mubr.f32.mxu0 0.0
        %3108 = vmatmul.mubr.f32.gmra.mxu0 %v3036
        %v3109 = vpop.f32.mrf.mxu0
        %v3110 = vadd.f32 0.0, %v3109
        %v3111 = vpop.f32.mrf.mxu0
        %3112 = vdwg.mxu0
        %v3113 = vadd.f32 %v3024, %v3105
        %v3114 = vadd.f32 %v3029, %v3110
        %3116 = vset.pattern.permute.xlu0 0
        %3117 = vperm.xlu0 %3116, %v2860
        %v3118 = vpop.permute.xlu0 %3117
        %3121 = vset.pattern.permute.xlu0 0
        %3122 = vperm.xlu0 %3121, %v2861
        %v3123 = vpop.permute.xlu0 %3122
        %v3125 = vadd.f32 %v3113, %v3118
        %v3126 = vadd.f32 %v3114, %v3123
        %v3127 = vmax.f32 %v3125, 0.0
        %v3128 = vmax.f32 %v3126, 0.0
        %v3129 = vsel %vm1739, %v3127, 0.0
        %v3130 = vsel %vm1739, %v3128, 0.0
        %v3131 = vadd.f32 %v3129, %v2571
        %v3132 = vadd.f32 %v3130, %v2572
        %v3133 = vld [vmem:[%s9] sm:$0xff]
        %v3134 = vld [vmem:[%s9 + $0x8] sm:$0xff]
        %v3135 = vld [vmem:[%s9 + $0x10] sm:$0xff]
        %v3136 = vld [vmem:[%s9 + $0x18] sm:$0xff]
        %v3137 = vld [vmem:[%s9 + $0x20] sm:$0xff]
        %v3138 = vld [vmem:[%s9 + $0x28] sm:$0xff]
        %v3139 = vld [vmem:[%s10] sm:$0xff]
        %v3140 = vld [vmem:[%s10 + $0x8] sm:$0xff]
        %3141 = vrot.lane.b32.xlu0 %v3131, 1
        %v3142 = vpop.permute.xlu0 %3141
        %3143 = vrot.lane.b32.xlu0 %v3132, 1
        %v3144 = vpop.permute.xlu0 %3143
        %3145 = vrot.lane.b32.xlu0 %v3131, 127
        %v3146 = vpop.permute.xlu0 %3145
        %3147 = vrot.lane.b32.xlu0 %v3132, 127
        %v3148 = vpop.permute.xlu0 %3147
        %v3150 = vsel %vm2030, %v3135, 0
        %v3153 = vsel %vm2030, %v3136, 0
        %3155 = vmatprep.subr.mxu0 0.0
        %3156 = vmatpush1.msra.mxu0 0.0
        %3157 = vmatprep.subr.mxu0 0.0
        %3158 = vmatpush1.msra.mxu0 0.0
        %3159 = vmatprep.subr.mxu0 0.0
        %3160 = vmatpush1.msra.mxu0 0.0
        %3161 = vmatprep.subr.mxu0 0.0
        %3162 = vmatpush1.msra.mxu0 0.0
        %3163 = vmatprep.subr.mxu0 0.0
        %3164 = vmatpush1.msra.mxu0 0.0
        %3165 = vmatprep.subr.mxu0 0.0
        %3166 = vmatpush1.msra.mxu0 0.0
        %3167 = vmatprep.subr.mxu0 0.0
        %3168 = vmatpush1.msra.mxu0 0.0
        %3169 = vmatprep.subr.mxu0 0.0
        %3170 = vmatpush1.msra.mxu0 0.0
        %3171 = vmatprep.subr.mxu0 0.0
        %3172 = vmatpush1.msra.mxu0 0.0
        %3173 = vmatprep.subr.mxu0 0.0
        %3174 = vmatpush1.msra.mxu0 0.0
        %3175 = vmatprep.subr.mxu0 0.0
        %3176 = vmatpush1.msra.mxu0 0.0
        %3177 = vmatprep.subr.mxu0 0.0
        %3178 = vmatpush1.msra.mxu0 0.0
        %3179 = vmatprep.subr.mxu0 0.0
        %3180 = vmatpush1.msra.mxu0 0.0
        %3181 = vmatprep.subr.mxu0 0.0
        %3182 = vmatpush1.msra.mxu0 0.0
        %3183 = vmatprep.subr.mxu0 0.0
        %3184 = vmatpush1.msra.mxu0 %v3132
        %3185 = vmatprep.subr.mxu0 0.0
        %3186 = vmatpush1.msra.mxu0 %v3131
        %3187 = vmatprep.subr.mxu0 0.0
        %3188 = vmatpush2.msra.mxu0 0.0
        %3189 = vmatprep.subr.mxu0 0.0
        %3190 = vmatpush2.msra.mxu0 0.0
        %3191 = vmatprep.subr.mxu0 0.0
        %3192 = vmatpush2.msra.mxu0 0.0
        %3193 = vmatprep.subr.mxu0 0.0
        %3194 = vmatpush2.msra.mxu0 0.0
        %3195 = vmatprep.subr.mxu0 0.0
        %3196 = vmatpush2.msra.mxu0 0.0
        %3197 = vmatprep.subr.mxu0 0.0
        %3198 = vmatpush2.msra.mxu0 0.0
        %3199 = vmatprep.subr.mxu0 0.0
        %3200 = vmatpush2.msra.mxu0 0.0
        %3201 = vmatprep.subr.mxu0 0.0
        %3202 = vmatpush2.msra.mxu0 0.0
        %3203 = vmatprep.subr.mxu0 0.0
        %3204 = vmatpush2.msra.mxu0 0.0
        %3205 = vmatprep.subr.mxu0 0.0
        %3206 = vmatpush2.msra.mxu0 0.0
        %3207 = vmatprep.subr.mxu0 0.0
        %3208 = vmatpush2.msra.mxu0 0.0
        %3209 = vmatprep.subr.mxu0 0.0
        %3210 = vmatpush2.msra.mxu0 0.0
        %3211 = vmatprep.subr.mxu0 0.0
        %3212 = vmatpush2.msra.mxu0 0.0
        %3213 = vmatprep.subr.mxu0 0.0
        %3214 = vmatpush2.msra.mxu0 0.0
        %3215 = vmatprep.subr.mxu0 0.0
        %3216 = vmatpush2.msra.mxu0 0.0
        %3217 = vmatprep.subr.mxu0 0.0
        %3218 = vmatpush2.msra.mxu0 0.0
        %3219 = vmatprep.mubr.f32.mxu0 0.0
        %3220 = vmatmul.mubr.f32.gmra.mxu0 %v3150
        %v3221 = vpop.f32.mrf.mxu0
        %v3222 = vadd.f32 0.0, %v3221
        %v3223 = vpop.f32.mrf.mxu0
        %3224 = vmatprep.mubr.f32.mxu0 0.0
        %3225 = vmatmul.mubr.f32.gmra.mxu0 %v3153
        %v3226 = vpop.f32.mrf.mxu0
        %v3227 = vadd.f32 0.0, %v3226
        %v3228 = vpop.f32.mrf.mxu0
        %3229 = vdwg.mxu0
        %v3231 = vsel %vm2030, %v3133, 0
        %v3234 = vsel %vm2030, %v3134, 0
        %3236 = vmatprep.subr.mxu0 0.0
        %3237 = vmatpush1.msra.mxu0 0.0
        %3238 = vmatprep.subr.mxu0 0.0
        %3239 = vmatpush1.msra.mxu0 0.0
        %3240 = vmatprep.subr.mxu0 0.0
        %3241 = vmatpush1.msra.mxu0 0.0
        %3242 = vmatprep.subr.mxu0 0.0
        %3243 = vmatpush1.msra.mxu0 0.0
        %3244 = vmatprep.subr.mxu0 0.0
        %3245 = vmatpush1.msra.mxu0 0.0
        %3246 = vmatprep.subr.mxu0 0.0
        %3247 = vmatpush1.msra.mxu0 0.0
        %3248 = vmatprep.subr.mxu0 0.0
        %3249 = vmatpush1.msra.mxu0 0.0
        %3250 = vmatprep.subr.mxu0 0.0
        %3251 = vmatpush1.msra.mxu0 0.0
        %3252 = vmatprep.subr.mxu0 0.0
        %3253 = vmatpush1.msra.mxu0 0.0
        %3254 = vmatprep.subr.mxu0 0.0
        %3255 = vmatpush1.msra.mxu0 0.0
        %3256 = vmatprep.subr.mxu0 0.0
        %3257 = vmatpush1.msra.mxu0 0.0
        %3258 = vmatprep.subr.mxu0 0.0
        %3259 = vmatpush1.msra.mxu0 0.0
        %3260 = vmatprep.subr.mxu0 0.0
        %3261 = vmatpush1.msra.mxu0 0.0
        %3262 = vmatprep.subr.mxu0 0.0
        %3263 = vmatpush1.msra.mxu0 0.0
        %3264 = vmatprep.subr.mxu0 0.0
        %3265 = vmatpush1.msra.mxu0 %v3144
        %3266 = vmatprep.subr.mxu0 0.0
        %3267 = vmatpush1.msra.mxu0 %v3142
        %3268 = vmatprep.subr.mxu0 0.0
        %3269 = vmatpush2.msra.mxu0 0.0
        %3270 = vmatprep.subr.mxu0 0.0
        %3271 = vmatpush2.msra.mxu0 0.0
        %3272 = vmatprep.subr.mxu0 0.0
        %3273 = vmatpush2.msra.mxu0 0.0
        %3274 = vmatprep.subr.mxu0 0.0
        %3275 = vmatpush2.msra.mxu0 0.0
        %3276 = vmatprep.subr.mxu0 0.0
        %3277 = vmatpush2.msra.mxu0 0.0
        %3278 = vmatprep.subr.mxu0 0.0
        %3279 = vmatpush2.msra.mxu0 0.0
        %3280 = vmatprep.subr.mxu0 0.0
        %3281 = vmatpush2.msra.mxu0 0.0
        %3282 = vmatprep.subr.mxu0 0.0
        %3283 = vmatpush2.msra.mxu0 0.0
        %3284 = vmatprep.subr.mxu0 0.0
        %3285 = vmatpush2.msra.mxu0 0.0
        %3286 = vmatprep.subr.mxu0 0.0
        %3287 = vmatpush2.msra.mxu0 0.0
        %3288 = vmatprep.subr.mxu0 0.0
        %3289 = vmatpush2.msra.mxu0 0.0
        %3290 = vmatprep.subr.mxu0 0.0
        %3291 = vmatpush2.msra.mxu0 0.0
        %3292 = vmatprep.subr.mxu0 0.0
        %3293 = vmatpush2.msra.mxu0 0.0
        %3294 = vmatprep.subr.mxu0 0.0
        %3295 = vmatpush2.msra.mxu0 0.0
        %3296 = vmatprep.subr.mxu0 0.0
        %3297 = vmatpush2.msra.mxu0 0.0
        %3298 = vmatprep.subr.mxu0 0.0
        %3299 = vmatpush2.msra.mxu0 0.0
        %3300 = vmatprep.mubr.f32.mxu0 0.0
        %3301 = vmatmul.mubr.f32.gmra.mxu0 %v3231
        %v3302 = vpop.f32.mrf.mxu0
        %v3303 = vadd.f32 %v3222, %v3302
        %v3304 = vpop.f32.mrf.mxu0
        %3305 = vmatprep.mubr.f32.mxu0 0.0
        %3306 = vmatmul.mubr.f32.gmra.mxu0 %v3234
        %v3307 = vpop.f32.mrf.mxu0
        %v3308 = vadd.f32 %v3227, %v3307
        %v3309 = vpop.f32.mrf.mxu0
        %3310 = vdwg.mxu0
        %v3312 = vsel %vm2030, %v3137, 0
        %v3315 = vsel %vm2030, %v3138, 0
        %3317 = vmatprep.subr.mxu0 0.0
        %3318 = vmatpush1.msra.mxu0 0.0
        %3319 = vmatprep.subr.mxu0 0.0
        %3320 = vmatpush1.msra.mxu0 0.0
        %3321 = vmatprep.subr.mxu0 0.0
        %3322 = vmatpush1.msra.mxu0 0.0
        %3323 = vmatprep.subr.mxu0 0.0
        %3324 = vmatpush1.msra.mxu0 0.0
        %3325 = vmatprep.subr.mxu0 0.0
        %3326 = vmatpush1.msra.mxu0 0.0
        %3327 = vmatprep.subr.mxu0 0.0
        %3328 = vmatpush1.msra.mxu0 0.0
        %3329 = vmatprep.subr.mxu0 0.0
        %3330 = vmatpush1.msra.mxu0 0.0
        %3331 = vmatprep.subr.mxu0 0.0
        %3332 = vmatpush1.msra.mxu0 0.0
        %3333 = vmatprep.subr.mxu0 0.0
        %3334 = vmatpush1.msra.mxu0 0.0
        %3335 = vmatprep.subr.mxu0 0.0
        %3336 = vmatpush1.msra.mxu0 0.0
        %3337 = vmatprep.subr.mxu0 0.0
        %3338 = vmatpush1.msra.mxu0 0.0
        %3339 = vmatprep.subr.mxu0 0.0
        %3340 = vmatpush1.msra.mxu0 0.0
        %3341 = vmatprep.subr.mxu0 0.0
        %3342 = vmatpush1.msra.mxu0 0.0
        %3343 = vmatprep.subr.mxu0 0.0
        %3344 = vmatpush1.msra.mxu0 0.0
        %3345 = vmatprep.subr.mxu0 0.0
        %3346 = vmatpush1.msra.mxu0 %v3148
        %3347 = vmatprep.subr.mxu0 0.0
        %3348 = vmatpush1.msra.mxu0 %v3146
        %3349 = vmatprep.subr.mxu0 0.0
        %3350 = vmatpush2.msra.mxu0 0.0
        %3351 = vmatprep.subr.mxu0 0.0
        %3352 = vmatpush2.msra.mxu0 0.0
        %3353 = vmatprep.subr.mxu0 0.0
        %3354 = vmatpush2.msra.mxu0 0.0
        %3355 = vmatprep.subr.mxu0 0.0
        %3356 = vmatpush2.msra.mxu0 0.0
        %3357 = vmatprep.subr.mxu0 0.0
        %3358 = vmatpush2.msra.mxu0 0.0
        %3359 = vmatprep.subr.mxu0 0.0
        %3360 = vmatpush2.msra.mxu0 0.0
        %3361 = vmatprep.subr.mxu0 0.0
        %3362 = vmatpush2.msra.mxu0 0.0
        %3363 = vmatprep.subr.mxu0 0.0
        %3364 = vmatpush2.msra.mxu0 0.0
        %3365 = vmatprep.subr.mxu0 0.0
        %3366 = vmatpush2.msra.mxu0 0.0
        %3367 = vmatprep.subr.mxu0 0.0
        %3368 = vmatpush2.msra.mxu0 0.0
        %3369 = vmatprep.subr.mxu0 0.0
        %3370 = vmatpush2.msra.mxu0 0.0
        %3371 = vmatprep.subr.mxu0 0.0
        %3372 = vmatpush2.msra.mxu0 0.0
        %3373 = vmatprep.subr.mxu0 0.0
        %3374 = vmatpush2.msra.mxu0 0.0
        %3375 = vmatprep.subr.mxu0 0.0
        %3376 = vmatpush2.msra.mxu0 0.0
        %3377 = vmatprep.subr.mxu0 0.0
        %3378 = vmatpush2.msra.mxu0 0.0
        %3379 = vmatprep.subr.mxu0 0.0
        %3380 = vmatpush2.msra.mxu0 0.0
        %3381 = vmatprep.mubr.f32.mxu0 0.0
        %3382 = vmatmul.mubr.f32.gmra.mxu0 %v3312
        %v3383 = vpop.f32.mrf.mxu0
        %v3384 = vadd.f32 0.0, %v3383
        %v3385 = vpop.f32.mrf.mxu0
        %3386 = vmatprep.mubr.f32.mxu0 0.0
        %3387 = vmatmul.mubr.f32.gmra.mxu0 %v3315
        %v3388 = vpop.f32.mrf.mxu0
        %v3389 = vadd.f32 0.0, %v3388
        %v3390 = vpop.f32.mrf.mxu0
        %3391 = vdwg.mxu0
        %v3392 = vadd.f32 %v3303, %v3384
        %v3393 = vadd.f32 %v3308, %v3389
        %3395 = vset.pattern.permute.xlu0 0
        %3396 = vperm.xlu0 %3395, %v3139
        %v3397 = vpop.permute.xlu0 %3396
        %3400 = vset.pattern.permute.xlu0 0
        %3401 = vperm.xlu0 %3400, %v3140
        %v3402 = vpop.permute.xlu0 %3401
        %v3404 = vadd.f32 %v3392, %v3397
        %v3405 = vadd.f32 %v3393, %v3402
        %v3406 = vmax.f32 %v3404, 0.0
        %v3407 = vmax.f32 %v3405, 0.0
        %v3408 = vsel %vm1739, %v3406, 0.0
        %v3409 = vsel %vm1739, %v3407, 0.0
        %3410 = vst [vmem:[%s379] sm:$0xff] %v3408
        %3411 = vst [vmem:[%s379 + $0x8] sm:$0xff] %v3409
        %s3412 = sand.u32 %s269, 1
        %s3413 = scalar_lea.sflag [#allocation3], %s3412
        %s3414 = sand.u32 %s269, 1
        %s3415 = smul.addr %s3414, 16
        %s3416 = scalar_lea.vmem [#allocation2], %s3415
        // Predicated region
        $region65: #{tpu_custom_call.1} parent=63 // pred_check
          %p3417 = pneg %p279
        $region66: #{tpu_custom_call.1} parent=63 // pred_check_branch
          %3419 = sbr.rel (%p3417) target = $region68
        $region67: #{tpu_custom_call.1} parent=63 // pred_region
          %s3421 = ssub.s32 256, 256
          %3422 = vsyncadd %s3413, %s3421
          %s3423 = smul.addr %s25, 2
          %s3424 = smul.addr %s3423, 128
          %s3425 = scalar_lea.hbm %s11, %s3424
          %s3426 = sshll.u32 %s3416, 4
          %s3427 = int_to_ptr.vmem [resolvable:$true] %s3426
          %3432 = dma.vmem_to_hbm [thread:$0]  %s3427, 256, %s3425, %s3413, 128, 128, 8
        $region68: #{tpu_custom_call.1} parent=63 // pred_fallthru
          _
      $region64: #{tpu_custom_call.1} parent=5 // pred_fallthru
        _
      %p3433 = scmp.le.s32.totalorder 2, %s20
      // Predicated region
      $region69: #{tpu_custom_call.1} parent=5 // pred_check
        %p3434 = pneg %p3433
      $region70: #{tpu_custom_call.1} parent=5 // pred_check_branch
        %3436 = sbr.rel (%p3434) target = $region72
      $region71: #{tpu_custom_call.1} parent=5 // pred_region
        %s3437 = ssub.s32 %s20, 2
        // Predicated region
        $region73: #{tpu_custom_call.1} parent=71 // pred_check
          %p3438 = pneg %p285
        $region74: #{tpu_custom_call.1} parent=71 // pred_check_branch
          %3440 = sbr.rel (%p3438) target = $region76
        $region75: #{tpu_custom_call.1} parent=71 // pred_region
          %s3441 = sand.u32 %s270, 1
          %s3442 = scalar_lea.sflag [#allocation3], %s3441
          %s3443 = sand.u32 %s270, 1
          %s3444 = smul.addr %s3443, 16
          %s3445 = scalar_lea.vmem [#allocation2], %s3444
          %3446 = dma.done %s3442, 256
        $region76: #{tpu_custom_call.1} parent=71 // pred_fallthru
          _
      $region72: #{tpu_custom_call.1} parent=5 // pred_fallthru
        _
    $region6: #{tpu_custom_call.1} parent=1 // loop_footer
      %s24 = sadd.s32 1, %s20
    $region7: #{tpu_custom_call.1} parent=1 // loop_footer_branch
      %19 = sbr.rel target = $region3
    $region8: #{tpu_custom_call.1} parent=1 // loop_exit
      _
    %3447 = vsyncpa [#allocation3], 1
    %s3448 = scalar_lea.sflag [#allocation3], 1
    %3449 = vsyncpa %s3448, 1

</llo_original>
